<compile_context>
chip_gen: v6e
topology: v6e:2x2x1
jax: 0.10.0
libtpu: 0.0.40
codegen_flags: <defaults>
</compile_context>

<pallas_src>
import functools

import jax
import jax.numpy as jnp
from jax import lax
from jax.experimental import pallas as pl
from jax.experimental.pallas import tpu as pltpu


LANE = 128


def _round_up(x, m):
    return ((x + m - 1) // m) * m


def _vmem_capacity_bytes():
    """Per-generation VMEM capacity (bytes) with a conservative fallback."""
    try:
        info = pltpu.get_tpu_info()
        cap = getattr(info, "vmem_capacity_bytes", None)
        if cap:
            return int(cap)
    except Exception:
        pass
    return 64 * 1024 * 1024  # conservative: v7x per-TensorCore VMEM


def pad_params(params, *, input_dim, num_heads, head_dim):
    """One-time (init-time) zero padding of weights/biases to lane-dense shapes.

    Padded rows/cols are exactly zero so they contribute nothing to the math.
    (On v6e/v7x, rounding to 256 is MXU-optimal when real dims allow; 128 is
    sufficient here and on v5e.)
    """
    E = num_heads * head_dim
    din_p = _round_up(input_dim, LANE)
    e_pad = _round_up(E, LANE)

    def pw(w):
        return jnp.pad(w, ((0, din_p - input_dim), (0, e_pad - E)))

    def pb(b):
        return jnp.pad(b, ((0, 0), (0, e_pad - E)))

    return {
        "wq": pw(params["wq"]), "bq": pb(params["bq"]),
        "wk": pw(params["wk"]), "bk": pb(params["bk"]),
        "wv": pw(params["wv"]), "bv": pb(params["bv"]),
    }


def _mha_kernel(q_ref, k_ref, v_ref,
                wq_ref, bq_ref, wk_ref, bk_ref, wv_ref, bv_ref,
                o_ref, *, num_heads, head_dim, skv_real):
    """Fused QKV projection + multi-head attention for one batch block.

    Ref shapes (per grid step):
      q_ref: (bblk, Sq_p, Din_p)   k_ref/v_ref: (bblk, Skv_p, Din_p)
      w*_ref: (Din_p, E_p)         b*_ref: (1, E_p)
      o_ref: (bblk, Sq_p, E_p)
    """
    bblk, sq_p, din_p = q_ref.shape
    skv_p = k_ref.shape[1]
    e_pad = o_ref.shape[-1]
    E = num_heads * head_dim
    attn_dtype = q_ref.dtype  # MXU operands in model dtype (bf16 stays bf16)

    # ---- fused QKV projections: one big lane-dense 2-D MXU matmul each ----
    # Sq_p/Skv_p are multiples of the sublane pack, so these reshapes are views.
    q2 = q_ref[...].reshape(bblk * sq_p, din_p)
    k2 = k_ref[...].reshape(bblk * skv_p, din_p)
    v2 = v_ref[...].reshape(bblk * skv_p, din_p)

    Q = jnp.dot(q2, wq_ref[...], preferred_element_type=jnp.float32) + bq_ref[...]
    K = jnp.dot(k2, wk_ref[...], preferred_element_type=jnp.float32) + bk_ref[...]
    V = jnp.dot(v2, wv_ref[...], preferred_element_type=jnp.float32) + bv_ref[...]
    V = jnp.maximum(V, 0.0)  # ReLU on the value projection (eval-mode dropout = identity)

    # Cast once to the model dtype for the attention matmuls (f32 models: no-op).
    Q3 = Q.astype(attn_dtype).reshape(bblk, sq_p, e_pad)
    K3 = K.astype(attn_dtype).reshape(bblk, skv_p, e_pad)
    V3 = V.astype(attn_dtype).reshape(bblk, skv_p, e_pad)

    scale = 1.0 / float(head_dim) ** 0.5

    # Mask for padded key rows (their projected K rows equal the bias, not 0),
    # built once per grid step; statically skipped when Skv needs no padding.
    kv_valid = None
    if skv_p > skv_real:
        kv_idx = lax.broadcasted_iota(jnp.int32, (1, 1, skv_p), 2)
        kv_valid = kv_idx < skv_real

    head_outs = []
    for h in range(num_heads):  # static loop over heads only
        lo = h * head_dim
        Qh = Q3[:, :, lo:lo + head_dim]          # (bblk, Sq_p, hd)
        Kh = K3[:, :, lo:lo + head_dim]          # (bblk, Skv_p, hd)
        Vh = V3[:, :, lo:lo + head_dim]          # (bblk, Skv_p, hd)

        # Batched over the batch block: one dot per head, not bblk*H tiny dots.
        s = jnp.einsum("bqd,bkd->bqk", Qh, Kh,
                       preferred_element_type=jnp.float32) * scale
        if kv_valid is not None:
            s = jnp.where(kv_valid, s, jnp.float32(-1e30))

        # Softmax kept entirely in f32 (v5e has no bf16 VPU/EUP).
        m = jnp.max(s, axis=-1, keepdims=True)
        e = jnp.exp(s - m)
        denom = jnp.sum(e, axis=-1, keepdims=True)
        # TODO(synk): approx=True (EUP vrcp, ~free) once ~1e-3 error is acceptable.
        p = e * pl.reciprocal(denom, approx=False)

        head_outs.append(
            jnp.einsum("bqk,bkd->bqd", p.astype(attn_dtype), Vh,
                       preferred_element_type=jnp.float32))   # (bblk, Sq_p, hd)

    # Single hoisted zero pad + single concatenate + single lane-dense store.
    if e_pad > E:
        head_outs.append(jnp.zeros((bblk, sq_p, e_pad - E), jnp.float32))
    out = jnp.concatenate(head_outs, axis=-1)                  # (bblk, Sq_p, E_p)
    o_ref[...] = out.astype(o_ref.dtype)


def multihead_attention(q, k, v, padded_params, *, num_heads, head_dim,
                        max_batch_block=8):
    """q: (B, Sq, Din), k/v: (B, Skv, Din) -> (B, Sq, num_heads*head_dim).

    `padded_params` must come from pad_params() (weights (Din_p, E_p), biases (1, E_p)).
    """
    B, Sq, Din = q.shape
    _, Skv, _ = k.shape
    E = num_heads * head_dim
    din_p, e_pad = padded_params["wq"].shape

    # Sublane pack for the activation dtype so in-kernel reshapes stay views.
    itemsize = jnp.dtype(q.dtype).itemsize
    pack = max(8, 32 // itemsize)
    sq_p = _round_up(Sq, pack)
    skv_p = _round_up(Skv, pack)

    def pad_act(x, s_p):
        pads = [(0, 0), (0, s_p - x.shape[1]), (0, din_p - x.shape[2])]
        if all(p == (0, 0) for p in pads):
            return x
        return jnp.pad(x, pads)

    # TODO(synk): keep activations in the padded (S_p, Din_p/E_p) layout across
    # the surrounding model so these per-call pads and the final slice disappear.
    q_p = pad_act(q, sq_p)
    k_p = pad_act(k, skv_p)
    v_p = pad_act(v, skv_p)

    in_bytes = itemsize
    w_bytes = jnp.dtype(padded_params["wq"].dtype).itemsize

    def vmem_estimate(bblk):
        # Double-buffered activation tiles + output, single-buffered weights,
        # plus in-kernel f32 intermediates that BlockSpec accounting can't see.
        inputs = 2 * (bblk * sq_p * din_p + 2 * bblk * skv_p * din_p) * in_bytes
        outputs = 2 * bblk * sq_p * e_pad * in_bytes
        weights = 3 * (din_p * e_pad + e_pad) * w_bytes
        qkv_f32 = (bblk * sq_p + 2 * bblk * skv_p) * e_pad * 4
        scores = 2 * bblk * sq_p * skv_p * 4          # scores + probs (live per head)
        ctx = bblk * sq_p * e_pad * 4                 # concatenated head outputs
        return inputs + outputs + weights + qkv_f32 + scores + ctx

    vmem_cap = _vmem_capacity_bytes()
    budget = int(0.7 * vmem_cap)
    vmem_limit = min(int(0.9 * vmem_cap), 128 * 1024 * 1024)

    # --- batch-block selection: amortize ~0.35us/step, fit VMEM, keep 2 TCs busy ---
    bblk = max(1, min(max_batch_block, B))
    while B % bblk:
        bblk -= 1
    while bblk > 1 and vmem_estimate(bblk) > budget:
        bblk -= 1
        while B % bblk:
            bblk -= 1
    # >= 2 "parallel" grid steps whenever possible: v7x has 2 TensorCores per
    # chip and v5e/v6e megacore shards parallel axes; grid=1 idles half the chip.
    if B >= 2 and B // bblk < 2:
        bblk = max(1, bblk // 2)
        while B % bblk:
            bblk -= 1

    kernel = functools.partial(
        _mha_kernel, num_heads=num_heads, head_dim=head_dim, skv_real=Skv)

    def build(single_buffer_weights):
        # Weights/biases are resident across the grid (constant block index);
        # single-buffer them to halve their VMEM footprint (matters on v7x).
        if single_buffer_weights:
            w_spec = pl.BlockSpec((din_p, e_pad), lambda b: (0, 0),
                                  pipeline_mode=pl.Buffered(1))
            b_spec = pl.BlockSpec((1, e_pad), lambda b: (0, 0),
                                  pipeline_mode=pl.Buffered(1))
        else:
            w_spec = pl.BlockSpec((din_p, e_pad), lambda b: (0, 0))
            b_spec = pl.BlockSpec((1, e_pad), lambda b: (0, 0))
        return pl.pallas_call(
            kernel,
            out_shape=jax.ShapeDtypeStruct((B, sq_p, e_pad), q.dtype),
            grid_spec=pltpu.PrefetchScalarGridSpec(
                num_scalar_prefetch=0,
                grid=(B // bblk,),
                in_specs=[
                    pl.BlockSpec((bblk, sq_p, din_p), lambda b: (b, 0, 0)),
                    pl.BlockSpec((bblk, skv_p, din_p), lambda b: (b, 0, 0)),
                    pl.BlockSpec((bblk, skv_p, din_p), lambda b: (b, 0, 0)),
                    w_spec, b_spec,   # query_map
                    w_spec, b_spec,   # key_map
                    w_spec, b_spec,   # value_map
                ],
                out_specs=pl.BlockSpec((bblk, sq_p, e_pad), lambda b: (b, 0, 0)),
            ),
            compiler_params=pltpu.CompilerParams(
                dimension_semantics=("parallel",),
                vmem_limit_bytes=vmem_limit),
        )

    args = (q_p, k_p, v_p,
            padded_params["wq"], padded_params["bq"],
            padded_params["wk"], padded_params["bk"],
            padded_params["wv"], padded_params["bv"])

    try:
        out_p = build(True)(*args)
    except Exception:
        # pl.Buffered(1) not supported by this jax/Mosaic version; fall back to
        # default double-buffered weight specs (identical results).
        out_p = build(False)(*args)

    return out_p[:, :Sq, :E]


def _reference(q, k, v, params, *, num_heads, head_dim):
    """Pure-JAX reference mirroring the PyTorch forward (eval mode), f32-exact."""
    hp = jax.lax.Precision.HIGHEST

    def lin(x, w, b):
        return jnp.dot(x, w, precision=hp) + b[0]

    Q = lin(q, params["wq"], params["bq"])
    K = lin(k, params["wk"], params["bk"])
    V = jnp.maximum(lin(v, params["wv"], params["bv"]), 0.0)

    def split(x):
        B, S, _ = x.shape
        return x.reshape(B, S, num_heads, head_dim).transpose(0, 2, 1, 3)

    Qh, Kh, Vh = split(Q), split(K), split(V)
    scores = jnp.einsum("bhqd,bhkd->bhqk", Qh, Kh, precision=hp)
    scores = scores / jnp.sqrt(jnp.float32(head_dim))
    p = jax.nn.softmax(scores, axis=-1)
    out = jnp.einsum("bhqk,bhkd->bhqd", p, Vh, precision=hp)
    B, H, S, D = out.shape
    return out.transpose(0, 2, 1, 3).reshape(B, S, H * D)


if __name__ == "__main__":
    num_heads, head_dim, input_dim = 4, 8, 32
    embed_dim = num_heads * head_dim
    B, Sq, Skv = 2, 8, 8

    key = jax.random.PRNGKey(0)
    keys = jax.random.split(key, 9)

    # nn.Linear weights stored transposed: (input_dim, embed_dim); biases (1, embed_dim).
    params = {
        "wq": jax.random.normal(keys[0], (input_dim, embed_dim), jnp.float32) * 0.1,
        "bq": jax.random.normal(keys[1], (1, embed_dim), jnp.float32) * 0.1,
        "wk": jax.random.normal(keys[2], (input_dim, embed_dim), jnp.float32) * 0.1,
        "bk": jax.random.normal(keys[3], (1, embed_dim), jnp.float32) * 0.1,
        "wv": jax.random.normal(keys[4], (input_dim, embed_dim), jnp.float32) * 0.1,
        "bv": jax.random.normal(keys[5], (1, embed_dim), jnp.float32) * 0.1,
    }

    q = jax.random.normal(keys[6], (B, Sq, input_dim), jnp.float32)
    k = jax.random.normal(keys[7], (B, Skv, input_dim), jnp.float32)
    v = jax.random.normal(keys[8], (B, Skv, input_dim), jnp.float32)

    # One-time parameter padding (init-time, not per call).
    padded = pad_params(params, input_dim=input_dim,
                        num_heads=num_heads, head_dim=head_dim)

    out = multihead_attention(q, k, v, padded,
                              num_heads=num_heads, head_dim=head_dim)
    out = jax.block_until_ready(out)

    ref = _reference(q, k, v, params, num_heads=num_heads, head_dim=head_dim)
    assert out.shape == (B, Sq, embed_dim)
    # Tolerance covers f32 MXU multi-pass differences between Mosaic and XLA.
    assert jnp.allclose(out, ref, atol=2e-3, rtol=2e-3), "mismatch vs reference"

    print("KERNEL_OK")
</pallas_src>

<mosaic_0001>
module attributes {stable_mosaic.version = 11 : i64} {
  func.func @_mha_kernel(%arg0: i32, %arg1: memref<1x8x128xf32, #tpu.memory_space<vmem>>, %arg2: memref<1x8x128xf32, #tpu.memory_space<vmem>>, %arg3: memref<1x8x128xf32, #tpu.memory_space<vmem>>, %arg4: memref<128x128xf32, #tpu.memory_space<vmem>>, %arg5: memref<1x128xf32, #tpu.memory_space<vmem>>, %arg6: memref<128x128xf32, #tpu.memory_space<vmem>>, %arg7: memref<1x128xf32, #tpu.memory_space<vmem>>, %arg8: memref<128x128xf32, #tpu.memory_space<vmem>>, %arg9: memref<1x128xf32, #tpu.memory_space<vmem>>, %arg10: memref<1x8x128xf32, #tpu.memory_space<vmem>>) attributes {dimension_semantics = [#tpu.dimension_semantics<parallel>], iteration_bounds = array<i64: 2>, scalar_prefetch = 0 : i64, scratch_operands = 0 : i64, tpu.core_type = #tpu.core_type<tc>, window_params = [{transform_indices = @transform_0, window_bounds = array<i64: 1, 8, 128>}, {transform_indices = @transform_1, window_bounds = array<i64: 1, 8, 128>}, {transform_indices = @transform_2, window_bounds = array<i64: 1, 8, 128>}, {pipeline_mode = #tpu.pipeline_mode<synchronous>, transform_indices = @transform_3, window_bounds = array<i64: 128, 128>}, {pipeline_mode = #tpu.pipeline_mode<synchronous>, transform_indices = @transform_4, window_bounds = array<i64: 1, 128>}, {pipeline_mode = #tpu.pipeline_mode<synchronous>, transform_indices = @transform_5, window_bounds = array<i64: 128, 128>}, {pipeline_mode = #tpu.pipeline_mode<synchronous>, transform_indices = @transform_6, window_bounds = array<i64: 1, 128>}, {pipeline_mode = #tpu.pipeline_mode<synchronous>, transform_indices = @transform_7, window_bounds = array<i64: 128, 128>}, {pipeline_mode = #tpu.pipeline_mode<synchronous>, transform_indices = @transform_8, window_bounds = array<i64: 1, 128>}, {transform_indices = @transform_9, window_bounds = array<i64: 1, 8, 128>}]} {
    %c0 = arith.constant 0 : index
    %c0_0 = arith.constant 0 : index
    %c0_1 = arith.constant 0 : index
    %0 = vector.load %arg1[%c0, %c0_0, %c0_1] : memref<1x8x128xf32, #tpu.memory_space<vmem>>, vector<1x8x128xf32>
    %1 = vector.shape_cast %0 : vector<1x8x128xf32> to vector<8x128xf32>
    %c0_2 = arith.constant 0 : index
    %c0_3 = arith.constant 0 : index
    %c0_4 = arith.constant 0 : index
    %2 = vector.load %arg2[%c0_2, %c0_3, %c0_4] : memref<1x8x128xf32, #tpu.memory_space<vmem>>, vector<1x8x128xf32>
    %3 = vector.shape_cast %2 : vector<1x8x128xf32> to vector<8x128xf32>
    %c0_5 = arith.constant 0 : index
    %c0_6 = arith.constant 0 : index
    %c0_7 = arith.constant 0 : index
    %4 = vector.load %arg3[%c0_5, %c0_6, %c0_7] : memref<1x8x128xf32, #tpu.memory_space<vmem>>, vector<1x8x128xf32>
    %5 = vector.shape_cast %4 : vector<1x8x128xf32> to vector<8x128xf32>
    %c0_8 = arith.constant 0 : index
    %c0_9 = arith.constant 0 : index
    %6 = vector.load %arg4[%c0_8, %c0_9] : memref<128x128xf32, #tpu.memory_space<vmem>>, vector<128x128xf32>
    %cst = arith.constant dense<0.000000e+00> : vector<8x128xf32>
    %7 = tpu.matmul %1, %6, %cst {dimension_numbers = #tpu.dot_dimension_numbers<[1], [0], [0], [1], [0, 0, 1, 1], [], []>} : vector<8x128xf32>, vector<128x128xf32>, vector<8x128xf32> -> vector<8x128xf32>
    %c0_10 = arith.constant 0 : index
    %c0_11 = arith.constant 0 : index
    %8 = vector.load %arg5[%c0_10, %c0_11] : memref<1x128xf32, #tpu.memory_space<vmem>>, vector<1x128xf32>
    %9 = vector.broadcast %8 : vector<1x128xf32> to vector<8x128xf32>
    %10 = arith.addf %7, %9 : vector<8x128xf32>
    %c0_12 = arith.constant 0 : index
    %c0_13 = arith.constant 0 : index
    %11 = vector.load %arg6[%c0_12, %c0_13] : memref<128x128xf32, #tpu.memory_space<vmem>>, vector<128x128xf32>
    %cst_14 = arith.constant dense<0.000000e+00> : vector<8x128xf32>
    %12 = tpu.matmul %3, %11, %cst_14 {dimension_numbers = #tpu.dot_dimension_numbers<[1], [0], [0], [1], [0, 0, 1, 1], [], []>} : vector<8x128xf32>, vector<128x128xf32>, vector<8x128xf32> -> vector<8x128xf32>
    %c0_15 = arith.constant 0 : index
    %c0_16 = arith.constant 0 : index
    %13 = vector.load %arg7[%c0_15, %c0_16] : memref<1x128xf32, #tpu.memory_space<vmem>>, vector<1x128xf32>
    %14 = vector.broadcast %13 : vector<1x128xf32> to vector<8x128xf32>
    %15 = arith.addf %12, %14 : vector<8x128xf32>
    %c0_17 = arith.constant 0 : index
    %c0_18 = arith.constant 0 : index
    %16 = vector.load %arg8[%c0_17, %c0_18] : memref<128x128xf32, #tpu.memory_space<vmem>>, vector<128x128xf32>
    %cst_19 = arith.constant dense<0.000000e+00> : vector<8x128xf32>
    %17 = tpu.matmul %5, %16, %cst_19 {dimension_numbers = #tpu.dot_dimension_numbers<[1], [0], [0], [1], [0, 0, 1, 1], [], []>} : vector<8x128xf32>, vector<128x128xf32>, vector<8x128xf32> -> vector<8x128xf32>
    %c0_20 = arith.constant 0 : index
    %c0_21 = arith.constant 0 : index
    %18 = vector.load %arg9[%c0_20, %c0_21] : memref<1x128xf32, #tpu.memory_space<vmem>>, vector<1x128xf32>
    %19 = vector.broadcast %18 : vector<1x128xf32> to vector<8x128xf32>
    %20 = arith.addf %17, %19 : vector<8x128xf32>
    %cst_22 = arith.constant 0.000000e+00 : f32
    %21 = vector.broadcast %cst_22 : f32 to vector<8x128xf32>
    %22 = arith.maximumf %20, %21 : vector<8x128xf32>
    %23 = vector.shape_cast %10 : vector<8x128xf32> to vector<1x8x128xf32>
    %24 = vector.shape_cast %15 : vector<8x128xf32> to vector<1x8x128xf32>
    %25 = vector.shape_cast %22 : vector<8x128xf32> to vector<1x8x128xf32>
    %26 = vector.extract_strided_slice %23 {offsets = [0, 0, 0], sizes = [1, 8, 8], strides = [1, 1, 1]} : vector<1x8x128xf32> to vector<1x8x8xf32>
    %27 = vector.extract_strided_slice %24 {offsets = [0, 0, 0], sizes = [1, 8, 8], strides = [1, 1, 1]} : vector<1x8x128xf32> to vector<1x8x8xf32>
    %28 = vector.extract_strided_slice %25 {offsets = [0, 0, 0], sizes = [1, 8, 8], strides = [1, 1, 1]} : vector<1x8x128xf32> to vector<1x8x8xf32>
    "tpu.trace_start"() <{level = 10 : i32, message = "bqd,bkd->bqk"}> : () -> ()
    %cst_23 = arith.constant dense<0.000000e+00> : vector<1x8x8xf32>
    %29 = tpu.matmul %26, %27, %cst_23 {dimension_numbers = #tpu.dot_dimension_numbers<[2], [2], [1], [1], [0, 0, 0, 1, 1, 1], [0], [0]>} : vector<1x8x8xf32>, vector<1x8x8xf32>, vector<1x8x8xf32> -> vector<1x8x8xf32>
    "tpu.trace_stop"() : () -> ()
    %cst_24 = arith.constant 0.353553385 : f32
    %30 = vector.broadcast %cst_24 : f32 to vector<1x8x8xf32>
    %31 = arith.mulf %29, %30 : vector<1x8x8xf32>
    %cst_25 = arith.constant dense<0xFF800000> : vector<1x8xf32>
    %32 = vector.multi_reduction <maximumf>, %31, %cst_25 [2] : vector<1x8x8xf32> to vector<1x8xf32>
    %33 = vector.shape_cast %32 : vector<1x8xf32> to vector<1x8x1xf32>
    %34 = vector.broadcast %33 : vector<1x8x1xf32> to vector<1x8x8xf32>
    %35 = arith.subf %31, %34 : vector<1x8x8xf32>
    %36 = math.exp %35 : vector<1x8x8xf32>
    %cst_26 = arith.constant dense<0.000000e+00> : vector<1x8xf32>
    %37 = vector.multi_reduction <add>, %36, %cst_26 [2] : vector<1x8x8xf32> to vector<1x8xf32>
    %38 = vector.shape_cast %37 : vector<1x8xf32> to vector<1x8x1xf32>
    %39 = tpu.reciprocal %38 : vector<1x8x1xf32> -> vector<1x8x1xf32>
    %40 = vector.broadcast %39 : vector<1x8x1xf32> to vector<1x8x8xf32>
    %41 = arith.mulf %36, %40 : vector<1x8x8xf32>
    "tpu.trace_start"() <{level = 10 : i32, message = "bqk,bkd->bqd"}> : () -> ()
    %cst_27 = arith.constant dense<0.000000e+00> : vector<1x8x8xf32>
    %42 = tpu.matmul %41, %28, %cst_27 {dimension_numbers = #tpu.dot_dimension_numbers<[2], [1], [1], [2], [0, 0, 0, 1, 1, 2], [0], [0]>} : vector<1x8x8xf32>, vector<1x8x8xf32>, vector<1x8x8xf32> -> vector<1x8x8xf32>
    "tpu.trace_stop"() : () -> ()
    %43 = vector.extract_strided_slice %23 {offsets = [0, 0, 8], sizes = [1, 8, 8], strides = [1, 1, 1]} : vector<1x8x128xf32> to vector<1x8x8xf32>
    %44 = vector.extract_strided_slice %24 {offsets = [0, 0, 8], sizes = [1, 8, 8], strides = [1, 1, 1]} : vector<1x8x128xf32> to vector<1x8x8xf32>
    %45 = vector.extract_strided_slice %25 {offsets = [0, 0, 8], sizes = [1, 8, 8], strides = [1, 1, 1]} : vector<1x8x128xf32> to vector<1x8x8xf32>
    "tpu.trace_start"() <{level = 10 : i32, message = "bqd,bkd->bqk"}> : () -> ()
    %cst_28 = arith.constant dense<0.000000e+00> : vector<1x8x8xf32>
    %46 = tpu.matmul %43, %44, %cst_28 {dimension_numbers = #tpu.dot_dimension_numbers<[2], [2], [1], [1], [0, 0, 0, 1, 1, 1], [0], [0]>} : vector<1x8x8xf32>, vector<1x8x8xf32>, vector<1x8x8xf32> -> vector<1x8x8xf32>
    "tpu.trace_stop"() : () -> ()
    %cst_29 = arith.constant 0.353553385 : f32
    %47 = vector.broadcast %cst_29 : f32 to vector<1x8x8xf32>
    %48 = arith.mulf %46, %47 : vector<1x8x8xf32>
    %cst_30 = arith.constant dense<0xFF800000> : vector<1x8xf32>
    %49 = vector.multi_reduction <maximumf>, %48, %cst_30 [2] : vector<1x8x8xf32> to vector<1x8xf32>
    %50 = vector.shape_cast %49 : vector<1x8xf32> to vector<1x8x1xf32>
    %51 = vector.broadcast %50 : vector<1x8x1xf32> to vector<1x8x8xf32>
    %52 = arith.subf %48, %51 : vector<1x8x8xf32>
    %53 = math.exp %52 : vector<1x8x8xf32>
    %cst_31 = arith.constant dense<0.000000e+00> : vector<1x8xf32>
    %54 = vector.multi_reduction <add>, %53, %cst_31 [2] : vector<1x8x8xf32> to vector<1x8xf32>
    %55 = vector.shape_cast %54 : vector<1x8xf32> to vector<1x8x1xf32>
    %56 = tpu.reciprocal %55 : vector<1x8x1xf32> -> vector<1x8x1xf32>
    %57 = vector.broadcast %56 : vector<1x8x1xf32> to vector<1x8x8xf32>
    %58 = arith.mulf %53, %57 : vector<1x8x8xf32>
    "tpu.trace_start"() <{level = 10 : i32, message = "bqk,bkd->bqd"}> : () -> ()
    %cst_32 = arith.constant dense<0.000000e+00> : vector<1x8x8xf32>
    %59 = tpu.matmul %58, %45, %cst_32 {dimension_numbers = #tpu.dot_dimension_numbers<[2], [1], [1], [2], [0, 0, 0, 1, 1, 2], [0], [0]>} : vector<1x8x8xf32>, vector<1x8x8xf32>, vector<1x8x8xf32> -> vector<1x8x8xf32>
    "tpu.trace_stop"() : () -> ()
    %60 = vector.extract_strided_slice %23 {offsets = [0, 0, 16], sizes = [1, 8, 8], strides = [1, 1, 1]} : vector<1x8x128xf32> to vector<1x8x8xf32>
    %61 = vector.extract_strided_slice %24 {offsets = [0, 0, 16], sizes = [1, 8, 8], strides = [1, 1, 1]} : vector<1x8x128xf32> to vector<1x8x8xf32>
    %62 = vector.extract_strided_slice %25 {offsets = [0, 0, 16], sizes = [1, 8, 8], strides = [1, 1, 1]} : vector<1x8x128xf32> to vector<1x8x8xf32>
    "tpu.trace_start"() <{level = 10 : i32, message = "bqd,bkd->bqk"}> : () -> ()
    %cst_33 = arith.constant dense<0.000000e+00> : vector<1x8x8xf32>
    %63 = tpu.matmul %60, %61, %cst_33 {dimension_numbers = #tpu.dot_dimension_numbers<[2], [2], [1], [1], [0, 0, 0, 1, 1, 1], [0], [0]>} : vector<1x8x8xf32>, vector<1x8x8xf32>, vector<1x8x8xf32> -> vector<1x8x8xf32>
    "tpu.trace_stop"() : () -> ()
    %cst_34 = arith.constant 0.353553385 : f32
    %64 = vector.broadcast %cst_34 : f32 to vector<1x8x8xf32>
    %65 = arith.mulf %63, %64 : vector<1x8x8xf32>
    %cst_35 = arith.constant dense<0xFF800000> : vector<1x8xf32>
    %66 = vector.multi_reduction <maximumf>, %65, %cst_35 [2] : vector<1x8x8xf32> to vector<1x8xf32>
    %67 = vector.shape_cast %66 : vector<1x8xf32> to vector<1x8x1xf32>
    %68 = vector.broadcast %67 : vector<1x8x1xf32> to vector<1x8x8xf32>
    %69 = arith.subf %65, %68 : vector<1x8x8xf32>
    %70 = math.exp %69 : vector<1x8x8xf32>
    %cst_36 = arith.constant dense<0.000000e+00> : vector<1x8xf32>
    %71 = vector.multi_reduction <add>, %70, %cst_36 [2] : vector<1x8x8xf32> to vector<1x8xf32>
    %72 = vector.shape_cast %71 : vector<1x8xf32> to vector<1x8x1xf32>
    %73 = tpu.reciprocal %72 : vector<1x8x1xf32> -> vector<1x8x1xf32>
    %74 = vector.broadcast %73 : vector<1x8x1xf32> to vector<1x8x8xf32>
    %75 = arith.mulf %70, %74 : vector<1x8x8xf32>
    "tpu.trace_start"() <{level = 10 : i32, message = "bqk,bkd->bqd"}> : () -> ()
    %cst_37 = arith.constant dense<0.000000e+00> : vector<1x8x8xf32>
    %76 = tpu.matmul %75, %62, %cst_37 {dimension_numbers = #tpu.dot_dimension_numbers<[2], [1], [1], [2], [0, 0, 0, 1, 1, 2], [0], [0]>} : vector<1x8x8xf32>, vector<1x8x8xf32>, vector<1x8x8xf32> -> vector<1x8x8xf32>
    "tpu.trace_stop"() : () -> ()
    %77 = vector.extract_strided_slice %23 {offsets = [0, 0, 24], sizes = [1, 8, 8], strides = [1, 1, 1]} : vector<1x8x128xf32> to vector<1x8x8xf32>
    %78 = vector.extract_strided_slice %24 {offsets = [0, 0, 24], sizes = [1, 8, 8], strides = [1, 1, 1]} : vector<1x8x128xf32> to vector<1x8x8xf32>
    %79 = vector.extract_strided_slice %25 {offsets = [0, 0, 24], sizes = [1, 8, 8], strides = [1, 1, 1]} : vector<1x8x128xf32> to vector<1x8x8xf32>
    "tpu.trace_start"() <{level = 10 : i32, message = "bqd,bkd->bqk"}> : () -> ()
    %cst_38 = arith.constant dense<0.000000e+00> : vector<1x8x8xf32>
    %80 = tpu.matmul %77, %78, %cst_38 {dimension_numbers = #tpu.dot_dimension_numbers<[2], [2], [1], [1], [0, 0, 0, 1, 1, 1], [0], [0]>} : vector<1x8x8xf32>, vector<1x8x8xf32>, vector<1x8x8xf32> -> vector<1x8x8xf32>
    "tpu.trace_stop"() : () -> ()
    %cst_39 = arith.constant 0.353553385 : f32
    %81 = vector.broadcast %cst_39 : f32 to vector<1x8x8xf32>
    %82 = arith.mulf %80, %81 : vector<1x8x8xf32>
    %cst_40 = arith.constant dense<0xFF800000> : vector<1x8xf32>
    %83 = vector.multi_reduction <maximumf>, %82, %cst_40 [2] : vector<1x8x8xf32> to vector<1x8xf32>
    %84 = vector.shape_cast %83 : vector<1x8xf32> to vector<1x8x1xf32>
    %85 = vector.broadcast %84 : vector<1x8x1xf32> to vector<1x8x8xf32>
    %86 = arith.subf %82, %85 : vector<1x8x8xf32>
    %87 = math.exp %86 : vector<1x8x8xf32>
    %cst_41 = arith.constant dense<0.000000e+00> : vector<1x8xf32>
    %88 = vector.multi_reduction <add>, %87, %cst_41 [2] : vector<1x8x8xf32> to vector<1x8xf32>
    %89 = vector.shape_cast %88 : vector<1x8xf32> to vector<1x8x1xf32>
    %90 = tpu.reciprocal %89 : vector<1x8x1xf32> -> vector<1x8x1xf32>
    %91 = vector.broadcast %90 : vector<1x8x1xf32> to vector<1x8x8xf32>
    %92 = arith.mulf %87, %91 : vector<1x8x8xf32>
    "tpu.trace_start"() <{level = 10 : i32, message = "bqk,bkd->bqd"}> : () -> ()
    %cst_42 = arith.constant dense<0.000000e+00> : vector<1x8x8xf32>
    %93 = tpu.matmul %92, %79, %cst_42 {dimension_numbers = #tpu.dot_dimension_numbers<[2], [1], [1], [2], [0, 0, 0, 1, 1, 2], [0], [0]>} : vector<1x8x8xf32>, vector<1x8x8xf32>, vector<1x8x8xf32> -> vector<1x8x8xf32>
    %cst_43 = arith.constant 0.000000e+00 : f32
    "tpu.trace_stop"() : () -> ()
    %94 = vector.broadcast %cst_43 : f32 to vector<1x8x96xf32>
    %95 = tpu.concatenate %42, %59, %76, %93, %94 in 2 : vector<1x8x8xf32>, vector<1x8x8xf32>, vector<1x8x8xf32>, vector<1x8x8xf32>, vector<1x8x96xf32> -> vector<1x8x128xf32>
    %c0_44 = arith.constant 0 : index
    %c0_45 = arith.constant 0 : index
    %c0_46 = arith.constant 0 : index
    %96 = vector.load %arg10[%c0_44, %c0_45, %c0_46] : memref<1x8x128xf32, #tpu.memory_space<vmem>>, vector<1x8x128xf32>
    tpu.vector_store %arg10[%c0_44, %c0_45, %c0_46], %95 {strides = array<i32>} : memref<1x8x128xf32, #tpu.memory_space<vmem>>, vector<1x8x128xf32>,
    return
  }
  func.func @transform_0(%arg0: i32) -> (i32, i32, i32) {
    %c0_i32 = arith.constant 0 : i32
    %c0_i32_0 = arith.constant 0 : i32
    %c0_i32_1 = arith.constant 0 : i32
    return %arg0, %c0_i32, %c0_i32_0 : i32, i32, i32
  }
  func.func @transform_1(%arg0: i32) -> (i32, i32, i32) {
    %c0_i32 = arith.constant 0 : i32
    %c0_i32_0 = arith.constant 0 : i32
    %c0_i32_1 = arith.constant 0 : i32
    return %arg0, %c0_i32, %c0_i32_0 : i32, i32, i32
  }
  func.func @transform_2(%arg0: i32) -> (i32, i32, i32) {
    %c0_i32 = arith.constant 0 : i32
    %c0_i32_0 = arith.constant 0 : i32
    %c0_i32_1 = arith.constant 0 : i32
    return %arg0, %c0_i32, %c0_i32_0 : i32, i32, i32
  }
  func.func @transform_3(%arg0: i32) -> (i32, i32) {
    %c0_i32 = arith.constant 0 : i32
    %c0_i32_0 = arith.constant 0 : i32
    %c0_i32_1 = arith.constant 0 : i32
    return %c0_i32, %c0_i32_0 : i32, i32
  }
  func.func @transform_4(%arg0: i32) -> (i32, i32) {
    %c0_i32 = arith.constant 0 : i32
    %c0_i32_0 = arith.constant 0 : i32
    %c0_i32_1 = arith.constant 0 : i32
    return %c0_i32, %c0_i32_0 : i32, i32
  }
  func.func @transform_5(%arg0: i32) -> (i32, i32) {
    %c0_i32 = arith.constant 0 : i32
    %c0_i32_0 = arith.constant 0 : i32
    %c0_i32_1 = arith.constant 0 : i32
    return %c0_i32, %c0_i32_0 : i32, i32
  }
  func.func @transform_6(%arg0: i32) -> (i32, i32) {
    %c0_i32 = arith.constant 0 : i32
    %c0_i32_0 = arith.constant 0 : i32
    %c0_i32_1 = arith.constant 0 : i32
    return %c0_i32, %c0_i32_0 : i32, i32
  }
  func.func @transform_7(%arg0: i32) -> (i32, i32) {
    %c0_i32 = arith.constant 0 : i32
    %c0_i32_0 = arith.constant 0 : i32
    %c0_i32_1 = arith.constant 0 : i32
    return %c0_i32, %c0_i32_0 : i32, i32
  }
  func.func @transform_8(%arg0: i32) -> (i32, i32) {
    %c0_i32 = arith.constant 0 : i32
    %c0_i32_0 = arith.constant 0 : i32
    %c0_i32_1 = arith.constant 0 : i32
    return %c0_i32, %c0_i32_0 : i32, i32
  }
  func.func @transform_9(%arg0: i32) -> (i32, i32, i32) {
    %c0_i32 = arith.constant 0 : i32
    %c0_i32_0 = arith.constant 0 : i32
    %c0_i32_1 = arith.constant 0 : i32
    return %arg0, %c0_i32, %c0_i32_0 : i32, i32, i32
  }
}

module attributes {stable_mosaic.version = 11 : i64} {
  func.func @_mha_kernel(%arg0: i32, %arg1: memref<1x8x128xf32, #tpu.memory_space<vmem>>, %arg2: memref<1x8x128xf32, #tpu.memory_space<vmem>>, %arg3: memref<1x8x128xf32, #tpu.memory_space<vmem>>, %arg4: memref<128x128xf32, #tpu.memory_space<vmem>>, %arg5: memref<1x128xf32, #tpu.memory_space<vmem>>, %arg6: memref<128x128xf32, #tpu.memory_space<vmem>>, %arg7: memref<1x128xf32, #tpu.memory_space<vmem>>, %arg8: memref<128x128xf32, #tpu.memory_space<vmem>>, %arg9: memref<1x128xf32, #tpu.memory_space<vmem>>, %arg10: memref<1x8x128xf32, #tpu.memory_space<vmem>>) attributes {dimension_semantics = [#tpu.dimension_semantics<parallel>], iteration_bounds = array<i64: 2>, scalar_prefetch = 0 : i64, scratch_operands = 0 : i64, tpu.core_type = #tpu.core_type<tc>, window_params = [{transform_indices = @transform_0, window_bounds = array<i64: 1, 8, 128>}, {transform_indices = @transform_1, window_bounds = array<i64: 1, 8, 128>}, {transform_indices = @transform_2, window_bounds = array<i64: 1, 8, 128>}, {pipeline_mode = #tpu.pipeline_mode<synchronous>, transform_indices = @transform_3, window_bounds = array<i64: 128, 128>}, {pipeline_mode = #tpu.pipeline_mode<synchronous>, transform_indices = @transform_4, window_bounds = array<i64: 1, 128>}, {pipeline_mode = #tpu.pipeline_mode<synchronous>, transform_indices = @transform_5, window_bounds = array<i64: 128, 128>}, {pipeline_mode = #tpu.pipeline_mode<synchronous>, transform_indices = @transform_6, window_bounds = array<i64: 1, 128>}, {pipeline_mode = #tpu.pipeline_mode<synchronous>, transform_indices = @transform_7, window_bounds = array<i64: 128, 128>}, {pipeline_mode = #tpu.pipeline_mode<synchronous>, transform_indices = @transform_8, window_bounds = array<i64: 1, 128>}, {transform_indices = @transform_9, window_bounds = array<i64: 1, 8, 128>}]} {
    %c0 = arith.constant 0 : index
    %c0_0 = arith.constant 0 : index
    %c0_1 = arith.constant 0 : index
    %0 = vector.load %arg1[%c0, %c0_0, %c0_1] : memref<1x8x128xf32, #tpu.memory_space<vmem>>, vector<1x8x128xf32>
    %1 = vector.shape_cast %0 : vector<1x8x128xf32> to vector<8x128xf32>
    %c0_2 = arith.constant 0 : index
    %c0_3 = arith.constant 0 : index
    %c0_4 = arith.constant 0 : index
    %2 = vector.load %arg2[%c0_2, %c0_3, %c0_4] : memref<1x8x128xf32, #tpu.memory_space<vmem>>, vector<1x8x128xf32>
    %3 = vector.shape_cast %2 : vector<1x8x128xf32> to vector<8x128xf32>
    %c0_5 = arith.constant 0 : index
    %c0_6 = arith.constant 0 : index
    %c0_7 = arith.constant 0 : index
    %4 = vector.load %arg3[%c0_5, %c0_6, %c0_7] : memref<1x8x128xf32, #tpu.memory_space<vmem>>, vector<1x8x128xf32>
    %5 = vector.shape_cast %4 : vector<1x8x128xf32> to vector<8x128xf32>
    %c0_8 = arith.constant 0 : index
    %c0_9 = arith.constant 0 : index
    %6 = vector.load %arg4[%c0_8, %c0_9] : memref<128x128xf32, #tpu.memory_space<vmem>>, vector<128x128xf32>
    %cst = arith.constant dense<0.000000e+00> : vector<8x128xf32>
    %7 = tpu.matmul %1, %6, %cst {dimension_numbers = #tpu.dot_dimension_numbers<[1], [0], [0], [1], [0, 0, 1, 1], [], []>} : vector<8x128xf32>, vector<128x128xf32>, vector<8x128xf32> -> vector<8x128xf32>
    %c0_10 = arith.constant 0 : index
    %c0_11 = arith.constant 0 : index
    %8 = vector.load %arg5[%c0_10, %c0_11] : memref<1x128xf32, #tpu.memory_space<vmem>>, vector<1x128xf32>
    %9 = vector.broadcast %8 : vector<1x128xf32> to vector<8x128xf32>
    %10 = arith.addf %7, %9 : vector<8x128xf32>
    %c0_12 = arith.constant 0 : index
    %c0_13 = arith.constant 0 : index
    %11 = vector.load %arg6[%c0_12, %c0_13] : memref<128x128xf32, #tpu.memory_space<vmem>>, vector<128x128xf32>
    %cst_14 = arith.constant dense<0.000000e+00> : vector<8x128xf32>
    %12 = tpu.matmul %3, %11, %cst_14 {dimension_numbers = #tpu.dot_dimension_numbers<[1], [0], [0], [1], [0, 0, 1, 1], [], []>} : vector<8x128xf32>, vector<128x128xf32>, vector<8x128xf32> -> vector<8x128xf32>
    %c0_15 = arith.constant 0 : index
    %c0_16 = arith.constant 0 : index
    %13 = vector.load %arg7[%c0_15, %c0_16] : memref<1x128xf32, #tpu.memory_space<vmem>>, vector<1x128xf32>
    %14 = vector.broadcast %13 : vector<1x128xf32> to vector<8x128xf32>
    %15 = arith.addf %12, %14 : vector<8x128xf32>
    %c0_17 = arith.constant 0 : index
    %c0_18 = arith.constant 0 : index
    %16 = vector.load %arg8[%c0_17, %c0_18] : memref<128x128xf32, #tpu.memory_space<vmem>>, vector<128x128xf32>
    %cst_19 = arith.constant dense<0.000000e+00> : vector<8x128xf32>
    %17 = tpu.matmul %5, %16, %cst_19 {dimension_numbers = #tpu.dot_dimension_numbers<[1], [0], [0], [1], [0, 0, 1, 1], [], []>} : vector<8x128xf32>, vector<128x128xf32>, vector<8x128xf32> -> vector<8x128xf32>
    %c0_20 = arith.constant 0 : index
    %c0_21 = arith.constant 0 : index
    %18 = vector.load %arg9[%c0_20, %c0_21] : memref<1x128xf32, #tpu.memory_space<vmem>>, vector<1x128xf32>
    %19 = vector.broadcast %18 : vector<1x128xf32> to vector<8x128xf32>
    %20 = arith.addf %17, %19 : vector<8x128xf32>
    %cst_22 = arith.constant 0.000000e+00 : f32
    %21 = vector.broadcast %cst_22 : f32 to vector<8x128xf32>
    %22 = arith.maximumf %20, %21 : vector<8x128xf32>
    %23 = vector.shape_cast %10 : vector<8x128xf32> to vector<1x8x128xf32>
    %24 = vector.shape_cast %15 : vector<8x128xf32> to vector<1x8x128xf32>
    %25 = vector.shape_cast %22 : vector<8x128xf32> to vector<1x8x128xf32>
    %26 = vector.extract_strided_slice %23 {offsets = [0, 0, 0], sizes = [1, 8, 8], strides = [1, 1, 1]} : vector<1x8x128xf32> to vector<1x8x8xf32>
    %27 = vector.extract_strided_slice %24 {offsets = [0, 0, 0], sizes = [1, 8, 8], strides = [1, 1, 1]} : vector<1x8x128xf32> to vector<1x8x8xf32>
    %28 = vector.extract_strided_slice %25 {offsets = [0, 0, 0], sizes = [1, 8, 8], strides = [1, 1, 1]} : vector<1x8x128xf32> to vector<1x8x8xf32>
    "tpu.trace_start"() <{level = 10 : i32, message = "bqd,bkd->bqk"}> : () -> ()
    %cst_23 = arith.constant dense<0.000000e+00> : vector<1x8x8xf32>
    %29 = tpu.matmul %26, %27, %cst_23 {dimension_numbers = #tpu.dot_dimension_numbers<[2], [2], [1], [1], [0, 0, 0, 1, 1, 1], [0], [0]>} : vector<1x8x8xf32>, vector<1x8x8xf32>, vector<1x8x8xf32> -> vector<1x8x8xf32>
    "tpu.trace_stop"() : () -> ()
    %cst_24 = arith.constant 0.353553385 : f32
    %30 = vector.broadcast %cst_24 : f32 to vector<1x8x8xf32>
    %31 = arith.mulf %29, %30 : vector<1x8x8xf32>
    %cst_25 = arith.constant dense<0xFF800000> : vector<1x8xf32>
    %32 = vector.multi_reduction <maximumf>, %31, %cst_25 [2] : vector<1x8x8xf32> to vector<1x8xf32>
    %33 = vector.shape_cast %32 : vector<1x8xf32> to vector<1x8x1xf32>
    %34 = vector.broadcast %33 : vector<1x8x1xf32> to vector<1x8x8xf32>
    %35 = arith.subf %31, %34 : vector<1x8x8xf32>
    %36 = math.exp %35 : vector<1x8x8xf32>
    %cst_26 = arith.constant dense<0.000000e+00> : vector<1x8xf32>
    %37 = vector.multi_reduction <add>, %36, %cst_26 [2] : vector<1x8x8xf32> to vector<1x8xf32>
    %38 = vector.shape_cast %37 : vector<1x8xf32> to vector<1x8x1xf32>
    %39 = tpu.reciprocal %38 : vector<1x8x1xf32> -> vector<1x8x1xf32>
    %40 = vector.broadcast %39 : vector<1x8x1xf32> to vector<1x8x8xf32>
    %41 = arith.mulf %36, %40 : vector<1x8x8xf32>
    "tpu.trace_start"() <{level = 10 : i32, message = "bqk,bkd->bqd"}> : () -> ()
    %cst_27 = arith.constant dense<0.000000e+00> : vector<1x8x8xf32>
    %42 = tpu.matmul %41, %28, %cst_27 {dimension_numbers = #tpu.dot_dimension_numbers<[2], [1], [1], [2], [0, 0, 0, 1, 1, 2], [0], [0]>} : vector<1x8x8xf32>, vector<1x8x8xf32>, vector<1x8x8xf32> -> vector<1x8x8xf32>
    "tpu.trace_stop"() : () -> ()
    %43 = vector.extract_strided_slice %23 {offsets = [0, 0, 8], sizes = [1, 8, 8], strides = [1, 1, 1]} : vector<1x8x128xf32> to vector<1x8x8xf32>
    %44 = vector.extract_strided_slice %24 {offsets = [0, 0, 8], sizes = [1, 8, 8], strides = [1, 1, 1]} : vector<1x8x128xf32> to vector<1x8x8xf32>
    %45 = vector.extract_strided_slice %25 {offsets = [0, 0, 8], sizes = [1, 8, 8], strides = [1, 1, 1]} : vector<1x8x128xf32> to vector<1x8x8xf32>
    "tpu.trace_start"() <{level = 10 : i32, message = "bqd,bkd->bqk"}> : () -> ()
    %cst_28 = arith.constant dense<0.000000e+00> : vector<1x8x8xf32>
    %46 = tpu.matmul %43, %44, %cst_28 {dimension_numbers = #tpu.dot_dimension_numbers<[2], [2], [1], [1], [0, 0, 0, 1, 1, 1], [0], [0]>} : vector<1x8x8xf32>, vector<1x8x8xf32>, vector<1x8x8xf32> -> vector<1x8x8xf32>
    "tpu.trace_stop"() : () -> ()
    %cst_29 = arith.constant 0.353553385 : f32
    %47 = vector.broadcast %cst_29 : f32 to vector<1x8x8xf32>
    %48 = arith.mulf %46, %47 : vector<1x8x8xf32>
    %cst_30 = arith.constant dense<0xFF800000> : vector<1x8xf32>
    %49 = vector.multi_reduction <maximumf>, %48, %cst_30 [2] : vector<1x8x8xf32> to vector<1x8xf32>
    %50 = vector.shape_cast %49 : vector<1x8xf32> to vector<1x8x1xf32>
    %51 = vector.broadcast %50 : vector<1x8x1xf32> to vector<1x8x8xf32>
    %52 = arith.subf %48, %51 : vector<1x8x8xf32>
    %53 = math.exp %52 : vector<1x8x8xf32>
    %cst_31 = arith.constant dense<0.000000e+00> : vector<1x8xf32>
    %54 = vector.multi_reduction <add>, %53, %cst_31 [2] : vector<1x8x8xf32> to vector<1x8xf32>
    %55 = vector.shape_cast %54 : vector<1x8xf32> to vector<1x8x1xf32>
    %56 = tpu.reciprocal %55 : vector<1x8x1xf32> -> vector<1x8x1xf32>
    %57 = vector.broadcast %56 : vector<1x8x1xf32> to vector<1x8x8xf32>
    %58 = arith.mulf %53, %57 : vector<1x8x8xf32>
    "tpu.trace_start"() <{level = 10 : i32, message = "bqk,bkd->bqd"}> : () -> ()
    %cst_32 = arith.constant dense<0.000000e+00> : vector<1x8x8xf32>
    %59 = tpu.matmul %58, %45, %cst_32 {dimension_numbers = #tpu.dot_dimension_numbers<[2], [1], [1], [2], [0, 0, 0, 1, 1, 2], [0], [0]>} : vector<1x8x8xf32>, vector<1x8x8xf32>, vector<1x8x8xf32> -> vector<1x8x8xf32>
    "tpu.trace_stop"() : () -> ()
    %60 = vector.extract_strided_slice %23 {offsets = [0, 0, 16], sizes = [1, 8, 8], strides = [1, 1, 1]} : vector<1x8x128xf32> to vector<1x8x8xf32>
    %61 = vector.extract_strided_slice %24 {offsets = [0, 0, 16], sizes = [1, 8, 8], strides = [1, 1, 1]} : vector<1x8x128xf32> to vector<1x8x8xf32>
    %62 = vector.extract_strided_slice %25 {offsets = [0, 0, 16], sizes = [1, 8, 8], strides = [1, 1, 1]} : vector<1x8x128xf32> to vector<1x8x8xf32>
    "tpu.trace_start"() <{level = 10 : i32, message = "bqd,bkd->bqk"}> : () -> ()
    %cst_33 = arith.constant dense<0.000000e+00> : vector<1x8x8xf32>
    %63 = tpu.matmul %60, %61, %cst_33 {dimension_numbers = #tpu.dot_dimension_numbers<[2], [2], [1], [1], [0, 0, 0, 1, 1, 1], [0], [0]>} : vector<1x8x8xf32>, vector<1x8x8xf32>, vector<1x8x8xf32> -> vector<1x8x8xf32>
    "tpu.trace_stop"() : () -> ()
    %cst_34 = arith.constant 0.353553385 : f32
    %64 = vector.broadcast %cst_34 : f32 to vector<1x8x8xf32>
    %65 = arith.mulf %63, %64 : vector<1x8x8xf32>
    %cst_35 = arith.constant dense<0xFF800000> : vector<1x8xf32>
    %66 = vector.multi_reduction <maximumf>, %65, %cst_35 [2] : vector<1x8x8xf32> to vector<1x8xf32>
    %67 = vector.shape_cast %66 : vector<1x8xf32> to vector<1x8x1xf32>
    %68 = vector.broadcast %67 : vector<1x8x1xf32> to vector<1x8x8xf32>
    %69 = arith.subf %65, %68 : vector<1x8x8xf32>
    %70 = math.exp %69 : vector<1x8x8xf32>
    %cst_36 = arith.constant dense<0.000000e+00> : vector<1x8xf32>
    %71 = vector.multi_reduction <add>, %70, %cst_36 [2] : vector<1x8x8xf32> to vector<1x8xf32>
    %72 = vector.shape_cast %71 : vector<1x8xf32> to vector<1x8x1xf32>
    %73 = tpu.reciprocal %72 : vector<1x8x1xf32> -> vector<1x8x1xf32>
    %74 = vector.broadcast %73 : vector<1x8x1xf32> to vector<1x8x8xf32>
    %75 = arith.mulf %70, %74 : vector<1x8x8xf32>
    "tpu.trace_start"() <{level = 10 : i32, message = "bqk,bkd->bqd"}> : () -> ()
    %cst_37 = arith.constant dense<0.000000e+00> : vector<1x8x8xf32>
    %76 = tpu.matmul %75, %62, %cst_37 {dimension_numbers = #tpu.dot_dimension_numbers<[2], [1], [1], [2], [0, 0, 0, 1, 1, 2], [0], [0]>} : vector<1x8x8xf32>, vector<1x8x8xf32>, vector<1x8x8xf32> -> vector<1x8x8xf32>
    "tpu.trace_stop"() : () -> ()
    %77 = vector.extract_strided_slice %23 {offsets = [0, 0, 24], sizes = [1, 8, 8], strides = [1, 1, 1]} : vector<1x8x128xf32> to vector<1x8x8xf32>
    %78 = vector.extract_strided_slice %24 {offsets = [0, 0, 24], sizes = [1, 8, 8], strides = [1, 1, 1]} : vector<1x8x128xf32> to vector<1x8x8xf32>
    %79 = vector.extract_strided_slice %25 {offsets = [0, 0, 24], sizes = [1, 8, 8], strides = [1, 1, 1]} : vector<1x8x128xf32> to vector<1x8x8xf32>
    "tpu.trace_start"() <{level = 10 : i32, message = "bqd,bkd->bqk"}> : () -> ()
    %cst_38 = arith.constant dense<0.000000e+00> : vector<1x8x8xf32>
    %80 = tpu.matmul %77, %78, %cst_38 {dimension_numbers = #tpu.dot_dimension_numbers<[2], [2], [1], [1], [0, 0, 0, 1, 1, 1], [0], [0]>} : vector<1x8x8xf32>, vector<1x8x8xf32>, vector<1x8x8xf32> -> vector<1x8x8xf32>
    "tpu.trace_stop"() : () -> ()
    %cst_39 = arith.constant 0.353553385 : f32
    %81 = vector.broadcast %cst_39 : f32 to vector<1x8x8xf32>
    %82 = arith.mulf %80, %81 : vector<1x8x8xf32>
    %cst_40 = arith.constant dense<0xFF800000> : vector<1x8xf32>
    %83 = vector.multi_reduction <maximumf>, %82, %cst_40 [2] : vector<1x8x8xf32> to vector<1x8xf32>
    %84 = vector.shape_cast %83 : vector<1x8xf32> to vector<1x8x1xf32>
    %85 = vector.broadcast %84 : vector<1x8x1xf32> to vector<1x8x8xf32>
    %86 = arith.subf %82, %85 : vector<1x8x8xf32>
    %87 = math.exp %86 : vector<1x8x8xf32>
    %cst_41 = arith.constant dense<0.000000e+00> : vector<1x8xf32>
    %88 = vector.multi_reduction <add>, %87, %cst_41 [2] : vector<1x8x8xf32> to vector<1x8xf32>
    %89 = vector.shape_cast %88 : vector<1x8xf32> to vector<1x8x1xf32>
    %90 = tpu.reciprocal %89 : vector<1x8x1xf32> -> vector<1x8x1xf32>
    %91 = vector.broadcast %90 : vector<1x8x1xf32> to vector<1x8x8xf32>
    %92 = arith.mulf %87, %91 : vector<1x8x8xf32>
    "tpu.trace_start"() <{level = 10 : i32, message = "bqk,bkd->bqd"}> : () -> ()
    %cst_42 = arith.constant dense<0.000000e+00> : vector<1x8x8xf32>
    %93 = tpu.matmul %92, %79, %cst_42 {dimension_numbers = #tpu.dot_dimension_numbers<[2], [1], [1], [2], [0, 0, 0, 1, 1, 2], [0], [0]>} : vector<1x8x8xf32>, vector<1x8x8xf32>, vector<1x8x8xf32> -> vector<1x8x8xf32>
    %cst_43 = arith.constant 0.000000e+00 : f32
    "tpu.trace_stop"() : () -> ()
    %94 = vector.broadcast %cst_43 : f32 to vector<1x8x96xf32>
    %95 = tpu.concatenate %42, %59, %76, %93, %94 in 2 : vector<1x8x8xf32>, vector<1x8x8xf32>, vector<1x8x8xf32>, vector<1x8x8xf32>, vector<1x8x96xf32> -> vector<1x8x128xf32>
    %c0_44 = arith.constant 0 : index
    %c0_45 = arith.constant 0 : index
    %c0_46 = arith.constant 0 : index
    %96 = vector.load %arg10[%c0_44, %c0_45, %c0_46] : memref<1x8x128xf32, #tpu.memory_space<vmem>>, vector<1x8x128xf32>
    tpu.vector_store %arg10[%c0_44, %c0_45, %c0_46], %95 {strides = array<i32>} : memref<1x8x128xf32, #tpu.memory_space<vmem>>, vector<1x8x128xf32>,
    return
  }
  func.func @transform_0(%arg0: i32) -> (i32, i32, i32) {
    %c0_i32 = arith.constant 0 : i32
    %c0_i32_0 = arith.constant 0 : i32
    %c0_i32_1 = arith.constant 0 : i32
    return %arg0, %c0_i32, %c0_i32_0 : i32, i32, i32
  }
  func.func @transform_1(%arg0: i32) -> (i32, i32, i32) {
    %c0_i32 = arith.constant 0 : i32
    %c0_i32_0 = arith.constant 0 : i32
    %c0_i32_1 = arith.constant 0 : i32
    return %arg0, %c0_i32, %c0_i32_0 : i32, i32, i32
  }
  func.func @transform_2(%arg0: i32) -> (i32, i32, i32) {
    %c0_i32 = arith.constant 0 : i32
    %c0_i32_0 = arith.constant 0 : i32
    %c0_i32_1 = arith.constant 0 : i32
    return %arg0, %c0_i32, %c0_i32_0 : i32, i32, i32
  }
  func.func @transform_3(%arg0: i32) -> (i32, i32) {
    %c0_i32 = arith.constant 0 : i32
    %c0_i32_0 = arith.constant 0 : i32
    %c0_i32_1 = arith.constant 0 : i32
    return %c0_i32, %c0_i32_0 : i32, i32
  }
  func.func @transform_4(%arg0: i32) -> (i32, i32) {
    %c0_i32 = arith.constant 0 : i32
    %c0_i32_0 = arith.constant 0 : i32
    %c0_i32_1 = arith.constant 0 : i32
    return %c0_i32, %c0_i32_0 : i32, i32
  }
  func.func @transform_5(%arg0: i32) -> (i32, i32) {
    %c0_i32 = arith.constant 0 : i32
    %c0_i32_0 = arith.constant 0 : i32
    %c0_i32_1 = arith.constant 0 : i32
    return %c0_i32, %c0_i32_0 : i32, i32
  }
  func.func @transform_6(%arg0: i32) -> (i32, i32) {
    %c0_i32 = arith.constant 0 : i32
    %c0_i32_0 = arith.constant 0 : i32
    %c0_i32_1 = arith.constant 0 : i32
    return %c0_i32, %c0_i32_0 : i32, i32
  }
  func.func @transform_7(%arg0: i32) -> (i32, i32) {
    %c0_i32 = arith.constant 0 : i32
    %c0_i32_0 = arith.constant 0 : i32
    %c0_i32_1 = arith.constant 0 : i32
    return %c0_i32, %c0_i32_0 : i32, i32
  }
  func.func @transform_8(%arg0: i32) -> (i32, i32) {
    %c0_i32 = arith.constant 0 : i32
    %c0_i32_0 = arith.constant 0 : i32
    %c0_i32_1 = arith.constant 0 : i32
    return %c0_i32, %c0_i32_0 : i32, i32
  }
  func.func @transform_9(%arg0: i32) -> (i32, i32, i32) {
    %c0_i32 = arith.constant 0 : i32
    %c0_i32_0 = arith.constant 0 : i32
    %c0_i32_1 = arith.constant 0 : i32
    return %arg0, %c0_i32, %c0_i32_0 : i32, i32, i32
  }
}

</mosaic_0001>

<llo_original>
// kernel: tpu_custom_call.1
$region0: #{tpu_custom_call.1}
  #allocation0 [shape = 'u32[]', space=smem, size = 0x4, offset = 0x4, fixed_abs, tag = 'smem constant byte address 0x4 - core index']
  #allocation1 [shape = 'u32[144,128]{1,0:T(1,128)}', space=vmem, size = 0x12000, scoped, tag = 'internal scratch']
  %s0 = inlined_call_operand.hbm [shape: f32[2,8,128], index: 0, kind: input, shape index: {}]
  %s1 = inlined_call_operand.hbm [shape: f32[2,8,128], index: 1, kind: input, shape index: {}]
  %s2 = inlined_call_operand.hbm [shape: f32[2,8,128], index: 2, kind: input, shape index: {}]
  %s3 = inlined_call_operand.hbm [shape: f32[128,128], index: 3, kind: input, shape index: {}]
  %s4 = inlined_call_operand.vmem [shape: f32[1,128], index: 4, kind: input, shape index: {}]
  %s5 = inlined_call_operand.hbm [shape: f32[128,128], index: 5, kind: input, shape index: {}]
  %s6 = inlined_call_operand.vmem [shape: f32[1,128], index: 6, kind: input, shape index: {}]
  %s7 = inlined_call_operand.hbm [shape: f32[128,128], index: 7, kind: input, shape index: {}]
  %s8 = inlined_call_operand.vmem [shape: f32[1,128], index: 8, kind: input, shape index: {}]
  %s9 = inlined_call_operand.hbm [shape: f32[2,8,128], index: 9, kind: output, shape index: {}]
  %s10 = sld [smem:[#allocation0]]
  $region93: #{tpu_custom_call.1} parent=0
    _
  %s12 = ssub.s32 1, %s10
  %s13 = scalar_select 0, %s12, %s10
  $region1: #{tpu_custom_call.1} parent=0
    #allocation2 [shape = 'u8[8192]{0}', space=vmem, size = 0x2000, scoped, tag = 'input window, operand 0']
    #allocation3 [shape = 's32[2]{0}', space=sflag, size = 0x8, scoped, tag = 'scoped memory for tpu_custom_call.1']
    #allocation4 [shape = 's32[2]{0}', space=sflag, size = 0x8, scoped, tag = 'scoped memory for tpu_custom_call.1']
    #allocation5 [shape = 'u8[8192]{0}', space=vmem, size = 0x2000, scoped, tag = 'input window, operand 1']
    #allocation6 [shape = 's32[2]{0}', space=sflag, size = 0x8, scoped, tag = 'scoped memory for tpu_custom_call.1']
    #allocation7 [shape = 'u8[8192]{0}', space=vmem, size = 0x2000, scoped, tag = 'input window, operand 2']
    #allocation8 [shape = 'u8[65536]{0}', space=vmem, size = 0x10000, scoped, tag = 'input window, operand 3, single buffered']
    #allocation9 [shape = 's32[1]{0}', space=sflag, size = 0x4, scoped, tag = 'scoped memory for tpu_custom_call.1']
    #allocation10 [shape = 'u8[65536]{0}', space=vmem, size = 0x10000, scoped, tag = 'input window, operand 5, single buffered']
    #allocation11 [shape = 'u8[65536]{0}', space=vmem, size = 0x10000, scoped, tag = 'input window, operand 7, single buffered']
    #allocation12 [shape = 's32[1]{0}', space=sflag, size = 0x4, scoped, tag = 'scoped memory for tpu_custom_call.1']
    #allocation13 [shape = 'u8[8192]{0}', space=vmem, size = 0x2000, scoped, tag = 'output window, operand 0']
    %14 = vsyncpa [#allocation3], 0
    %s15 = scalar_lea.sflag [#allocation3], 1
    %16 = vsyncpa %s15, 0
    %17 = vsyncpa [#allocation6], 0
    %s18 = scalar_lea.sflag [#allocation6], 1
    %19 = vsyncpa %s18, 0
    %20 = vsyncpa [#allocation9], 0
    %21 = vsyncpa [#allocation12], 0
    %22 = vsyncpa [#allocation4], 0
    %s23 = scalar_lea.sflag [#allocation4], 1
    %24 = vsyncpa %s23, 0
    loop: start=0, step=1, limit=4
    $region2: #{tpu_custom_call.1} parent=1 // loop_pre_header
      _
    $region3: #{tpu_custom_call.1} parent=1 // loop_header
      %s26 = sphi 0, %s30
      %p27 = scmp.ge.s32.totalorder %s26, 4
      %s36 = sphi 0, %s38
      %s39 = sphi 0, %s36
      %s40 = sphi 0, %s39
      %s56 = sphi 0, %s40
      %s62 = sphi 0, %s64
      %s65 = sphi 0, %s62
      %s66 = sphi 0, %s65
      %s82 = sphi 0, %s66
      %s88 = sphi 0, %s90
      %s91 = sphi 0, %s88
      %s92 = sphi 0, %s91
      %s108 = sphi 0, %s92
      %s112 = sphi 0, %s112
      %s114 = sphi 0, %s112
      %s115 = sphi 0, %s114
      %s129 = sphi 0, %s115
      %s133 = sphi 0, %s133
      %s135 = sphi 0, %s133
      %s136 = sphi 0, %s135
      %s150 = sphi 0, %s136
      %s154 = sphi 0, %s154
      %s156 = sphi 0, %s154
      %s157 = sphi 0, %s156
      %s171 = sphi 0, %s157
      %s175 = sphi 0, %s175
      %s177 = sphi 0, %s175
      %s178 = sphi 0, %s177
      %s192 = sphi 0, %s178
      %s196 = sphi 0, %s196
      %s198 = sphi 0, %s196
      %s199 = sphi 0, %s198
      %s213 = sphi 0, %s199
      %s217 = sphi 0, %s217
      %s219 = sphi 0, %s217
      %s220 = sphi 0, %s219
      %s234 = sphi 0, %s220
      %s240 = sphi 0, %s242
      %s243 = sphi 0, %s240
      %s244 = sphi 0, %s243
      %s260 = sphi 0, %s244
    $region4: #{tpu_custom_call.1} parent=1 // loop_header_branch
      %29 = sbr.rel (%p27) target = $region8
    $region5: #{tpu_custom_call.1} parent=1 // loop_body
      %s31 = ssub.s32 %s26, 1
      %s32 = ssub.s32 %s26, 2
      %s33 = sadd.s32 %s26, 1
      %s34 = ssub.s32 %s26, %s33
      %p35 = scmp.eq.s32.totalorder %s34, 0
      %s37 = sadd.s32 %s36, 1
      %s38 = scalar_select %p35, %s36, %s37
      %p41 = pneg %p35
      %p42 = scmp.eq.s32.totalorder %s26, 1
      %p43 = por %p41, %p42
      %p44 = scmp.ne.s32.totalorder %s36, %s39
      %p45 = scmp.eq.s32.totalorder %s26, 0
      %p46 = por %p44, %p45
      %p47 = scmp.ne.s32.totalorder %s36, %s39
      %p48 = scmp.eq.s32.totalorder %s31, 1
      %p49 = por %p47, %p48
      %p50 = scmp.ne.s32.totalorder %s39, %s40
      %p51 = scmp.eq.s32.totalorder %s31, 0
      %p52 = por %p50, %p51
      %p53 = scmp.ne.s32.totalorder %s39, %s40
      %p54 = scmp.eq.s32.totalorder %s32, 1
      %p55 = por %p53, %p54
      %p57 = scmp.ne.s32.totalorder %s40, %s56
      %p58 = scmp.eq.s32.totalorder %s32, 0
      %p59 = por %p57, %p58
      %s60 = ssub.s32 %s26, %s33
      %p61 = scmp.eq.s32.totalorder %s60, 0
      %s63 = sadd.s32 %s62, 1
      %s64 = scalar_select %p61, %s62, %s63
      %p67 = pneg %p61
      %p68 = scmp.eq.s32.totalorder %s26, 1
      %p69 = por %p67, %p68
      %p70 = scmp.ne.s32.totalorder %s62, %s65
      %p71 = scmp.eq.s32.totalorder %s26, 0
      %p72 = por %p70, %p71
      %p73 = scmp.ne.s32.totalorder %s62, %s65
      %p74 = scmp.eq.s32.totalorder %s31, 1
      %p75 = por %p73, %p74
      %p76 = scmp.ne.s32.totalorder %s65, %s66
      %p77 = scmp.eq.s32.totalorder %s31, 0
      %p78 = por %p76, %p77
      %p79 = scmp.ne.s32.totalorder %s65, %s66
      %p80 = scmp.eq.s32.totalorder %s32, 1
      %p81 = por %p79, %p80
      %p83 = scmp.ne.s32.totalorder %s66, %s82
      %p84 = scmp.eq.s32.totalorder %s32, 0
      %p85 = por %p83, %p84
      %s86 = ssub.s32 %s26, %s33
      %p87 = scmp.eq.s32.totalorder %s86, 0
      %s89 = sadd.s32 %s88, 1
      %s90 = scalar_select %p87, %s88, %s89
      %p93 = pneg %p87
      %p94 = scmp.eq.s32.totalorder %s26, 1
      %p95 = por %p93, %p94
      %p96 = scmp.ne.s32.totalorder %s88, %s91
      %p97 = scmp.eq.s32.totalorder %s26, 0
      %p98 = por %p96, %p97
      %p99 = scmp.ne.s32.totalorder %s88, %s91
      %p100 = scmp.eq.s32.totalorder %s31, 1
      %p101 = por %p99, %p100
      %p102 = scmp.ne.s32.totalorder %s91, %s92
      %p103 = scmp.eq.s32.totalorder %s31, 0
      %p104 = por %p102, %p103
      %p105 = scmp.ne.s32.totalorder %s91, %s92
      %p106 = scmp.eq.s32.totalorder %s32, 1
      %p107 = por %p105, %p106
      %p109 = scmp.ne.s32.totalorder %s92, %s108
      %p110 = scmp.eq.s32.totalorder %s32, 0
      %p111 = por %p109, %p110
      %s113 = sadd.s32 %s112, 1
      %p116 = scmp.eq.s32.totalorder %s26, 1
      %p117 = scmp.ne.s32.totalorder %s112, %s114
      %p118 = scmp.eq.s32.totalorder %s26, 0
      %p119 = por %p117, %p118
      %p120 = scmp.ne.s32.totalorder %s112, %s114
      %p121 = scmp.eq.s32.totalorder %s31, 1
      %p122 = por %p120, %p121
      %p123 = scmp.ne.s32.totalorder %s114, %s115
      %p124 = scmp.eq.s32.totalorder %s31, 0
      %p125 = por %p123, %p124
      %p126 = scmp.ne.s32.totalorder %s114, %s115
      %p127 = scmp.eq.s32.totalorder %s32, 1
      %p128 = por %p126, %p127
      %p130 = scmp.ne.s32.totalorder %s115, %s129
      %p131 = scmp.eq.s32.totalorder %s32, 0
      %p132 = por %p130, %p131
      %s134 = sadd.s32 %s133, 1
      %p137 = scmp.eq.s32.totalorder %s26, 1
      %p138 = scmp.ne.s32.totalorder %s133, %s135
      %p139 = scmp.eq.s32.totalorder %s26, 0
      %p140 = por %p138, %p139
      %p141 = scmp.ne.s32.totalorder %s133, %s135
      %p142 = scmp.eq.s32.totalorder %s31, 1
      %p143 = por %p141, %p142
      %p144 = scmp.ne.s32.totalorder %s135, %s136
      %p145 = scmp.eq.s32.totalorder %s31, 0
      %p146 = por %p144, %p145
      %p147 = scmp.ne.s32.totalorder %s135, %s136
      %p148 = scmp.eq.s32.totalorder %s32, 1
      %p149 = por %p147, %p148
      %p151 = scmp.ne.s32.totalorder %s136, %s150
      %p152 = scmp.eq.s32.totalorder %s32, 0
      %p153 = por %p151, %p152
      %s155 = sadd.s32 %s154, 1
      %p158 = scmp.eq.s32.totalorder %s26, 1
      %p159 = scmp.ne.s32.totalorder %s154, %s156
      %p160 = scmp.eq.s32.totalorder %s26, 0
      %p161 = por %p159, %p160
      %p162 = scmp.ne.s32.totalorder %s154, %s156
      %p163 = scmp.eq.s32.totalorder %s31, 1
      %p164 = por %p162, %p163
      %p165 = scmp.ne.s32.totalorder %s156, %s157
      %p166 = scmp.eq.s32.totalorder %s31, 0
      %p167 = por %p165, %p166
      %p168 = scmp.ne.s32.totalorder %s156, %s157
      %p169 = scmp.eq.s32.totalorder %s32, 1
      %p170 = por %p168, %p169
      %p172 = scmp.ne.s32.totalorder %s157, %s171
      %p173 = scmp.eq.s32.totalorder %s32, 0
      %p174 = por %p172, %p173
      %s176 = sadd.s32 %s175, 1
      %p179 = scmp.eq.s32.totalorder %s26, 1
      %p180 = scmp.ne.s32.totalorder %s175, %s177
      %p181 = scmp.eq.s32.totalorder %s26, 0
      %p182 = por %p180, %p181
      %p183 = scmp.ne.s32.totalorder %s175, %s177
      %p184 = scmp.eq.s32.totalorder %s31, 1
      %p185 = por %p183, %p184
      %p186 = scmp.ne.s32.totalorder %s177, %s178
      %p187 = scmp.eq.s32.totalorder %s31, 0
      %p188 = por %p186, %p187
      %p189 = scmp.ne.s32.totalorder %s177, %s178
      %p190 = scmp.eq.s32.totalorder %s32, 1
      %p191 = por %p189, %p190
      %p193 = scmp.ne.s32.totalorder %s178, %s192
      %p194 = scmp.eq.s32.totalorder %s32, 0
      %p195 = por %p193, %p194
      %s197 = sadd.s32 %s196, 1
      %p200 = scmp.eq.s32.totalorder %s26, 1
      %p201 = scmp.ne.s32.totalorder %s196, %s198
      %p202 = scmp.eq.s32.totalorder %s26, 0
      %p203 = por %p201, %p202
      %p204 = scmp.ne.s32.totalorder %s196, %s198
      %p205 = scmp.eq.s32.totalorder %s31, 1
      %p206 = por %p204, %p205
      %p207 = scmp.ne.s32.totalorder %s198, %s199
      %p208 = scmp.eq.s32.totalorder %s31, 0
      %p209 = por %p207, %p208
      %p210 = scmp.ne.s32.totalorder %s198, %s199
      %p211 = scmp.eq.s32.totalorder %s32, 1
      %p212 = por %p210, %p211
      %p214 = scmp.ne.s32.totalorder %s199, %s213
      %p215 = scmp.eq.s32.totalorder %s32, 0
      %p216 = por %p214, %p215
      %s218 = sadd.s32 %s217, 1
      %p221 = scmp.eq.s32.totalorder %s26, 1
      %p222 = scmp.ne.s32.totalorder %s217, %s219
      %p223 = scmp.eq.s32.totalorder %s26, 0
      %p224 = por %p222, %p223
      %p225 = scmp.ne.s32.totalorder %s217, %s219
      %p226 = scmp.eq.s32.totalorder %s31, 1
      %p227 = por %p225, %p226
      %p228 = scmp.ne.s32.totalorder %s219, %s220
      %p229 = scmp.eq.s32.totalorder %s31, 0
      %p230 = por %p228, %p229
      %p231 = scmp.ne.s32.totalorder %s219, %s220
      %p232 = scmp.eq.s32.totalorder %s32, 1
      %p233 = por %p231, %p232
      %p235 = scmp.ne.s32.totalorder %s220, %s234
      %p236 = scmp.eq.s32.totalorder %s32, 0
      %p237 = por %p235, %p236
      %s238 = ssub.s32 %s26, %s33
      %p239 = scmp.eq.s32.totalorder %s238, 0
      %s241 = sadd.s32 %s240, 1
      %s242 = scalar_select %p239, %s240, %s241
      %p245 = pneg %p239
      %p246 = scmp.eq.s32.totalorder %s26, 1
      %p247 = por %p245, %p246
      %p248 = scmp.ne.s32.totalorder %s240, %s243
      %p249 = scmp.eq.s32.totalorder %s26, 0
      %p250 = por %p248, %p249
      %p251 = scmp.ne.s32.totalorder %s240, %s243
      %p252 = scmp.eq.s32.totalorder %s31, 1
      %p253 = por %p251, %p252
      %p254 = scmp.ne.s32.totalorder %s243, %s244
      %p255 = scmp.eq.s32.totalorder %s31, 0
      %p256 = por %p254, %p255
      %p257 = scmp.ne.s32.totalorder %s243, %s244
      %p258 = scmp.eq.s32.totalorder %s32, 1
      %p259 = por %p257, %p258
      %p261 = scmp.ne.s32.totalorder %s244, %s260
      %p262 = scmp.eq.s32.totalorder %s32, 0
      %p263 = por %p261, %p262
      %p264 = scmp.le.s32.totalorder 1, %s26
      %p265 = scmp.lt.s32.totalorder %s26, 3
      %p266 = pnand %p264, %p265
      %p267 = pneg %p266
      // Predicated region
      $region9: #{tpu_custom_call.1} parent=5 // pred_check
        _
      $region10: #{tpu_custom_call.1} parent=5 // pred_check_branch
        %269 = sbr.rel (%p266) target = $region12
      $region11: #{tpu_custom_call.1} parent=5 // pred_region
        %s270 = ssub.s32 %s26, 1
        // Predicated region
        $region13: #{tpu_custom_call.1} parent=11 // pred_check
          %p271 = pneg %p125
        $region14: #{tpu_custom_call.1} parent=11 // pred_check_branch
          %273 = sbr.rel (%p271) target = $region16
        $region15: #{tpu_custom_call.1} parent=11 // pred_region
          %s275 = ssub.s32 2048, 2048
          %276 = vsyncadd [#allocation9], %s275
          %s277 = sshll.u32 [#allocation8], 4
          %s278 = int_to_ptr.vmem [resolvable:$true] %s277
          %283 = dma.hbm_to_vmem [thread:$0]  %s3, 2048, %s278, [#allocation9], 128, 128, 8
        $region16: #{tpu_custom_call.1} parent=11 // pred_fallthru
          _
        // Predicated region
        $region17: #{tpu_custom_call.1} parent=11 // pred_check
          %p284 = pneg %p146
        $region18: #{tpu_custom_call.1} parent=11 // pred_check_branch
          %286 = sbr.rel (%p284) target = $region20
        $region19: #{tpu_custom_call.1} parent=11 // pred_region
          _
        $region20: #{tpu_custom_call.1} parent=11 // pred_fallthru
          _
        // Predicated region
        $region21: #{tpu_custom_call.1} parent=11 // pred_check
          %p287 = pneg %p167
        $region22: #{tpu_custom_call.1} parent=11 // pred_check_branch
          %289 = sbr.rel (%p287) target = $region24
        $region23: #{tpu_custom_call.1} parent=11 // pred_region
          %s291 = ssub.s32 2048, 2048
          %292 = vsyncadd [#allocation9], %s291
          %s293 = sshll.u32 [#allocation10], 4
          %s294 = int_to_ptr.vmem [resolvable:$true] %s293
          %299 = dma.hbm_to_vmem [thread:$0]  %s5, 2048, %s294, [#allocation9], 128, 128, 8
        $region24: #{tpu_custom_call.1} parent=11 // pred_fallthru
          _
        // Predicated region
        $region25: #{tpu_custom_call.1} parent=11 // pred_check
          %p300 = pneg %p188
        $region26: #{tpu_custom_call.1} parent=11 // pred_check_branch
          %302 = sbr.rel (%p300) target = $region28
        $region27: #{tpu_custom_call.1} parent=11 // pred_region
          _
        $region28: #{tpu_custom_call.1} parent=11 // pred_fallthru
          _
        // Predicated region
        $region29: #{tpu_custom_call.1} parent=11 // pred_check
          %p303 = pneg %p209
        $region30: #{tpu_custom_call.1} parent=11 // pred_check_branch
          %305 = sbr.rel (%p303) target = $region32
        $region31: #{tpu_custom_call.1} parent=11 // pred_region
          %s307 = ssub.s32 2048, 2048
          %308 = vsyncadd [#allocation12], %s307
          %s309 = sshll.u32 [#allocation11], 4
          %s310 = int_to_ptr.vmem [resolvable:$true] %s309
          %315 = dma.hbm_to_vmem [thread:$0]  %s7, 2048, %s310, [#allocation12], 128, 128, 8
        $region32: #{tpu_custom_call.1} parent=11 // pred_fallthru
          _
        // Predicated region
        $region33: #{tpu_custom_call.1} parent=11 // pred_check
          %p316 = pneg %p230
        $region34: #{tpu_custom_call.1} parent=11 // pred_check_branch
          %318 = sbr.rel (%p316) target = $region36
        $region35: #{tpu_custom_call.1} parent=11 // pred_region
          _
        $region36: #{tpu_custom_call.1} parent=11 // pred_fallthru
          _
      $region12: #{tpu_custom_call.1} parent=5 // pred_fallthru
        _
      %p319 = scmp.lt.s32.totalorder %s26, 2
      // Predicated region
      $region37: #{tpu_custom_call.1} parent=5 // pred_check
        %p320 = pneg %p319
      $region38: #{tpu_custom_call.1} parent=5 // pred_check_branch
        %322 = sbr.rel (%p320) target = $region40
      $region39: #{tpu_custom_call.1} parent=5 // pred_region
        // Predicated region
        $region41: #{tpu_custom_call.1} parent=39 // pred_check
          %p323 = pneg %p46
        $region42: #{tpu_custom_call.1} parent=39 // pred_check_branch
          %325 = sbr.rel (%p323) target = $region44
        $region43: #{tpu_custom_call.1} parent=39 // pred_region
          %s326 = sand.u32 %s36, 1
          %s327 = scalar_lea.sflag [#allocation3], %s326
          %s328 = sand.u32 %s36, 1
          %s329 = smul.addr %s328, 8
          %s330 = scalar_lea.vmem [#allocation2], %s329
          %s332 = ssub.s32 128, 128
          %333 = vsyncadd %s327, %s332
          %s334 = smul.addr %s26, 128
          %s335 = scalar_lea.hbm %s0, %s334
          %s337 = sshll.u32 %s330, 4
          %s338 = int_to_ptr.vmem [resolvable:$true] %s337
          %340 = dma.hbm_to_vmem [thread:$0]  %s335, 128, %s338, %s327
        $region44: #{tpu_custom_call.1} parent=39 // pred_fallthru
          _
        // Predicated region
        $region45: #{tpu_custom_call.1} parent=39 // pred_check
          %p341 = pneg %p72
        $region46: #{tpu_custom_call.1} parent=39 // pred_check_branch
          %343 = sbr.rel (%p341) target = $region48
        $region47: #{tpu_custom_call.1} parent=39 // pred_region
          %s344 = sand.u32 %s26, 1
          %s345 = scalar_lea.sflag [#allocation6], %s344
          %s346 = sand.u32 %s62, 1
          %s347 = smul.addr %s346, 8
          %s348 = scalar_lea.vmem [#allocation5], %s347
          %s350 = ssub.s32 128, 128
          %351 = vsyncadd %s345, %s350
          %s352 = smul.addr %s26, 128
          %s353 = scalar_lea.hbm %s1, %s352
          %s355 = sshll.u32 %s348, 4
          %s356 = int_to_ptr.vmem [resolvable:$true] %s355
          %358 = dma.hbm_to_vmem [thread:$0]  %s353, 128, %s356, %s345
        $region48: #{tpu_custom_call.1} parent=39 // pred_fallthru
          _
        // Predicated region
        $region49: #{tpu_custom_call.1} parent=39 // pred_check
          %p359 = pneg %p98
        $region50: #{tpu_custom_call.1} parent=39 // pred_check_branch
          %361 = sbr.rel (%p359) target = $region52
        $region51: #{tpu_custom_call.1} parent=39 // pred_region
          %s362 = sand.u32 %s26, 1
          %s363 = scalar_lea.sflag [#allocation6], %s362
          %s364 = sand.u32 %s88, 1
          %s365 = smul.addr %s364, 8
          %s366 = scalar_lea.vmem [#allocation7], %s365
          %s368 = ssub.s32 128, 128
          %369 = vsyncadd %s363, %s368
          %s370 = smul.addr %s26, 128
          %s371 = scalar_lea.hbm %s2, %s370
          %s373 = sshll.u32 %s366, 4
          %s374 = int_to_ptr.vmem [resolvable:$true] %s373
          %376 = dma.hbm_to_vmem [thread:$0]  %s371, 128, %s374, %s363
        $region52: #{tpu_custom_call.1} parent=39 // pred_fallthru
          _
      $region40: #{tpu_custom_call.1} parent=5 // pred_fallthru
        _
      %p377 = scmp.le.s32.totalorder 1, %s26
      %p378 = scmp.lt.s32.totalorder %s26, 3
      %p379 = pnand %p377, %p378
      %p380 = pneg %p379
      // Predicated region
      $region53: #{tpu_custom_call.1} parent=5 // pred_check
        _
      $region54: #{tpu_custom_call.1} parent=5 // pred_check_branch
        %382 = sbr.rel (%p379) target = $region56
      $region55: #{tpu_custom_call.1} parent=5 // pred_region
        %s383 = ssub.s32 %s26, 1
        %s384 = sand.u32 %s39, 1
        %s385 = scalar_lea.sflag [#allocation3], %s384
        %s386 = sand.u32 %s39, 1
        %s387 = smul.addr %s386, 8
        %s388 = scalar_lea.vmem [#allocation2], %s387
        // Predicated region
        $region57: #{tpu_custom_call.1} parent=55 // pred_check
          %p389 = pneg %p52
        $region58: #{tpu_custom_call.1} parent=55 // pred_check_branch
          %391 = sbr.rel (%p389) target = $region60
        $region59: #{tpu_custom_call.1} parent=55 // pred_region
          %392 = dma.done %s385, 128
        $region60: #{tpu_custom_call.1} parent=55 // pred_fallthru
          _
        %s393 = sand.u32 %s31, 1
        %s394 = scalar_lea.sflag [#allocation6], %s393
        %s395 = sand.u32 %s65, 1
        %s396 = smul.addr %s395, 8
        %s397 = scalar_lea.vmem [#allocation5], %s396
        // Predicated region
        $region61: #{tpu_custom_call.1} parent=55 // pred_check
          %p398 = pneg %p78
        $region62: #{tpu_custom_call.1} parent=55 // pred_check_branch
          %400 = sbr.rel (%p398) target = $region64
        $region63: #{tpu_custom_call.1} parent=55 // pred_region
          %401 = dma.done %s394, 128
        $region64: #{tpu_custom_call.1} parent=55 // pred_fallthru
          _
        %s402 = sand.u32 %s31, 1
        %s403 = scalar_lea.sflag [#allocation6], %s402
        %s404 = sand.u32 %s91, 1
        %s405 = smul.addr %s404, 8
        %s406 = scalar_lea.vmem [#allocation7], %s405
        // Predicated region
        $region65: #{tpu_custom_call.1} parent=55 // pred_check
          %p407 = pneg %p104
        $region66: #{tpu_custom_call.1} parent=55 // pred_check_branch
          %409 = sbr.rel (%p407) target = $region68
        $region67: #{tpu_custom_call.1} parent=55 // pred_region
          %410 = dma.done %s403, 128
        $region68: #{tpu_custom_call.1} parent=55 // pred_fallthru
          _
        // Predicated region
        $region69: #{tpu_custom_call.1} parent=55 // pred_check
          %p411 = pneg %p125
        $region70: #{tpu_custom_call.1} parent=55 // pred_check_branch
          %413 = sbr.rel (%p411) target = $region72
        $region71: #{tpu_custom_call.1} parent=55 // pred_region
          %414 = dma.done [#allocation9], 2048
        $region72: #{tpu_custom_call.1} parent=55 // pred_fallthru
          _
        // Predicated region
        $region73: #{tpu_custom_call.1} parent=55 // pred_check
          %p415 = pneg %p167
        $region74: #{tpu_custom_call.1} parent=55 // pred_check_branch
          %417 = sbr.rel (%p415) target = $region76
        $region75: #{tpu_custom_call.1} parent=55 // pred_region
          %418 = dma.done [#allocation9], 2048
        $region76: #{tpu_custom_call.1} parent=55 // pred_fallthru
          _
        // Predicated region
        $region77: #{tpu_custom_call.1} parent=55 // pred_check
          %p419 = pneg %p209
        $region78: #{tpu_custom_call.1} parent=55 // pred_check_branch
          %421 = sbr.rel (%p419) target = $region80
        $region79: #{tpu_custom_call.1} parent=55 // pred_region
          %422 = dma.done [#allocation12], 2048
        $region80: #{tpu_custom_call.1} parent=55 // pred_fallthru
          _
        %s423 = sand.u32 %s39, 1
        %s424 = scalar_lea.sflag [#allocation3], %s423
        %s425 = sand.u32 %s39, 1
        %s426 = smul.addr %s425, 8
        %s427 = scalar_lea.vmem [#allocation2], %s426
        %p428 = pneg %p52
        %p429 = pneg %p49
        %s430 = sand.u32 %s31, 1
        %s431 = scalar_lea.sflag [#allocation6], %s430
        %s432 = sand.u32 %s65, 1
        %s433 = smul.addr %s432, 8
        %s434 = scalar_lea.vmem [#allocation5], %s433
        %p435 = pneg %p78
        %p436 = pneg %p75
        %s437 = sand.u32 %s31, 1
        %s438 = scalar_lea.sflag [#allocation6], %s437
        %s439 = sand.u32 %s91, 1
        %s440 = smul.addr %s439, 8
        %s441 = scalar_lea.vmem [#allocation7], %s440
        %p442 = pneg %p104
        %p443 = pneg %p101
        %p444 = pneg %p125
        %p445 = pneg %p122
        %p446 = pneg %p146
        %p447 = pneg %p143
        %p448 = pneg %p167
        %p449 = pneg %p164
        %p450 = pneg %p188
        %p451 = pneg %p185
        %p452 = pneg %p209
        %p453 = pneg %p206
        %p454 = pneg %p230
        %p455 = pneg %p227
        %p456 = pneg %p256
        %p457 = pneg %p253
        %s458 = sand.u32 %s243, 1
        %s459 = scalar_lea.sflag [#allocation4], %s458
        %s460 = sand.u32 %s243, 1
        %s461 = smul.addr %s460, 8
        %s462 = scalar_lea.vmem [#allocation13], %s461
        %v463 = vld [vmem:[%s388] sm:$0xff]
        %v464 = vld [vmem:[%s397] sm:$0xff]
        %v465 = vld [vmem:[%s406] sm:$0xff]
        %v466 = vld [vmem:[#allocation8] sm:$0xff]
        %v467 = vld [vmem:[#allocation8 + $0x8] sm:$0xff]
        %v468 = vld [vmem:[#allocation8 + $0x10] sm:$0xff]
        %v469 = vld [vmem:[#allocation8 + $0x18] sm:$0xff]
        %v470 = vld [vmem:[#allocation8 + $0x20] sm:$0xff]
        %v471 = vld [vmem:[#allocation8 + $0x28] sm:$0xff]
        %v472 = vld [vmem:[#allocation8 + $0x30] sm:$0xff]
        %v473 = vld [vmem:[#allocation8 + $0x38] sm:$0xff]
        %v474 = vld [vmem:[#allocation8 + $0x40] sm:$0xff]
        %v475 = vld [vmem:[#allocation8 + $0x48] sm:$0xff]
        %v476 = vld [vmem:[#allocation8 + $0x50] sm:$0xff]
        %v477 = vld [vmem:[#allocation8 + $0x58] sm:$0xff]
        %v478 = vld [vmem:[#allocation8 + $0x60] sm:$0xff]
        %v479 = vld [vmem:[#allocation8 + $0x68] sm:$0xff]
        %v480 = vld [vmem:[#allocation8 + $0x70] sm:$0xff]
        %v481 = vld [vmem:[#allocation8 + $0x78] sm:$0xff]
        %v482 = vld [vmem:[%s4] sm:$0x1]
        %v484 = vlaneseq
        %v485 = vshrl.u32 %v484, 7
        %v486 = vsub.s32 0, %v485
        %v487 = vrot.slane %v482, %v486
        %489 = vmatprep.subr.mxu0 0.0
        %490 = vmatpush1.msra.mxu0 %v481
        %491 = vmatprep.subr.mxu0 0.0
        %492 = vmatpush1.msra.mxu0 %v480
        %493 = vmatprep.subr.mxu0 0.0
        %494 = vmatpush1.msra.mxu0 %v479
        %495 = vmatprep.subr.mxu0 0.0
        %496 = vmatpush1.msra.mxu0 %v478
        %497 = vmatprep.subr.mxu0 0.0
        %498 = vmatpush1.msra.mxu0 %v477
        %499 = vmatprep.subr.mxu0 0.0
        %500 = vmatpush1.msra.mxu0 %v476
        %501 = vmatprep.subr.mxu0 0.0
        %502 = vmatpush1.msra.mxu0 %v475
        %503 = vmatprep.subr.mxu0 0.0
        %504 = vmatpush1.msra.mxu0 %v474
        %505 = vmatprep.subr.mxu0 0.0
        %506 = vmatpush1.msra.mxu0 %v473
        %507 = vmatprep.subr.mxu0 0.0
        %508 = vmatpush1.msra.mxu0 %v472
        %509 = vmatprep.subr.mxu0 0.0
        %510 = vmatpush1.msra.mxu0 %v471
        %511 = vmatprep.subr.mxu0 0.0
        %512 = vmatpush1.msra.mxu0 %v470
        %513 = vmatprep.subr.mxu0 0.0
        %514 = vmatpush1.msra.mxu0 %v469
        %515 = vmatprep.subr.mxu0 0.0
        %516 = vmatpush1.msra.mxu0 %v468
        %517 = vmatprep.subr.mxu0 0.0
        %518 = vmatpush1.msra.mxu0 %v467
        %519 = vmatprep.subr.mxu0 0.0
        %520 = vmatpush1.msra.mxu0 %v466
        %521 = vmatprep.subr.mxu0 0.0
        %522 = vmatpush2.msra.mxu0 0.0
        %523 = vmatprep.subr.mxu0 0.0
        %524 = vmatpush2.msra.mxu0 0.0
        %525 = vmatprep.subr.mxu0 0.0
        %526 = vmatpush2.msra.mxu0 0.0
        %527 = vmatprep.subr.mxu0 0.0
        %528 = vmatpush2.msra.mxu0 0.0
        %529 = vmatprep.subr.mxu0 0.0
        %530 = vmatpush2.msra.mxu0 0.0
        %531 = vmatprep.subr.mxu0 0.0
        %532 = vmatpush2.msra.mxu0 0.0
        %533 = vmatprep.subr.mxu0 0.0
        %534 = vmatpush2.msra.mxu0 0.0
        %535 = vmatprep.subr.mxu0 0.0
        %536 = vmatpush2.msra.mxu0 0.0
        %537 = vmatprep.subr.mxu0 0.0
        %538 = vmatpush2.msra.mxu0 0.0
        %539 = vmatprep.subr.mxu0 0.0
        %540 = vmatpush2.msra.mxu0 0.0
        %541 = vmatprep.subr.mxu0 0.0
        %542 = vmatpush2.msra.mxu0 0.0
        %543 = vmatprep.subr.mxu0 0.0
        %544 = vmatpush2.msra.mxu0 0.0
        %545 = vmatprep.subr.mxu0 0.0
        %546 = vmatpush2.msra.mxu0 0.0
        %547 = vmatprep.subr.mxu0 0.0
        %548 = vmatpush2.msra.mxu0 0.0
        %549 = vmatprep.subr.mxu0 0.0
        %550 = vmatpush2.msra.mxu0 0.0
        %551 = vmatprep.subr.mxu0 0.0
        %552 = vmatpush2.msra.mxu0 0.0
        %553 = vmatprep.mubr.f32.mxu0 0.0
        %554 = vmatmul.mubr.f32.gmra.mxu0 %v463
        %v555 = vpop.f32.mrf.mxu0
        %v556 = vadd.f32 %v487, %v555
        %v557 = vpop.f32.mrf.mxu0
        %558 = vdwg.mxu0
        %v559 = vld [vmem:[#allocation10] sm:$0xff]
        %v560 = vld [vmem:[#allocation10 + $0x8] sm:$0xff]
        %v561 = vld [vmem:[#allocation10 + $0x10] sm:$0xff]
        %v562 = vld [vmem:[#allocation10 + $0x18] sm:$0xff]
        %v563 = vld [vmem:[#allocation10 + $0x20] sm:$0xff]
        %v564 = vld [vmem:[#allocation10 + $0x28] sm:$0xff]
        %v565 = vld [vmem:[#allocation10 + $0x30] sm:$0xff]
        %v566 = vld [vmem:[#allocation10 + $0x38] sm:$0xff]
        %v567 = vld [vmem:[#allocation10 + $0x40] sm:$0xff]
        %v568 = vld [vmem:[#allocation10 + $0x48] sm:$0xff]
        %v569 = vld [vmem:[#allocation10 + $0x50] sm:$0xff]
        %v570 = vld [vmem:[#allocation10 + $0x58] sm:$0xff]
        %v571 = vld [vmem:[#allocation10 + $0x60] sm:$0xff]
        %v572 = vld [vmem:[#allocation10 + $0x68] sm:$0xff]
        %v573 = vld [vmem:[#allocation10 + $0x70] sm:$0xff]
        %v574 = vld [vmem:[#allocation10 + $0x78] sm:$0xff]
        %v575 = vld [vmem:[%s6] sm:$0x1]
        %v577 = vlaneseq
        %v578 = vshrl.u32 %v577, 7
        %v579 = vsub.s32 0, %v578
        %v580 = vrot.slane %v575, %v579
        %582 = vmatprep.subr.mxu0 0.0
        %583 = vmatpush1.msra.mxu0 %v574
        %584 = vmatprep.subr.mxu0 0.0
        %585 = vmatpush1.msra.mxu0 %v573
        %586 = vmatprep.subr.mxu0 0.0
        %587 = vmatpush1.msra.mxu0 %v572
        %588 = vmatprep.subr.mxu0 0.0
        %589 = vmatpush1.msra.mxu0 %v571
        %590 = vmatprep.subr.mxu0 0.0
        %591 = vmatpush1.msra.mxu0 %v570
        %592 = vmatprep.subr.mxu0 0.0
        %593 = vmatpush1.msra.mxu0 %v569
        %594 = vmatprep.subr.mxu0 0.0
        %595 = vmatpush1.msra.mxu0 %v568
        %596 = vmatprep.subr.mxu0 0.0
        %597 = vmatpush1.msra.mxu0 %v567
        %598 = vmatprep.subr.mxu0 0.0
        %599 = vmatpush1.msra.mxu0 %v566
        %600 = vmatprep.subr.mxu0 0.0
        %601 = vmatpush1.msra.mxu0 %v565
        %602 = vmatprep.subr.mxu0 0.0
        %603 = vmatpush1.msra.mxu0 %v564
        %604 = vmatprep.subr.mxu0 0.0
        %605 = vmatpush1.msra.mxu0 %v563
        %606 = vmatprep.subr.mxu0 0.0
        %607 = vmatpush1.msra.mxu0 %v562
        %608 = vmatprep.subr.mxu0 0.0
        %609 = vmatpush1.msra.mxu0 %v561
        %610 = vmatprep.subr.mxu0 0.0
        %611 = vmatpush1.msra.mxu0 %v560
        %612 = vmatprep.subr.mxu0 0.0
        %613 = vmatpush1.msra.mxu0 %v559
        %614 = vmatprep.subr.mxu0 0.0
        %615 = vmatpush2.msra.mxu0 0.0
        %616 = vmatprep.subr.mxu0 0.0
        %617 = vmatpush2.msra.mxu0 0.0
        %618 = vmatprep.subr.mxu0 0.0
        %619 = vmatpush2.msra.mxu0 0.0
        %620 = vmatprep.subr.mxu0 0.0
        %621 = vmatpush2.msra.mxu0 0.0
        %622 = vmatprep.subr.mxu0 0.0
        %623 = vmatpush2.msra.mxu0 0.0
        %624 = vmatprep.subr.mxu0 0.0
        %625 = vmatpush2.msra.mxu0 0.0
        %626 = vmatprep.subr.mxu0 0.0
        %627 = vmatpush2.msra.mxu0 0.0
        %628 = vmatprep.subr.mxu0 0.0
        %629 = vmatpush2.msra.mxu0 0.0
        %630 = vmatprep.subr.mxu0 0.0
        %631 = vmatpush2.msra.mxu0 0.0
        %632 = vmatprep.subr.mxu0 0.0
        %633 = vmatpush2.msra.mxu0 0.0
        %634 = vmatprep.subr.mxu0 0.0
        %635 = vmatpush2.msra.mxu0 0.0
        %636 = vmatprep.subr.mxu0 0.0
        %637 = vmatpush2.msra.mxu0 0.0
        %638 = vmatprep.subr.mxu0 0.0
        %639 = vmatpush2.msra.mxu0 0.0
        %640 = vmatprep.subr.mxu0 0.0
        %641 = vmatpush2.msra.mxu0 0.0
        %642 = vmatprep.subr.mxu0 0.0
        %643 = vmatpush2.msra.mxu0 0.0
        %644 = vmatprep.subr.mxu0 0.0
        %645 = vmatpush2.msra.mxu0 0.0
        %646 = vmatprep.mubr.f32.mxu0 0.0
        %647 = vmatmul.mubr.f32.gmra.mxu0 %v464
        %v648 = vpop.f32.mrf.mxu0
        %v649 = vadd.f32 %v580, %v648
        %v650 = vpop.f32.mrf.mxu0
        %651 = vdwg.mxu0
        %v652 = vld [vmem:[#allocation11] sm:$0xff]
        %v653 = vld [vmem:[#allocation11 + $0x8] sm:$0xff]
        %v654 = vld [vmem:[#allocation11 + $0x10] sm:$0xff]
        %v655 = vld [vmem:[#allocation11 + $0x18] sm:$0xff]
        %v656 = vld [vmem:[#allocation11 + $0x20] sm:$0xff]
        %v657 = vld [vmem:[#allocation11 + $0x28] sm:$0xff]
        %v658 = vld [vmem:[#allocation11 + $0x30] sm:$0xff]
        %v659 = vld [vmem:[#allocation11 + $0x38] sm:$0xff]
        %v660 = vld [vmem:[#allocation11 + $0x40] sm:$0xff]
        %v661 = vld [vmem:[#allocation11 + $0x48] sm:$0xff]
        %v662 = vld [vmem:[#allocation11 + $0x50] sm:$0xff]
        %v663 = vld [vmem:[#allocation11 + $0x58] sm:$0xff]
        %v664 = vld [vmem:[#allocation11 + $0x60] sm:$0xff]
        %v665 = vld [vmem:[#allocation11 + $0x68] sm:$0xff]
        %v666 = vld [vmem:[#allocation11 + $0x70] sm:$0xff]
        %v667 = vld [vmem:[#allocation11 + $0x78] sm:$0xff]
        %v668 = vld [vmem:[%s8] sm:$0x1]
        %v670 = vlaneseq
        %v671 = vshrl.u32 %v670, 7
        %v672 = vsub.s32 0, %v671
        %v673 = vrot.slane %v668, %v672
        %675 = vmatprep.subr.mxu0 0.0
        %676 = vmatpush1.msra.mxu0 %v667
        %677 = vmatprep.subr.mxu0 0.0
        %678 = vmatpush1.msra.mxu0 %v666
        %679 = vmatprep.subr.mxu0 0.0
        %680 = vmatpush1.msra.mxu0 %v665
        %681 = vmatprep.subr.mxu0 0.0
        %682 = vmatpush1.msra.mxu0 %v664
        %683 = vmatprep.subr.mxu0 0.0
        %684 = vmatpush1.msra.mxu0 %v663
        %685 = vmatprep.subr.mxu0 0.0
        %686 = vmatpush1.msra.mxu0 %v662
        %687 = vmatprep.subr.mxu0 0.0
        %688 = vmatpush1.msra.mxu0 %v661
        %689 = vmatprep.subr.mxu0 0.0
        %690 = vmatpush1.msra.mxu0 %v660
        %691 = vmatprep.subr.mxu0 0.0
        %692 = vmatpush1.msra.mxu0 %v659
        %693 = vmatprep.subr.mxu0 0.0
        %694 = vmatpush1.msra.mxu0 %v658
        %695 = vmatprep.subr.mxu0 0.0
        %696 = vmatpush1.msra.mxu0 %v657
        %697 = vmatprep.subr.mxu0 0.0
        %698 = vmatpush1.msra.mxu0 %v656
        %699 = vmatprep.subr.mxu0 0.0
        %700 = vmatpush1.msra.mxu0 %v655
        %701 = vmatprep.subr.mxu0 0.0
        %702 = vmatpush1.msra.mxu0 %v654
        %703 = vmatprep.subr.mxu0 0.0
        %704 = vmatpush1.msra.mxu0 %v653
        %705 = vmatprep.subr.mxu0 0.0
        %706 = vmatpush1.msra.mxu0 %v652
        %707 = vmatprep.subr.mxu0 0.0
        %708 = vmatpush2.msra.mxu0 0.0
        %709 = vmatprep.subr.mxu0 0.0
        %710 = vmatpush2.msra.mxu0 0.0
        %711 = vmatprep.subr.mxu0 0.0
        %712 = vmatpush2.msra.mxu0 0.0
        %713 = vmatprep.subr.mxu0 0.0
        %714 = vmatpush2.msra.mxu0 0.0
        %715 = vmatprep.subr.mxu0 0.0
        %716 = vmatpush2.msra.mxu0 0.0
        %717 = vmatprep.subr.mxu0 0.0
        %718 = vmatpush2.msra.mxu0 0.0
        %719 = vmatprep.subr.mxu0 0.0
        %720 = vmatpush2.msra.mxu0 0.0
        %721 = vmatprep.subr.mxu0 0.0
        %722 = vmatpush2.msra.mxu0 0.0
        %723 = vmatprep.subr.mxu0 0.0
        %724 = vmatpush2.msra.mxu0 0.0
        %725 = vmatprep.subr.mxu0 0.0
        %726 = vmatpush2.msra.mxu0 0.0
        %727 = vmatprep.subr.mxu0 0.0
        %728 = vmatpush2.msra.mxu0 0.0
        %729 = vmatprep.subr.mxu0 0.0
        %730 = vmatpush2.msra.mxu0 0.0
        %731 = vmatprep.subr.mxu0 0.0
        %732 = vmatpush2.msra.mxu0 0.0
        %733 = vmatprep.subr.mxu0 0.0
        %734 = vmatpush2.msra.mxu0 0.0
        %735 = vmatprep.subr.mxu0 0.0
        %736 = vmatpush2.msra.mxu0 0.0
        %737 = vmatprep.subr.mxu0 0.0
        %738 = vmatpush2.msra.mxu0 0.0
        %739 = vmatprep.mubr.f32.mxu0 0.0
        %740 = vmatmul.mubr.f32.gmra.mxu0 %v465
        %v741 = vpop.f32.mrf.mxu0
        %v742 = vadd.f32 %v673, %v741
        %v743 = vpop.f32.mrf.mxu0
        %744 = vdwg.mxu0
        %v745 = vmax.f32 %v742, 0.0
        %vm746 = vcmask 64512
        %v748 = vsel %vm746, %v556, 0
        %v751 = vsel %vm746, %v649, 0
        %753 = vmatprep.subr.mxu0 0.0
        %754 = vmatpush1.xpose.msra.mxu0 0.0
        %755 = vmatprep.subr.mxu0 0.0
        %756 = vmatpush1.xpose.msra.mxu0 0.0
        %757 = vmatprep.subr.mxu0 0.0
        %758 = vmatpush1.xpose.msra.mxu0 0.0
        %759 = vmatprep.subr.mxu0 0.0
        %760 = vmatpush1.xpose.msra.mxu0 0.0
        %761 = vmatprep.subr.mxu0 0.0
        %762 = vmatpush1.xpose.msra.mxu0 0.0
        %763 = vmatprep.subr.mxu0 0.0
        %764 = vmatpush1.xpose.msra.mxu0 0.0
        %765 = vmatprep.subr.mxu0 0.0
        %766 = vmatpush1.xpose.msra.mxu0 0.0
        %767 = vmatprep.subr.mxu0 0.0
        %768 = vmatpush1.xpose.msra.mxu0 0.0
        %769 = vmatprep.subr.mxu0 0.0
        %770 = vmatpush1.xpose.msra.mxu0 0.0
        %771 = vmatprep.subr.mxu0 0.0
        %772 = vmatpush1.xpose.msra.mxu0 0.0
        %773 = vmatprep.subr.mxu0 0.0
        %774 = vmatpush1.xpose.msra.mxu0 0.0
        %775 = vmatprep.subr.mxu0 0.0
        %776 = vmatpush1.xpose.msra.mxu0 0.0
        %777 = vmatprep.subr.mxu0 0.0
        %778 = vmatpush1.xpose.msra.mxu0 0.0
        %779 = vmatprep.subr.mxu0 0.0
        %780 = vmatpush1.xpose.msra.mxu0 0.0
        %781 = vmatprep.subr.mxu0 0.0
        %782 = vmatpush1.xpose.msra.mxu0 0.0
        %783 = vmatprep.subr.mxu0 0.0
        %784 = vmatpush1.xpose.msra.mxu0 %v751
        %785 = vmatprep.subr.mxu0 0.0
        %786 = vmatpush2.xpose.msra.mxu0 0.0
        %787 = vmatprep.subr.mxu0 0.0
        %788 = vmatpush2.xpose.msra.mxu0 0.0
        %789 = vmatprep.subr.mxu0 0.0
        %790 = vmatpush2.xpose.msra.mxu0 0.0
        %791 = vmatprep.subr.mxu0 0.0
        %792 = vmatpush2.xpose.msra.mxu0 0.0
        %793 = vmatprep.subr.mxu0 0.0
        %794 = vmatpush2.xpose.msra.mxu0 0.0
        %795 = vmatprep.subr.mxu0 0.0
        %796 = vmatpush2.xpose.msra.mxu0 0.0
        %797 = vmatprep.subr.mxu0 0.0
        %798 = vmatpush2.xpose.msra.mxu0 0.0
        %799 = vmatprep.subr.mxu0 0.0
        %800 = vmatpush2.xpose.msra.mxu0 0.0
        %801 = vmatprep.subr.mxu0 0.0
        %802 = vmatpush2.xpose.msra.mxu0 0.0
        %803 = vmatprep.subr.mxu0 0.0
        %804 = vmatpush2.xpose.msra.mxu0 0.0
        %805 = vmatprep.subr.mxu0 0.0
        %806 = vmatpush2.xpose.msra.mxu0 0.0
        %807 = vmatprep.subr.mxu0 0.0
        %808 = vmatpush2.xpose.msra.mxu0 0.0
        %809 = vmatprep.subr.mxu0 0.0
        %810 = vmatpush2.xpose.msra.mxu0 0.0
        %811 = vmatprep.subr.mxu0 0.0
        %812 = vmatpush2.xpose.msra.mxu0 0.0
        %813 = vmatprep.subr.mxu0 0.0
        %814 = vmatpush2.xpose.msra.mxu0 0.0
        %815 = vmatprep.subr.mxu0 0.0
        %816 = vmatpush2.xpose.msra.mxu0 0.0
        %817 = vmatprep.mubr.f32.mxu0 0.0
        %818 = vmatmul.mubr.f32.gmra.mxu0 %v748
        %v819 = vpop.f32.mrf.mxu0
        %v820 = vadd.f32 0.0, %v819
        %v821 = vpop.f32.mrf.mxu0
        %822 = vdwg.mxu0
        %v823 = vmul.f32 %v820, 0.35355338
        %v824 = vsel %vm746, %v823, -inf
        %825 = vmax.xlane.f32.xlu0 %v824
        %v826 = vpop.xlane.xlu0 %825
        %v827 = vsub.f32 %v823, %v826
        %v828 = vmul.f32 %v827, 1.442695
        %v829 = vpow.pop %v828
        %v830 = vsel %vm746, %v829, 0.0
        %831 = vadd.xlane.f32.xlu0 %v830
        %v832 = vpop.xlane.xlu0 %831
        %v833 = vrcp.pop %v832
        %v834 = vmul.f32 %v829, %v833
        %v836 = vsel %vm746, %v834, 0
        %838 = vmatprep.subr.mxu0 0.0
        %839 = vmatpush1.msra.mxu0 0.0
        %840 = vmatprep.subr.mxu0 0.0
        %841 = vmatpush1.msra.mxu0 0.0
        %842 = vmatprep.subr.mxu0 0.0
        %843 = vmatpush1.msra.mxu0 0.0
        %844 = vmatprep.subr.mxu0 0.0
        %845 = vmatpush1.msra.mxu0 0.0
        %846 = vmatprep.subr.mxu0 0.0
        %847 = vmatpush1.msra.mxu0 0.0
        %848 = vmatprep.subr.mxu0 0.0
        %849 = vmatpush1.msra.mxu0 0.0
        %850 = vmatprep.subr.mxu0 0.0
        %851 = vmatpush1.msra.mxu0 0.0
        %852 = vmatprep.subr.mxu0 0.0
        %853 = vmatpush1.msra.mxu0 0.0
        %854 = vmatprep.subr.mxu0 0.0
        %855 = vmatpush1.msra.mxu0 0.0
        %856 = vmatprep.subr.mxu0 0.0
        %857 = vmatpush1.msra.mxu0 0.0
        %858 = vmatprep.subr.mxu0 0.0
        %859 = vmatpush1.msra.mxu0 0.0
        %860 = vmatprep.subr.mxu0 0.0
        %861 = vmatpush1.msra.mxu0 0.0
        %862 = vmatprep.subr.mxu0 0.0
        %863 = vmatpush1.msra.mxu0 0.0
        %864 = vmatprep.subr.mxu0 0.0
        %865 = vmatpush1.msra.mxu0 0.0
        %866 = vmatprep.subr.mxu0 0.0
        %867 = vmatpush1.msra.mxu0 0.0
        %868 = vmatprep.subr.mxu0 0.0
        %869 = vmatpush1.msra.mxu0 %v745
        %870 = vmatprep.subr.mxu0 0.0
        %871 = vmatpush2.msra.mxu0 0.0
        %872 = vmatprep.subr.mxu0 0.0
        %873 = vmatpush2.msra.mxu0 0.0
        %874 = vmatprep.subr.mxu0 0.0
        %875 = vmatpush2.msra.mxu0 0.0
        %876 = vmatprep.subr.mxu0 0.0
        %877 = vmatpush2.msra.mxu0 0.0
        %878 = vmatprep.subr.mxu0 0.0
        %879 = vmatpush2.msra.mxu0 0.0
        %880 = vmatprep.subr.mxu0 0.0
        %881 = vmatpush2.msra.mxu0 0.0
        %882 = vmatprep.subr.mxu0 0.0
        %883 = vmatpush2.msra.mxu0 0.0
        %884 = vmatprep.subr.mxu0 0.0
        %885 = vmatpush2.msra.mxu0 0.0
        %886 = vmatprep.subr.mxu0 0.0
        %887 = vmatpush2.msra.mxu0 0.0
        %888 = vmatprep.subr.mxu0 0.0
        %889 = vmatpush2.msra.mxu0 0.0
        %890 = vmatprep.subr.mxu0 0.0
        %891 = vmatpush2.msra.mxu0 0.0
        %892 = vmatprep.subr.mxu0 0.0
        %893 = vmatpush2.msra.mxu0 0.0
        %894 = vmatprep.subr.mxu0 0.0
        %895 = vmatpush2.msra.mxu0 0.0
        %896 = vmatprep.subr.mxu0 0.0
        %897 = vmatpush2.msra.mxu0 0.0
        %898 = vmatprep.subr.mxu0 0.0
        %899 = vmatpush2.msra.mxu0 0.0
        %900 = vmatprep.subr.mxu0 0.0
        %901 = vmatpush2.msra.mxu0 0.0
        %902 = vmatprep.mubr.f32.mxu0 0.0
        %903 = vmatmul.mubr.f32.gmra.mxu0 %v836
        %v904 = vpop.f32.mrf.mxu0
        %v905 = vadd.f32 0.0, %v904
        %v906 = vpop.f32.mrf.mxu0
        %907 = vdwg.mxu0
        %908 = vrot.lane.b32.xlu0 %v556, 120
        %v909 = vpop.permute.xlu0 %908
        %910 = vrot.lane.b32.xlu0 %v649, 120
        %v911 = vpop.permute.xlu0 %910
        %v912 = vsel %vm746, %v909, 0
        %v914 = vsel %vm746, %v911, 0
        %916 = vmatprep.subr.mxu0 0.0
        %917 = vmatpush1.xpose.msra.mxu0 0.0
        %918 = vmatprep.subr.mxu0 0.0
        %919 = vmatpush1.xpose.msra.mxu0 0.0
        %920 = vmatprep.subr.mxu0 0.0
        %921 = vmatpush1.xpose.msra.mxu0 0.0
        %922 = vmatprep.subr.mxu0 0.0
        %923 = vmatpush1.xpose.msra.mxu0 0.0
        %924 = vmatprep.subr.mxu0 0.0
        %925 = vmatpush1.xpose.msra.mxu0 0.0
        %926 = vmatprep.subr.mxu0 0.0
        %927 = vmatpush1.xpose.msra.mxu0 0.0
        %928 = vmatprep.subr.mxu0 0.0
        %929 = vmatpush1.xpose.msra.mxu0 0.0
        %930 = vmatprep.subr.mxu0 0.0
        %931 = vmatpush1.xpose.msra.mxu0 0.0
        %932 = vmatprep.subr.mxu0 0.0
        %933 = vmatpush1.xpose.msra.mxu0 0.0
        %934 = vmatprep.subr.mxu0 0.0
        %935 = vmatpush1.xpose.msra.mxu0 0.0
        %936 = vmatprep.subr.mxu0 0.0
        %937 = vmatpush1.xpose.msra.mxu0 0.0
        %938 = vmatprep.subr.mxu0 0.0
        %939 = vmatpush1.xpose.msra.mxu0 0.0
        %940 = vmatprep.subr.mxu0 0.0
        %941 = vmatpush1.xpose.msra.mxu0 0.0
        %942 = vmatprep.subr.mxu0 0.0
        %943 = vmatpush1.xpose.msra.mxu0 0.0
        %944 = vmatprep.subr.mxu0 0.0
        %945 = vmatpush1.xpose.msra.mxu0 0.0
        %946 = vmatprep.subr.mxu0 0.0
        %947 = vmatpush1.xpose.msra.mxu0 %v914
        %948 = vmatprep.subr.mxu0 0.0
        %949 = vmatpush2.xpose.msra.mxu0 0.0
        %950 = vmatprep.subr.mxu0 0.0
        %951 = vmatpush2.xpose.msra.mxu0 0.0
        %952 = vmatprep.subr.mxu0 0.0
        %953 = vmatpush2.xpose.msra.mxu0 0.0
        %954 = vmatprep.subr.mxu0 0.0
        %955 = vmatpush2.xpose.msra.mxu0 0.0
        %956 = vmatprep.subr.mxu0 0.0
        %957 = vmatpush2.xpose.msra.mxu0 0.0
        %958 = vmatprep.subr.mxu0 0.0
        %959 = vmatpush2.xpose.msra.mxu0 0.0
        %960 = vmatprep.subr.mxu0 0.0
        %961 = vmatpush2.xpose.msra.mxu0 0.0
        %962 = vmatprep.subr.mxu0 0.0
        %963 = vmatpush2.xpose.msra.mxu0 0.0
        %964 = vmatprep.subr.mxu0 0.0
        %965 = vmatpush2.xpose.msra.mxu0 0.0
        %966 = vmatprep.subr.mxu0 0.0
        %967 = vmatpush2.xpose.msra.mxu0 0.0
        %968 = vmatprep.subr.mxu0 0.0
        %969 = vmatpush2.xpose.msra.mxu0 0.0
        %970 = vmatprep.subr.mxu0 0.0
        %971 = vmatpush2.xpose.msra.mxu0 0.0
        %972 = vmatprep.subr.mxu0 0.0
        %973 = vmatpush2.xpose.msra.mxu0 0.0
        %974 = vmatprep.subr.mxu0 0.0
        %975 = vmatpush2.xpose.msra.mxu0 0.0
        %976 = vmatprep.subr.mxu0 0.0
        %977 = vmatpush2.xpose.msra.mxu0 0.0
        %978 = vmatprep.subr.mxu0 0.0
        %979 = vmatpush2.xpose.msra.mxu0 0.0
        %980 = vmatprep.mubr.f32.mxu0 0.0
        %981 = vmatmul.mubr.f32.gmra.mxu0 %v912
        %v982 = vpop.f32.mrf.mxu0
        %v983 = vadd.f32 0.0, %v982
        %v984 = vpop.f32.mrf.mxu0
        %985 = vdwg.mxu0
        %v986 = vmul.f32 %v983, 0.35355338
        %v987 = vsel %vm746, %v986, -inf
        %988 = vmax.xlane.f32.xlu0 %v987
        %v989 = vpop.xlane.xlu0 %988
        %v990 = vsub.f32 %v986, %v989
        %v991 = vmul.f32 %v990, 1.442695
        %v992 = vpow.pop %v991
        %v993 = vsel %vm746, %v992, 0.0
        %994 = vadd.xlane.f32.xlu0 %v993
        %v995 = vpop.xlane.xlu0 %994
        %v996 = vrcp.pop %v995
        %v997 = vmul.f32 %v992, %v996
        %999 = vrot.lane.b32.xlu0 %v745, 120
        %v1000 = vpop.permute.xlu0 %999
        %v1003 = vsel %vm746, %v997, 0
        %1005 = vmatprep.subr.mxu0 0.0
        %1006 = vmatpush1.msra.mxu0 0.0
        %1007 = vmatprep.subr.mxu0 0.0
        %1008 = vmatpush1.msra.mxu0 0.0
        %1009 = vmatprep.subr.mxu0 0.0
        %1010 = vmatpush1.msra.mxu0 0.0
        %1011 = vmatprep.subr.mxu0 0.0
        %1012 = vmatpush1.msra.mxu0 0.0
        %1013 = vmatprep.subr.mxu0 0.0
        %1014 = vmatpush1.msra.mxu0 0.0
        %1015 = vmatprep.subr.mxu0 0.0
        %1016 = vmatpush1.msra.mxu0 0.0
        %1017 = vmatprep.subr.mxu0 0.0
        %1018 = vmatpush1.msra.mxu0 0.0
        %1019 = vmatprep.subr.mxu0 0.0
        %1020 = vmatpush1.msra.mxu0 0.0
        %1021 = vmatprep.subr.mxu0 0.0
        %1022 = vmatpush1.msra.mxu0 0.0
        %1023 = vmatprep.subr.mxu0 0.0
        %1024 = vmatpush1.msra.mxu0 0.0
        %1025 = vmatprep.subr.mxu0 0.0
        %1026 = vmatpush1.msra.mxu0 0.0
        %1027 = vmatprep.subr.mxu0 0.0
        %1028 = vmatpush1.msra.mxu0 0.0
        %1029 = vmatprep.subr.mxu0 0.0
        %1030 = vmatpush1.msra.mxu0 0.0
        %1031 = vmatprep.subr.mxu0 0.0
        %1032 = vmatpush1.msra.mxu0 0.0
        %1033 = vmatprep.subr.mxu0 0.0
        %1034 = vmatpush1.msra.mxu0 0.0
        %1035 = vmatprep.subr.mxu0 0.0
        %1036 = vmatpush1.msra.mxu0 %v1000
        %1037 = vmatprep.subr.mxu0 0.0
        %1038 = vmatpush2.msra.mxu0 0.0
        %1039 = vmatprep.subr.mxu0 0.0
        %1040 = vmatpush2.msra.mxu0 0.0
        %1041 = vmatprep.subr.mxu0 0.0
        %1042 = vmatpush2.msra.mxu0 0.0
        %1043 = vmatprep.subr.mxu0 0.0
        %1044 = vmatpush2.msra.mxu0 0.0
        %1045 = vmatprep.subr.mxu0 0.0
        %1046 = vmatpush2.msra.mxu0 0.0
        %1047 = vmatprep.subr.mxu0 0.0
        %1048 = vmatpush2.msra.mxu0 0.0
        %1049 = vmatprep.subr.mxu0 0.0
        %1050 = vmatpush2.msra.mxu0 0.0
        %1051 = vmatprep.subr.mxu0 0.0
        %1052 = vmatpush2.msra.mxu0 0.0
        %1053 = vmatprep.subr.mxu0 0.0
        %1054 = vmatpush2.msra.mxu0 0.0
        %1055 = vmatprep.subr.mxu0 0.0
        %1056 = vmatpush2.msra.mxu0 0.0
        %1057 = vmatprep.subr.mxu0 0.0
        %1058 = vmatpush2.msra.mxu0 0.0
        %1059 = vmatprep.subr.mxu0 0.0
        %1060 = vmatpush2.msra.mxu0 0.0
        %1061 = vmatprep.subr.mxu0 0.0
        %1062 = vmatpush2.msra.mxu0 0.0
        %1063 = vmatprep.subr.mxu0 0.0
        %1064 = vmatpush2.msra.mxu0 0.0
        %1065 = vmatprep.subr.mxu0 0.0
        %1066 = vmatpush2.msra.mxu0 0.0
        %1067 = vmatprep.subr.mxu0 0.0
        %1068 = vmatpush2.msra.mxu0 0.0
        %1069 = vmatprep.mubr.f32.mxu0 0.0
        %1070 = vmatmul.mubr.f32.gmra.mxu0 %v1003
        %v1071 = vpop.f32.mrf.mxu0
        %v1072 = vadd.f32 0.0, %v1071
        %v1073 = vpop.f32.mrf.mxu0
        %1074 = vdwg.mxu0
        %1075 = vrot.lane.b32.xlu0 %v556, 112
        %v1076 = vpop.permute.xlu0 %1075
        %1077 = vrot.lane.b32.xlu0 %v649, 112
        %v1078 = vpop.permute.xlu0 %1077
        %v1079 = vsel %vm746, %v1076, 0
        %v1081 = vsel %vm746, %v1078, 0
        %1083 = vmatprep.subr.mxu0 0.0
        %1084 = vmatpush1.xpose.msra.mxu0 0.0
        %1085 = vmatprep.subr.mxu0 0.0
        %1086 = vmatpush1.xpose.msra.mxu0 0.0
        %1087 = vmatprep.subr.mxu0 0.0
        %1088 = vmatpush1.xpose.msra.mxu0 0.0
        %1089 = vmatprep.subr.mxu0 0.0
        %1090 = vmatpush1.xpose.msra.mxu0 0.0
        %1091 = vmatprep.subr.mxu0 0.0
        %1092 = vmatpush1.xpose.msra.mxu0 0.0
        %1093 = vmatprep.subr.mxu0 0.0
        %1094 = vmatpush1.xpose.msra.mxu0 0.0
        %1095 = vmatprep.subr.mxu0 0.0
        %1096 = vmatpush1.xpose.msra.mxu0 0.0
        %1097 = vmatprep.subr.mxu0 0.0
        %1098 = vmatpush1.xpose.msra.mxu0 0.0
        %1099 = vmatprep.subr.mxu0 0.0
        %1100 = vmatpush1.xpose.msra.mxu0 0.0
        %1101 = vmatprep.subr.mxu0 0.0
        %1102 = vmatpush1.xpose.msra.mxu0 0.0
        %1103 = vmatprep.subr.mxu0 0.0
        %1104 = vmatpush1.xpose.msra.mxu0 0.0
        %1105 = vmatprep.subr.mxu0 0.0
        %1106 = vmatpush1.xpose.msra.mxu0 0.0
        %1107 = vmatprep.subr.mxu0 0.0
        %1108 = vmatpush1.xpose.msra.mxu0 0.0
        %1109 = vmatprep.subr.mxu0 0.0
        %1110 = vmatpush1.xpose.msra.mxu0 0.0
        %1111 = vmatprep.subr.mxu0 0.0
        %1112 = vmatpush1.xpose.msra.mxu0 0.0
        %1113 = vmatprep.subr.mxu0 0.0
        %1114 = vmatpush1.xpose.msra.mxu0 %v1081
        %1115 = vmatprep.subr.mxu0 0.0
        %1116 = vmatpush2.xpose.msra.mxu0 0.0
        %1117 = vmatprep.subr.mxu0 0.0
        %1118 = vmatpush2.xpose.msra.mxu0 0.0
        %1119 = vmatprep.subr.mxu0 0.0
        %1120 = vmatpush2.xpose.msra.mxu0 0.0
        %1121 = vmatprep.subr.mxu0 0.0
        %1122 = vmatpush2.xpose.msra.mxu0 0.0
        %1123 = vmatprep.subr.mxu0 0.0
        %1124 = vmatpush2.xpose.msra.mxu0 0.0
        %1125 = vmatprep.subr.mxu0 0.0
        %1126 = vmatpush2.xpose.msra.mxu0 0.0
        %1127 = vmatprep.subr.mxu0 0.0
        %1128 = vmatpush2.xpose.msra.mxu0 0.0
        %1129 = vmatprep.subr.mxu0 0.0
        %1130 = vmatpush2.xpose.msra.mxu0 0.0
        %1131 = vmatprep.subr.mxu0 0.0
        %1132 = vmatpush2.xpose.msra.mxu0 0.0
        %1133 = vmatprep.subr.mxu0 0.0
        %1134 = vmatpush2.xpose.msra.mxu0 0.0
        %1135 = vmatprep.subr.mxu0 0.0
        %1136 = vmatpush2.xpose.msra.mxu0 0.0
        %1137 = vmatprep.subr.mxu0 0.0
        %1138 = vmatpush2.xpose.msra.mxu0 0.0
        %1139 = vmatprep.subr.mxu0 0.0
        %1140 = vmatpush2.xpose.msra.mxu0 0.0
        %1141 = vmatprep.subr.mxu0 0.0
        %1142 = vmatpush2.xpose.msra.mxu0 0.0
        %1143 = vmatprep.subr.mxu0 0.0
        %1144 = vmatpush2.xpose.msra.mxu0 0.0
        %1145 = vmatprep.subr.mxu0 0.0
        %1146 = vmatpush2.xpose.msra.mxu0 0.0
        %1147 = vmatprep.mubr.f32.mxu0 0.0
        %1148 = vmatmul.mubr.f32.gmra.mxu0 %v1079
        %v1149 = vpop.f32.mrf.mxu0
        %v1150 = vadd.f32 0.0, %v1149
        %v1151 = vpop.f32.mrf.mxu0
        %1152 = vdwg.mxu0
        %v1153 = vmul.f32 %v1150, 0.35355338
        %v1154 = vsel %vm746, %v1153, -inf
        %1155 = vmax.xlane.f32.xlu0 %v1154
        %v1156 = vpop.xlane.xlu0 %1155
        %v1157 = vsub.f32 %v1153, %v1156
        %v1158 = vmul.f32 %v1157, 1.442695
        %v1159 = vpow.pop %v1158
        %v1160 = vsel %vm746, %v1159, 0.0
        %1161 = vadd.xlane.f32.xlu0 %v1160
        %v1162 = vpop.xlane.xlu0 %1161
        %v1163 = vrcp.pop %v1162
        %v1164 = vmul.f32 %v1159, %v1163
        %1165 = vrot.lane.b32.xlu0 %v745, 112
        %v1166 = vpop.permute.xlu0 %1165
        %v1169 = vsel %vm746, %v1164, 0
        %1171 = vmatprep.subr.mxu0 0.0
        %1172 = vmatpush1.msra.mxu0 0.0
        %1173 = vmatprep.subr.mxu0 0.0
        %1174 = vmatpush1.msra.mxu0 0.0
        %1175 = vmatprep.subr.mxu0 0.0
        %1176 = vmatpush1.msra.mxu0 0.0
        %1177 = vmatprep.subr.mxu0 0.0
        %1178 = vmatpush1.msra.mxu0 0.0
        %1179 = vmatprep.subr.mxu0 0.0
        %1180 = vmatpush1.msra.mxu0 0.0
        %1181 = vmatprep.subr.mxu0 0.0
        %1182 = vmatpush1.msra.mxu0 0.0
        %1183 = vmatprep.subr.mxu0 0.0
        %1184 = vmatpush1.msra.mxu0 0.0
        %1185 = vmatprep.subr.mxu0 0.0
        %1186 = vmatpush1.msra.mxu0 0.0
        %1187 = vmatprep.subr.mxu0 0.0
        %1188 = vmatpush1.msra.mxu0 0.0
        %1189 = vmatprep.subr.mxu0 0.0
        %1190 = vmatpush1.msra.mxu0 0.0
        %1191 = vmatprep.subr.mxu0 0.0
        %1192 = vmatpush1.msra.mxu0 0.0
        %1193 = vmatprep.subr.mxu0 0.0
        %1194 = vmatpush1.msra.mxu0 0.0
        %1195 = vmatprep.subr.mxu0 0.0
        %1196 = vmatpush1.msra.mxu0 0.0
        %1197 = vmatprep.subr.mxu0 0.0
        %1198 = vmatpush1.msra.mxu0 0.0
        %1199 = vmatprep.subr.mxu0 0.0
        %1200 = vmatpush1.msra.mxu0 0.0
        %1201 = vmatprep.subr.mxu0 0.0
        %1202 = vmatpush1.msra.mxu0 %v1166
        %1203 = vmatprep.subr.mxu0 0.0
        %1204 = vmatpush2.msra.mxu0 0.0
        %1205 = vmatprep.subr.mxu0 0.0
        %1206 = vmatpush2.msra.mxu0 0.0
        %1207 = vmatprep.subr.mxu0 0.0
        %1208 = vmatpush2.msra.mxu0 0.0
        %1209 = vmatprep.subr.mxu0 0.0
        %1210 = vmatpush2.msra.mxu0 0.0
        %1211 = vmatprep.subr.mxu0 0.0
        %1212 = vmatpush2.msra.mxu0 0.0
        %1213 = vmatprep.subr.mxu0 0.0
        %1214 = vmatpush2.msra.mxu0 0.0
        %1215 = vmatprep.subr.mxu0 0.0
        %1216 = vmatpush2.msra.mxu0 0.0
        %1217 = vmatprep.subr.mxu0 0.0
        %1218 = vmatpush2.msra.mxu0 0.0
        %1219 = vmatprep.subr.mxu0 0.0
        %1220 = vmatpush2.msra.mxu0 0.0
        %1221 = vmatprep.subr.mxu0 0.0
        %1222 = vmatpush2.msra.mxu0 0.0
        %1223 = vmatprep.subr.mxu0 0.0
        %1224 = vmatpush2.msra.mxu0 0.0
        %1225 = vmatprep.subr.mxu0 0.0
        %1226 = vmatpush2.msra.mxu0 0.0
        %1227 = vmatprep.subr.mxu0 0.0
        %1228 = vmatpush2.msra.mxu0 0.0
        %1229 = vmatprep.subr.mxu0 0.0
        %1230 = vmatpush2.msra.mxu0 0.0
        %1231 = vmatprep.subr.mxu0 0.0
        %1232 = vmatpush2.msra.mxu0 0.0
        %1233 = vmatprep.subr.mxu0 0.0
        %1234 = vmatpush2.msra.mxu0 0.0
        %1235 = vmatprep.mubr.f32.mxu0 0.0
        %1236 = vmatmul.mubr.f32.gmra.mxu0 %v1169
        %v1237 = vpop.f32.mrf.mxu0
        %v1238 = vadd.f32 0.0, %v1237
        %v1239 = vpop.f32.mrf.mxu0
        %1240 = vdwg.mxu0
        %1241 = vrot.lane.b32.xlu0 %v556, 104
        %v1242 = vpop.permute.xlu0 %1241
        %1243 = vrot.lane.b32.xlu0 %v649, 104
        %v1244 = vpop.permute.xlu0 %1243
        %v1245 = vsel %vm746, %v1242, 0
        %v1247 = vsel %vm746, %v1244, 0
        %1249 = vmatprep.subr.mxu0 0.0
        %1250 = vmatpush1.xpose.msra.mxu0 0.0
        %1251 = vmatprep.subr.mxu0 0.0
        %1252 = vmatpush1.xpose.msra.mxu0 0.0
        %1253 = vmatprep.subr.mxu0 0.0
        %1254 = vmatpush1.xpose.msra.mxu0 0.0
        %1255 = vmatprep.subr.mxu0 0.0
        %1256 = vmatpush1.xpose.msra.mxu0 0.0
        %1257 = vmatprep.subr.mxu0 0.0
        %1258 = vmatpush1.xpose.msra.mxu0 0.0
        %1259 = vmatprep.subr.mxu0 0.0
        %1260 = vmatpush1.xpose.msra.mxu0 0.0
        %1261 = vmatprep.subr.mxu0 0.0
        %1262 = vmatpush1.xpose.msra.mxu0 0.0
        %1263 = vmatprep.subr.mxu0 0.0
        %1264 = vmatpush1.xpose.msra.mxu0 0.0
        %1265 = vmatprep.subr.mxu0 0.0
        %1266 = vmatpush1.xpose.msra.mxu0 0.0
        %1267 = vmatprep.subr.mxu0 0.0
        %1268 = vmatpush1.xpose.msra.mxu0 0.0
        %1269 = vmatprep.subr.mxu0 0.0
        %1270 = vmatpush1.xpose.msra.mxu0 0.0
        %1271 = vmatprep.subr.mxu0 0.0
        %1272 = vmatpush1.xpose.msra.mxu0 0.0
        %1273 = vmatprep.subr.mxu0 0.0
        %1274 = vmatpush1.xpose.msra.mxu0 0.0
        %1275 = vmatprep.subr.mxu0 0.0
        %1276 = vmatpush1.xpose.msra.mxu0 0.0
        %1277 = vmatprep.subr.mxu0 0.0
        %1278 = vmatpush1.xpose.msra.mxu0 0.0
        %1279 = vmatprep.subr.mxu0 0.0
        %1280 = vmatpush1.xpose.msra.mxu0 %v1247
        %1281 = vmatprep.subr.mxu0 0.0
        %1282 = vmatpush2.xpose.msra.mxu0 0.0
        %1283 = vmatprep.subr.mxu0 0.0
        %1284 = vmatpush2.xpose.msra.mxu0 0.0
        %1285 = vmatprep.subr.mxu0 0.0
        %1286 = vmatpush2.xpose.msra.mxu0 0.0
        %1287 = vmatprep.subr.mxu0 0.0
        %1288 = vmatpush2.xpose.msra.mxu0 0.0
        %1289 = vmatprep.subr.mxu0 0.0
        %1290 = vmatpush2.xpose.msra.mxu0 0.0
        %1291 = vmatprep.subr.mxu0 0.0
        %1292 = vmatpush2.xpose.msra.mxu0 0.0
        %1293 = vmatprep.subr.mxu0 0.0
        %1294 = vmatpush2.xpose.msra.mxu0 0.0
        %1295 = vmatprep.subr.mxu0 0.0
        %1296 = vmatpush2.xpose.msra.mxu0 0.0
        %1297 = vmatprep.subr.mxu0 0.0
        %1298 = vmatpush2.xpose.msra.mxu0 0.0
        %1299 = vmatprep.subr.mxu0 0.0
        %1300 = vmatpush2.xpose.msra.mxu0 0.0
        %1301 = vmatprep.subr.mxu0 0.0
        %1302 = vmatpush2.xpose.msra.mxu0 0.0
        %1303 = vmatprep.subr.mxu0 0.0
        %1304 = vmatpush2.xpose.msra.mxu0 0.0
        %1305 = vmatprep.subr.mxu0 0.0
        %1306 = vmatpush2.xpose.msra.mxu0 0.0
        %1307 = vmatprep.subr.mxu0 0.0
        %1308 = vmatpush2.xpose.msra.mxu0 0.0
        %1309 = vmatprep.subr.mxu0 0.0
        %1310 = vmatpush2.xpose.msra.mxu0 0.0
        %1311 = vmatprep.subr.mxu0 0.0
        %1312 = vmatpush2.xpose.msra.mxu0 0.0
        %1313 = vmatprep.mubr.f32.mxu0 0.0
        %1314 = vmatmul.mubr.f32.gmra.mxu0 %v1245
        %v1315 = vpop.f32.mrf.mxu0
        %v1316 = vadd.f32 0.0, %v1315
        %v1317 = vpop.f32.mrf.mxu0
        %1318 = vdwg.mxu0
        %v1319 = vmul.f32 %v1316, 0.35355338
        %v1320 = vsel %vm746, %v1319, -inf
        %1321 = vmax.xlane.f32.xlu0 %v1320
        %v1322 = vpop.xlane.xlu0 %1321
        %v1323 = vsub.f32 %v1319, %v1322
        %v1324 = vmul.f32 %v1323, 1.442695
        %v1325 = vpow.pop %v1324
        %v1326 = vsel %vm746, %v1325, 0.0
        %1327 = vadd.xlane.f32.xlu0 %v1326
        %v1328 = vpop.xlane.xlu0 %1327
        %v1329 = vrcp.pop %v1328
        %v1330 = vmul.f32 %v1325, %v1329
        %1331 = vrot.lane.b32.xlu0 %v745, 104
        %v1332 = vpop.permute.xlu0 %1331
        %v1335 = vsel %vm746, %v1330, 0
        %1337 = vmatprep.subr.mxu0 0.0
        %1338 = vmatpush1.msra.mxu0 0.0
        %1339 = vmatprep.subr.mxu0 0.0
        %1340 = vmatpush1.msra.mxu0 0.0
        %1341 = vmatprep.subr.mxu0 0.0
        %1342 = vmatpush1.msra.mxu0 0.0
        %1343 = vmatprep.subr.mxu0 0.0
        %1344 = vmatpush1.msra.mxu0 0.0
        %1345 = vmatprep.subr.mxu0 0.0
        %1346 = vmatpush1.msra.mxu0 0.0
        %1347 = vmatprep.subr.mxu0 0.0
        %1348 = vmatpush1.msra.mxu0 0.0
        %1349 = vmatprep.subr.mxu0 0.0
        %1350 = vmatpush1.msra.mxu0 0.0
        %1351 = vmatprep.subr.mxu0 0.0
        %1352 = vmatpush1.msra.mxu0 0.0
        %1353 = vmatprep.subr.mxu0 0.0
        %1354 = vmatpush1.msra.mxu0 0.0
        %1355 = vmatprep.subr.mxu0 0.0
        %1356 = vmatpush1.msra.mxu0 0.0
        %1357 = vmatprep.subr.mxu0 0.0
        %1358 = vmatpush1.msra.mxu0 0.0
        %1359 = vmatprep.subr.mxu0 0.0
        %1360 = vmatpush1.msra.mxu0 0.0
        %1361 = vmatprep.subr.mxu0 0.0
        %1362 = vmatpush1.msra.mxu0 0.0
        %1363 = vmatprep.subr.mxu0 0.0
        %1364 = vmatpush1.msra.mxu0 0.0
        %1365 = vmatprep.subr.mxu0 0.0
        %1366 = vmatpush1.msra.mxu0 0.0
        %1367 = vmatprep.subr.mxu0 0.0
        %1368 = vmatpush1.msra.mxu0 %v1332
        %1369 = vmatprep.subr.mxu0 0.0
        %1370 = vmatpush2.msra.mxu0 0.0
        %1371 = vmatprep.subr.mxu0 0.0
        %1372 = vmatpush2.msra.mxu0 0.0
        %1373 = vmatprep.subr.mxu0 0.0
        %1374 = vmatpush2.msra.mxu0 0.0
        %1375 = vmatprep.subr.mxu0 0.0
        %1376 = vmatpush2.msra.mxu0 0.0
        %1377 = vmatprep.subr.mxu0 0.0
        %1378 = vmatpush2.msra.mxu0 0.0
        %1379 = vmatprep.subr.mxu0 0.0
        %1380 = vmatpush2.msra.mxu0 0.0
        %1381 = vmatprep.subr.mxu0 0.0
        %1382 = vmatpush2.msra.mxu0 0.0
        %1383 = vmatprep.subr.mxu0 0.0
        %1384 = vmatpush2.msra.mxu0 0.0
        %1385 = vmatprep.subr.mxu0 0.0
        %1386 = vmatpush2.msra.mxu0 0.0
        %1387 = vmatprep.subr.mxu0 0.0
        %1388 = vmatpush2.msra.mxu0 0.0
        %1389 = vmatprep.subr.mxu0 0.0
        %1390 = vmatpush2.msra.mxu0 0.0
        %1391 = vmatprep.subr.mxu0 0.0
        %1392 = vmatpush2.msra.mxu0 0.0
        %1393 = vmatprep.subr.mxu0 0.0
        %1394 = vmatpush2.msra.mxu0 0.0
        %1395 = vmatprep.subr.mxu0 0.0
        %1396 = vmatpush2.msra.mxu0 0.0
        %1397 = vmatprep.subr.mxu0 0.0
        %1398 = vmatpush2.msra.mxu0 0.0
        %1399 = vmatprep.subr.mxu0 0.0
        %1400 = vmatpush2.msra.mxu0 0.0
        %1401 = vmatprep.mubr.f32.mxu0 0.0
        %1402 = vmatmul.mubr.f32.gmra.mxu0 %v1335
        %v1403 = vpop.f32.mrf.mxu0
        %v1404 = vadd.f32 0.0, %v1403
        %v1405 = vpop.f32.mrf.mxu0
        %1406 = vdwg.mxu0
        %1408 = vrot.lane.b32.xlu0 %v1072, 8
        %v1409 = vpop.permute.xlu0 %1408
        %1412 = vrot.lane.b32.xlu0 %v1238, 16
        %v1413 = vpop.permute.xlu0 %1412
        %1416 = vrot.lane.b32.xlu0 %v1404, 24
        %v1417 = vpop.permute.xlu0 %1416
        %v1419 = vsel %vm746, %v905, %v1409
        %vm1420 = vcmask 130048
        %v1421 = vsel %vm1420, %v1419, %v1413
        %vm1422 = vcmask 195584
        %v1423 = vsel %vm1422, %v1421, %v1417
        %vm1424 = vcmask 261120
        %v1425 = vsel %vm1424, %v1423, 0.0
        %1426 = vst [vmem:[%s462] sm:$0xff] %v1425
        %s1427 = sand.u32 %s243, 1
        %s1428 = scalar_lea.sflag [#allocation4], %s1427
        %s1429 = sand.u32 %s243, 1
        %s1430 = smul.addr %s1429, 8
        %s1431 = scalar_lea.vmem [#allocation13], %s1430
        // Predicated region
        $region81: #{tpu_custom_call.1} parent=55 // pred_check
          %p1432 = pneg %p253
        $region82: #{tpu_custom_call.1} parent=55 // pred_check_branch
          %1434 = sbr.rel (%p1432) target = $region84
        $region83: #{tpu_custom_call.1} parent=55 // pred_region
          %s1436 = ssub.s32 128, 128
          %1437 = vsyncadd %s1428, %s1436
          %s1438 = smul.addr %s31, 128
          %s1439 = scalar_lea.hbm %s9, %s1438
          %s1441 = sshll.u32 %s1431, 4
          %s1442 = int_to_ptr.vmem [resolvable:$true] %s1441
          %1444 = dma.vmem_to_hbm [thread:$0]  %s1442, 128, %s1439, %s1428
        $region84: #{tpu_custom_call.1} parent=55 // pred_fallthru
          _
      $region56: #{tpu_custom_call.1} parent=5 // pred_fallthru
        _
      %p1445 = scmp.le.s32.totalorder 2, %s26
      // Predicated region
      $region85: #{tpu_custom_call.1} parent=5 // pred_check
        %p1446 = pneg %p1445
      $region86: #{tpu_custom_call.1} parent=5 // pred_check_branch
        %1448 = sbr.rel (%p1446) target = $region88
      $region87: #{tpu_custom_call.1} parent=5 // pred_region
        %s1449 = ssub.s32 %s26, 2
        // Predicated region
        $region89: #{tpu_custom_call.1} parent=87 // pred_check
          %p1450 = pneg %p259
        $region90: #{tpu_custom_call.1} parent=87 // pred_check_branch
          %1452 = sbr.rel (%p1450) target = $region92
        $region91: #{tpu_custom_call.1} parent=87 // pred_region
          %s1453 = sand.u32 %s244, 1
          %s1454 = scalar_lea.sflag [#allocation4], %s1453
          %s1455 = sand.u32 %s244, 1
          %s1456 = smul.addr %s1455, 8
          %s1457 = scalar_lea.vmem [#allocation13], %s1456
          %1458 = dma.done %s1454, 128
        $region92: #{tpu_custom_call.1} parent=87 // pred_fallthru
          _
      $region88: #{tpu_custom_call.1} parent=5 // pred_fallthru
        _
    $region6: #{tpu_custom_call.1} parent=1 // loop_footer
      %s30 = sadd.s32 1, %s26
    $region7: #{tpu_custom_call.1} parent=1 // loop_footer_branch
      %25 = sbr.rel target = $region3
    $region8: #{tpu_custom_call.1} parent=1 // loop_exit
      _
    %1459 = vsyncpa [#allocation3], 1
    %s1460 = scalar_lea.sflag [#allocation3], 1
    %1461 = vsyncpa %s1460, 1
    %1462 = vsyncpa [#allocation6], 1
    %s1463 = scalar_lea.sflag [#allocation6], 1
    %1464 = vsyncpa %s1463, 1
    %1465 = vsyncpa [#allocation9], 1
    %1466 = vsyncpa [#allocation12], 1
    %1467 = vsyncpa [#allocation4], 1
    %s1468 = scalar_lea.sflag [#allocation4], 1
    %1469 = vsyncpa %s1468, 1

// kernel: tpu_custom_call.1
$region0: #{tpu_custom_call.1}
  #allocation0 [shape = 'u32[]', space=smem, size = 0x4, offset = 0x4, fixed_abs, tag = 'smem constant byte address 0x4 - core index']
  #allocation1 [shape = 'u32[144,128]{1,0:T(1,128)}', space=vmem, size = 0x12000, scoped, tag = 'internal scratch']
  %s0 = inlined_call_operand.hbm [shape: f32[2,8,128], index: 0, kind: input, shape index: {}]
  %s1 = inlined_call_operand.hbm [shape: f32[2,8,128], index: 1, kind: input, shape index: {}]
  %s2 = inlined_call_operand.hbm [shape: f32[2,8,128], index: 2, kind: input, shape index: {}]
  %s3 = inlined_call_operand.hbm [shape: f32[128,128], index: 3, kind: input, shape index: {}]
  %s4 = inlined_call_operand.vmem [shape: f32[1,128], index: 4, kind: input, shape index: {}]
  %s5 = inlined_call_operand.hbm [shape: f32[128,128], index: 5, kind: input, shape index: {}]
  %s6 = inlined_call_operand.vmem [shape: f32[1,128], index: 6, kind: input, shape index: {}]
  %s7 = inlined_call_operand.hbm [shape: f32[128,128], index: 7, kind: input, shape index: {}]
  %s8 = inlined_call_operand.vmem [shape: f32[1,128], index: 8, kind: input, shape index: {}]
  %s9 = inlined_call_operand.hbm [shape: f32[2,8,128], index: 9, kind: output, shape index: {}]
  %s10 = sld [smem:[#allocation0]]
  $region93: #{tpu_custom_call.1} parent=0
    _
  %s12 = ssub.s32 1, %s10
  %s13 = scalar_select 0, %s12, %s10
  $region1: #{tpu_custom_call.1} parent=0
    #allocation2 [shape = 'u8[8192]{0}', space=vmem, size = 0x2000, scoped, tag = 'input window, operand 0']
    #allocation3 [shape = 's32[2]{0}', space=sflag, size = 0x8, scoped, tag = 'scoped memory for tpu_custom_call.1']
    #allocation4 [shape = 's32[2]{0}', space=sflag, size = 0x8, scoped, tag = 'scoped memory for tpu_custom_call.1']
    #allocation5 [shape = 'u8[8192]{0}', space=vmem, size = 0x2000, scoped, tag = 'input window, operand 1']
    #allocation6 [shape = 's32[2]{0}', space=sflag, size = 0x8, scoped, tag = 'scoped memory for tpu_custom_call.1']
    #allocation7 [shape = 'u8[8192]{0}', space=vmem, size = 0x2000, scoped, tag = 'input window, operand 2']
    #allocation8 [shape = 'u8[65536]{0}', space=vmem, size = 0x10000, scoped, tag = 'input window, operand 3, single buffered']
    #allocation9 [shape = 's32[1]{0}', space=sflag, size = 0x4, scoped, tag = 'scoped memory for tpu_custom_call.1']
    #allocation10 [shape = 'u8[65536]{0}', space=vmem, size = 0x10000, scoped, tag = 'input window, operand 5, single buffered']
    #allocation11 [shape = 'u8[65536]{0}', space=vmem, size = 0x10000, scoped, tag = 'input window, operand 7, single buffered']
    #allocation12 [shape = 's32[1]{0}', space=sflag, size = 0x4, scoped, tag = 'scoped memory for tpu_custom_call.1']
    #allocation13 [shape = 'u8[8192]{0}', space=vmem, size = 0x2000, scoped, tag = 'output window, operand 0']
    %14 = vsyncpa [#allocation3], 0
    %s15 = scalar_lea.sflag [#allocation3], 1
    %16 = vsyncpa %s15, 0
    %17 = vsyncpa [#allocation6], 0
    %s18 = scalar_lea.sflag [#allocation6], 1
    %19 = vsyncpa %s18, 0
    %20 = vsyncpa [#allocation9], 0
    %21 = vsyncpa [#allocation12], 0
    %22 = vsyncpa [#allocation4], 0
    %s23 = scalar_lea.sflag [#allocation4], 1
    %24 = vsyncpa %s23, 0
    loop: start=0, step=1, limit=4
    $region2: #{tpu_custom_call.1} parent=1 // loop_pre_header
      _
    $region3: #{tpu_custom_call.1} parent=1 // loop_header
      %s26 = sphi 0, %s30
      %p27 = scmp.ge.s32.totalorder %s26, 4
      %s36 = sphi 0, %s38
      %s39 = sphi 0, %s36
      %s40 = sphi 0, %s39
      %s56 = sphi 0, %s40
      %s62 = sphi 0, %s64
      %s65 = sphi 0, %s62
      %s66 = sphi 0, %s65
      %s82 = sphi 0, %s66
      %s88 = sphi 0, %s90
      %s91 = sphi 0, %s88
      %s92 = sphi 0, %s91
      %s108 = sphi 0, %s92
      %s112 = sphi 0, %s112
      %s114 = sphi 0, %s112
      %s115 = sphi 0, %s114
      %s129 = sphi 0, %s115
      %s133 = sphi 0, %s133
      %s135 = sphi 0, %s133
      %s136 = sphi 0, %s135
      %s150 = sphi 0, %s136
      %s154 = sphi 0, %s154
      %s156 = sphi 0, %s154
      %s157 = sphi 0, %s156
      %s171 = sphi 0, %s157
      %s175 = sphi 0, %s175
      %s177 = sphi 0, %s175
      %s178 = sphi 0, %s177
      %s192 = sphi 0, %s178
      %s196 = sphi 0, %s196
      %s198 = sphi 0, %s196
      %s199 = sphi 0, %s198
      %s213 = sphi 0, %s199
      %s217 = sphi 0, %s217
      %s219 = sphi 0, %s217
      %s220 = sphi 0, %s219
      %s234 = sphi 0, %s220
      %s240 = sphi 0, %s242
      %s243 = sphi 0, %s240
      %s244 = sphi 0, %s243
      %s260 = sphi 0, %s244
    $region4: #{tpu_custom_call.1} parent=1 // loop_header_branch
      %29 = sbr.rel (%p27) target = $region8
    $region5: #{tpu_custom_call.1} parent=1 // loop_body
      %s31 = ssub.s32 %s26, 1
      %s32 = ssub.s32 %s26, 2
      %s33 = sadd.s32 %s26, 1
      %s34 = ssub.s32 %s26, %s33
      %p35 = scmp.eq.s32.totalorder %s34, 0
      %s37 = sadd.s32 %s36, 1
      %s38 = scalar_select %p35, %s36, %s37
      %p41 = pneg %p35
      %p42 = scmp.eq.s32.totalorder %s26, 1
      %p43 = por %p41, %p42
      %p44 = scmp.ne.s32.totalorder %s36, %s39
      %p45 = scmp.eq.s32.totalorder %s26, 0
      %p46 = por %p44, %p45
      %p47 = scmp.ne.s32.totalorder %s36, %s39
      %p48 = scmp.eq.s32.totalorder %s31, 1
      %p49 = por %p47, %p48
      %p50 = scmp.ne.s32.totalorder %s39, %s40
      %p51 = scmp.eq.s32.totalorder %s31, 0
      %p52 = por %p50, %p51
      %p53 = scmp.ne.s32.totalorder %s39, %s40
      %p54 = scmp.eq.s32.totalorder %s32, 1
      %p55 = por %p53, %p54
      %p57 = scmp.ne.s32.totalorder %s40, %s56
      %p58 = scmp.eq.s32.totalorder %s32, 0
      %p59 = por %p57, %p58
      %s60 = ssub.s32 %s26, %s33
      %p61 = scmp.eq.s32.totalorder %s60, 0
      %s63 = sadd.s32 %s62, 1
      %s64 = scalar_select %p61, %s62, %s63
      %p67 = pneg %p61
      %p68 = scmp.eq.s32.totalorder %s26, 1
      %p69 = por %p67, %p68
      %p70 = scmp.ne.s32.totalorder %s62, %s65
      %p71 = scmp.eq.s32.totalorder %s26, 0
      %p72 = por %p70, %p71
      %p73 = scmp.ne.s32.totalorder %s62, %s65
      %p74 = scmp.eq.s32.totalorder %s31, 1
      %p75 = por %p73, %p74
      %p76 = scmp.ne.s32.totalorder %s65, %s66
      %p77 = scmp.eq.s32.totalorder %s31, 0
      %p78 = por %p76, %p77
      %p79 = scmp.ne.s32.totalorder %s65, %s66
      %p80 = scmp.eq.s32.totalorder %s32, 1
      %p81 = por %p79, %p80
      %p83 = scmp.ne.s32.totalorder %s66, %s82
      %p84 = scmp.eq.s32.totalorder %s32, 0
      %p85 = por %p83, %p84
      %s86 = ssub.s32 %s26, %s33
      %p87 = scmp.eq.s32.totalorder %s86, 0
      %s89 = sadd.s32 %s88, 1
      %s90 = scalar_select %p87, %s88, %s89
      %p93 = pneg %p87
      %p94 = scmp.eq.s32.totalorder %s26, 1
      %p95 = por %p93, %p94
      %p96 = scmp.ne.s32.totalorder %s88, %s91
      %p97 = scmp.eq.s32.totalorder %s26, 0
      %p98 = por %p96, %p97
      %p99 = scmp.ne.s32.totalorder %s88, %s91
      %p100 = scmp.eq.s32.totalorder %s31, 1
      %p101 = por %p99, %p100
      %p102 = scmp.ne.s32.totalorder %s91, %s92
      %p103 = scmp.eq.s32.totalorder %s31, 0
      %p104 = por %p102, %p103
      %p105 = scmp.ne.s32.totalorder %s91, %s92
      %p106 = scmp.eq.s32.totalorder %s32, 1
      %p107 = por %p105, %p106
      %p109 = scmp.ne.s32.totalorder %s92, %s108
      %p110 = scmp.eq.s32.totalorder %s32, 0
      %p111 = por %p109, %p110
      %s113 = sadd.s32 %s112, 1
      %p116 = scmp.eq.s32.totalorder %s26, 1
      %p117 = scmp.ne.s32.totalorder %s112, %s114
      %p118 = scmp.eq.s32.totalorder %s26, 0
      %p119 = por %p117, %p118
      %p120 = scmp.ne.s32.totalorder %s112, %s114
      %p121 = scmp.eq.s32.totalorder %s31, 1
      %p122 = por %p120, %p121
      %p123 = scmp.ne.s32.totalorder %s114, %s115
      %p124 = scmp.eq.s32.totalorder %s31, 0
      %p125 = por %p123, %p124
      %p126 = scmp.ne.s32.totalorder %s114, %s115
      %p127 = scmp.eq.s32.totalorder %s32, 1
      %p128 = por %p126, %p127
      %p130 = scmp.ne.s32.totalorder %s115, %s129
      %p131 = scmp.eq.s32.totalorder %s32, 0
      %p132 = por %p130, %p131
      %s134 = sadd.s32 %s133, 1
      %p137 = scmp.eq.s32.totalorder %s26, 1
      %p138 = scmp.ne.s32.totalorder %s133, %s135
      %p139 = scmp.eq.s32.totalorder %s26, 0
      %p140 = por %p138, %p139
      %p141 = scmp.ne.s32.totalorder %s133, %s135
      %p142 = scmp.eq.s32.totalorder %s31, 1
      %p143 = por %p141, %p142
      %p144 = scmp.ne.s32.totalorder %s135, %s136
      %p145 = scmp.eq.s32.totalorder %s31, 0
      %p146 = por %p144, %p145
      %p147 = scmp.ne.s32.totalorder %s135, %s136
      %p148 = scmp.eq.s32.totalorder %s32, 1
      %p149 = por %p147, %p148
      %p151 = scmp.ne.s32.totalorder %s136, %s150
      %p152 = scmp.eq.s32.totalorder %s32, 0
      %p153 = por %p151, %p152
      %s155 = sadd.s32 %s154, 1
      %p158 = scmp.eq.s32.totalorder %s26, 1
      %p159 = scmp.ne.s32.totalorder %s154, %s156
      %p160 = scmp.eq.s32.totalorder %s26, 0
      %p161 = por %p159, %p160
      %p162 = scmp.ne.s32.totalorder %s154, %s156
      %p163 = scmp.eq.s32.totalorder %s31, 1
      %p164 = por %p162, %p163
      %p165 = scmp.ne.s32.totalorder %s156, %s157
      %p166 = scmp.eq.s32.totalorder %s31, 0
      %p167 = por %p165, %p166
      %p168 = scmp.ne.s32.totalorder %s156, %s157
      %p169 = scmp.eq.s32.totalorder %s32, 1
      %p170 = por %p168, %p169
      %p172 = scmp.ne.s32.totalorder %s157, %s171
      %p173 = scmp.eq.s32.totalorder %s32, 0
      %p174 = por %p172, %p173
      %s176 = sadd.s32 %s175, 1
      %p179 = scmp.eq.s32.totalorder %s26, 1
      %p180 = scmp.ne.s32.totalorder %s175, %s177
      %p181 = scmp.eq.s32.totalorder %s26, 0
      %p182 = por %p180, %p181
      %p183 = scmp.ne.s32.totalorder %s175, %s177
      %p184 = scmp.eq.s32.totalorder %s31, 1
      %p185 = por %p183, %p184
      %p186 = scmp.ne.s32.totalorder %s177, %s178
      %p187 = scmp.eq.s32.totalorder %s31, 0
      %p188 = por %p186, %p187
      %p189 = scmp.ne.s32.totalorder %s177, %s178
      %p190 = scmp.eq.s32.totalorder %s32, 1
      %p191 = por %p189, %p190
      %p193 = scmp.ne.s32.totalorder %s178, %s192
      %p194 = scmp.eq.s32.totalorder %s32, 0
      %p195 = por %p193, %p194
      %s197 = sadd.s32 %s196, 1
      %p200 = scmp.eq.s32.totalorder %s26, 1
      %p201 = scmp.ne.s32.totalorder %s196, %s198
      %p202 = scmp.eq.s32.totalorder %s26, 0
      %p203 = por %p201, %p202
      %p204 = scmp.ne.s32.totalorder %s196, %s198
      %p205 = scmp.eq.s32.totalorder %s31, 1
      %p206 = por %p204, %p205
      %p207 = scmp.ne.s32.totalorder %s198, %s199
      %p208 = scmp.eq.s32.totalorder %s31, 0
      %p209 = por %p207, %p208
      %p210 = scmp.ne.s32.totalorder %s198, %s199
      %p211 = scmp.eq.s32.totalorder %s32, 1
      %p212 = por %p210, %p211
      %p214 = scmp.ne.s32.totalorder %s199, %s213
      %p215 = scmp.eq.s32.totalorder %s32, 0
      %p216 = por %p214, %p215
      %s218 = sadd.s32 %s217, 1
      %p221 = scmp.eq.s32.totalorder %s26, 1
      %p222 = scmp.ne.s32.totalorder %s217, %s219
      %p223 = scmp.eq.s32.totalorder %s26, 0
      %p224 = por %p222, %p223
      %p225 = scmp.ne.s32.totalorder %s217, %s219
      %p226 = scmp.eq.s32.totalorder %s31, 1
      %p227 = por %p225, %p226
      %p228 = scmp.ne.s32.totalorder %s219, %s220
      %p229 = scmp.eq.s32.totalorder %s31, 0
      %p230 = por %p228, %p229
      %p231 = scmp.ne.s32.totalorder %s219, %s220
      %p232 = scmp.eq.s32.totalorder %s32, 1
      %p233 = por %p231, %p232
      %p235 = scmp.ne.s32.totalorder %s220, %s234
      %p236 = scmp.eq.s32.totalorder %s32, 0
      %p237 = por %p235, %p236
      %s238 = ssub.s32 %s26, %s33
      %p239 = scmp.eq.s32.totalorder %s238, 0
      %s241 = sadd.s32 %s240, 1
      %s242 = scalar_select %p239, %s240, %s241
      %p245 = pneg %p239
      %p246 = scmp.eq.s32.totalorder %s26, 1
      %p247 = por %p245, %p246
      %p248 = scmp.ne.s32.totalorder %s240, %s243
      %p249 = scmp.eq.s32.totalorder %s26, 0
      %p250 = por %p248, %p249
      %p251 = scmp.ne.s32.totalorder %s240, %s243
      %p252 = scmp.eq.s32.totalorder %s31, 1
      %p253 = por %p251, %p252
      %p254 = scmp.ne.s32.totalorder %s243, %s244
      %p255 = scmp.eq.s32.totalorder %s31, 0
      %p256 = por %p254, %p255
      %p257 = scmp.ne.s32.totalorder %s243, %s244
      %p258 = scmp.eq.s32.totalorder %s32, 1
      %p259 = por %p257, %p258
      %p261 = scmp.ne.s32.totalorder %s244, %s260
      %p262 = scmp.eq.s32.totalorder %s32, 0
      %p263 = por %p261, %p262
      %p264 = scmp.le.s32.totalorder 1, %s26
      %p265 = scmp.lt.s32.totalorder %s26, 3
      %p266 = pnand %p264, %p265
      %p267 = pneg %p266
      // Predicated region
      $region9: #{tpu_custom_call.1} parent=5 // pred_check
        _
      $region10: #{tpu_custom_call.1} parent=5 // pred_check_branch
        %269 = sbr.rel (%p266) target = $region12
      $region11: #{tpu_custom_call.1} parent=5 // pred_region
        %s270 = ssub.s32 %s26, 1
        // Predicated region
        $region13: #{tpu_custom_call.1} parent=11 // pred_check
          %p271 = pneg %p125
        $region14: #{tpu_custom_call.1} parent=11 // pred_check_branch
          %273 = sbr.rel (%p271) target = $region16
        $region15: #{tpu_custom_call.1} parent=11 // pred_region
          %s275 = ssub.s32 2048, 2048
          %276 = vsyncadd [#allocation9], %s275
          %s277 = sshll.u32 [#allocation8], 4
          %s278 = int_to_ptr.vmem [resolvable:$true] %s277
          %283 = dma.hbm_to_vmem [thread:$0]  %s3, 2048, %s278, [#allocation9], 128, 128, 8
        $region16: #{tpu_custom_call.1} parent=11 // pred_fallthru
          _
        // Predicated region
        $region17: #{tpu_custom_call.1} parent=11 // pred_check
          %p284 = pneg %p146
        $region18: #{tpu_custom_call.1} parent=11 // pred_check_branch
          %286 = sbr.rel (%p284) target = $region20
        $region19: #{tpu_custom_call.1} parent=11 // pred_region
          _
        $region20: #{tpu_custom_call.1} parent=11 // pred_fallthru
          _
        // Predicated region
        $region21: #{tpu_custom_call.1} parent=11 // pred_check
          %p287 = pneg %p167
        $region22: #{tpu_custom_call.1} parent=11 // pred_check_branch
          %289 = sbr.rel (%p287) target = $region24
        $region23: #{tpu_custom_call.1} parent=11 // pred_region
          %s291 = ssub.s32 2048, 2048
          %292 = vsyncadd [#allocation9], %s291
          %s293 = sshll.u32 [#allocation10], 4
          %s294 = int_to_ptr.vmem [resolvable:$true] %s293
          %299 = dma.hbm_to_vmem [thread:$0]  %s5, 2048, %s294, [#allocation9], 128, 128, 8
        $region24: #{tpu_custom_call.1} parent=11 // pred_fallthru
          _
        // Predicated region
        $region25: #{tpu_custom_call.1} parent=11 // pred_check
          %p300 = pneg %p188
        $region26: #{tpu_custom_call.1} parent=11 // pred_check_branch
          %302 = sbr.rel (%p300) target = $region28
        $region27: #{tpu_custom_call.1} parent=11 // pred_region
          _
        $region28: #{tpu_custom_call.1} parent=11 // pred_fallthru
          _
        // Predicated region
        $region29: #{tpu_custom_call.1} parent=11 // pred_check
          %p303 = pneg %p209
        $region30: #{tpu_custom_call.1} parent=11 // pred_check_branch
          %305 = sbr.rel (%p303) target = $region32
        $region31: #{tpu_custom_call.1} parent=11 // pred_region
          %s307 = ssub.s32 2048, 2048
          %308 = vsyncadd [#allocation12], %s307
          %s309 = sshll.u32 [#allocation11], 4
          %s310 = int_to_ptr.vmem [resolvable:$true] %s309
          %315 = dma.hbm_to_vmem [thread:$0]  %s7, 2048, %s310, [#allocation12], 128, 128, 8
        $region32: #{tpu_custom_call.1} parent=11 // pred_fallthru
          _
        // Predicated region
        $region33: #{tpu_custom_call.1} parent=11 // pred_check
          %p316 = pneg %p230
        $region34: #{tpu_custom_call.1} parent=11 // pred_check_branch
          %318 = sbr.rel (%p316) target = $region36
        $region35: #{tpu_custom_call.1} parent=11 // pred_region
          _
        $region36: #{tpu_custom_call.1} parent=11 // pred_fallthru
          _
      $region12: #{tpu_custom_call.1} parent=5 // pred_fallthru
        _
      %p319 = scmp.lt.s32.totalorder %s26, 2
      // Predicated region
      $region37: #{tpu_custom_call.1} parent=5 // pred_check
        %p320 = pneg %p319
      $region38: #{tpu_custom_call.1} parent=5 // pred_check_branch
        %322 = sbr.rel (%p320) target = $region40
      $region39: #{tpu_custom_call.1} parent=5 // pred_region
        // Predicated region
        $region41: #{tpu_custom_call.1} parent=39 // pred_check
          %p323 = pneg %p46
        $region42: #{tpu_custom_call.1} parent=39 // pred_check_branch
          %325 = sbr.rel (%p323) target = $region44
        $region43: #{tpu_custom_call.1} parent=39 // pred_region
          %s326 = sand.u32 %s36, 1
          %s327 = scalar_lea.sflag [#allocation3], %s326
          %s328 = sand.u32 %s36, 1
          %s329 = smul.addr %s328, 8
          %s330 = scalar_lea.vmem [#allocation2], %s329
          %s332 = ssub.s32 128, 128
          %333 = vsyncadd %s327, %s332
          %s334 = smul.addr %s26, 128
          %s335 = scalar_lea.hbm %s0, %s334
          %s337 = sshll.u32 %s330, 4
          %s338 = int_to_ptr.vmem [resolvable:$true] %s337
          %340 = dma.hbm_to_vmem [thread:$0]  %s335, 128, %s338, %s327
        $region44: #{tpu_custom_call.1} parent=39 // pred_fallthru
          _
        // Predicated region
        $region45: #{tpu_custom_call.1} parent=39 // pred_check
          %p341 = pneg %p72
        $region46: #{tpu_custom_call.1} parent=39 // pred_check_branch
          %343 = sbr.rel (%p341) target = $region48
        $region47: #{tpu_custom_call.1} parent=39 // pred_region
          %s344 = sand.u32 %s26, 1
          %s345 = scalar_lea.sflag [#allocation6], %s344
          %s346 = sand.u32 %s62, 1
          %s347 = smul.addr %s346, 8
          %s348 = scalar_lea.vmem [#allocation5], %s347
          %s350 = ssub.s32 128, 128
          %351 = vsyncadd %s345, %s350
          %s352 = smul.addr %s26, 128
          %s353 = scalar_lea.hbm %s1, %s352
          %s355 = sshll.u32 %s348, 4
          %s356 = int_to_ptr.vmem [resolvable:$true] %s355
          %358 = dma.hbm_to_vmem [thread:$0]  %s353, 128, %s356, %s345
        $region48: #{tpu_custom_call.1} parent=39 // pred_fallthru
          _
        // Predicated region
        $region49: #{tpu_custom_call.1} parent=39 // pred_check
          %p359 = pneg %p98
        $region50: #{tpu_custom_call.1} parent=39 // pred_check_branch
          %361 = sbr.rel (%p359) target = $region52
        $region51: #{tpu_custom_call.1} parent=39 // pred_region
          %s362 = sand.u32 %s26, 1
          %s363 = scalar_lea.sflag [#allocation6], %s362
          %s364 = sand.u32 %s88, 1
          %s365 = smul.addr %s364, 8
          %s366 = scalar_lea.vmem [#allocation7], %s365
          %s368 = ssub.s32 128, 128
          %369 = vsyncadd %s363, %s368
          %s370 = smul.addr %s26, 128
          %s371 = scalar_lea.hbm %s2, %s370
          %s373 = sshll.u32 %s366, 4
          %s374 = int_to_ptr.vmem [resolvable:$true] %s373
          %376 = dma.hbm_to_vmem [thread:$0]  %s371, 128, %s374, %s363
        $region52: #{tpu_custom_call.1} parent=39 // pred_fallthru
          _
      $region40: #{tpu_custom_call.1} parent=5 // pred_fallthru
        _
      %p377 = scmp.le.s32.totalorder 1, %s26
      %p378 = scmp.lt.s32.totalorder %s26, 3
      %p379 = pnand %p377, %p378
      %p380 = pneg %p379
      // Predicated region
      $region53: #{tpu_custom_call.1} parent=5 // pred_check
        _
      $region54: #{tpu_custom_call.1} parent=5 // pred_check_branch
        %382 = sbr.rel (%p379) target = $region56
      $region55: #{tpu_custom_call.1} parent=5 // pred_region
        %s383 = ssub.s32 %s26, 1
        %s384 = sand.u32 %s39, 1
        %s385 = scalar_lea.sflag [#allocation3], %s384
        %s386 = sand.u32 %s39, 1
        %s387 = smul.addr %s386, 8
        %s388 = scalar_lea.vmem [#allocation2], %s387
        // Predicated region
        $region57: #{tpu_custom_call.1} parent=55 // pred_check
          %p389 = pneg %p52
        $region58: #{tpu_custom_call.1} parent=55 // pred_check_branch
          %391 = sbr.rel (%p389) target = $region60
        $region59: #{tpu_custom_call.1} parent=55 // pred_region
          %392 = dma.done %s385, 128
        $region60: #{tpu_custom_call.1} parent=55 // pred_fallthru
          _
        %s393 = sand.u32 %s31, 1
        %s394 = scalar_lea.sflag [#allocation6], %s393
        %s395 = sand.u32 %s65, 1
        %s396 = smul.addr %s395, 8
        %s397 = scalar_lea.vmem [#allocation5], %s396
        // Predicated region
        $region61: #{tpu_custom_call.1} parent=55 // pred_check
          %p398 = pneg %p78
        $region62: #{tpu_custom_call.1} parent=55 // pred_check_branch
          %400 = sbr.rel (%p398) target = $region64
        $region63: #{tpu_custom_call.1} parent=55 // pred_region
          %401 = dma.done %s394, 128
        $region64: #{tpu_custom_call.1} parent=55 // pred_fallthru
          _
        %s402 = sand.u32 %s31, 1
        %s403 = scalar_lea.sflag [#allocation6], %s402
        %s404 = sand.u32 %s91, 1
        %s405 = smul.addr %s404, 8
        %s406 = scalar_lea.vmem [#allocation7], %s405
        // Predicated region
        $region65: #{tpu_custom_call.1} parent=55 // pred_check
          %p407 = pneg %p104
        $region66: #{tpu_custom_call.1} parent=55 // pred_check_branch
          %409 = sbr.rel (%p407) target = $region68
        $region67: #{tpu_custom_call.1} parent=55 // pred_region
          %410 = dma.done %s403, 128
        $region68: #{tpu_custom_call.1} parent=55 // pred_fallthru
          _
        // Predicated region
        $region69: #{tpu_custom_call.1} parent=55 // pred_check
          %p411 = pneg %p125
        $region70: #{tpu_custom_call.1} parent=55 // pred_check_branch
          %413 = sbr.rel (%p411) target = $region72
        $region71: #{tpu_custom_call.1} parent=55 // pred_region
          %414 = dma.done [#allocation9], 2048
        $region72: #{tpu_custom_call.1} parent=55 // pred_fallthru
          _
        // Predicated region
        $region73: #{tpu_custom_call.1} parent=55 // pred_check
          %p415 = pneg %p167
        $region74: #{tpu_custom_call.1} parent=55 // pred_check_branch
          %417 = sbr.rel (%p415) target = $region76
        $region75: #{tpu_custom_call.1} parent=55 // pred_region
          %418 = dma.done [#allocation9], 2048
        $region76: #{tpu_custom_call.1} parent=55 // pred_fallthru
          _
        // Predicated region
        $region77: #{tpu_custom_call.1} parent=55 // pred_check
          %p419 = pneg %p209
        $region78: #{tpu_custom_call.1} parent=55 // pred_check_branch
          %421 = sbr.rel (%p419) target = $region80
        $region79: #{tpu_custom_call.1} parent=55 // pred_region
          %422 = dma.done [#allocation12], 2048
        $region80: #{tpu_custom_call.1} parent=55 // pred_fallthru
          _
        %s423 = sand.u32 %s39, 1
        %s424 = scalar_lea.sflag [#allocation3], %s423
        %s425 = sand.u32 %s39, 1
        %s426 = smul.addr %s425, 8
        %s427 = scalar_lea.vmem [#allocation2], %s426
        %p428 = pneg %p52
        %p429 = pneg %p49
        %s430 = sand.u32 %s31, 1
        %s431 = scalar_lea.sflag [#allocation6], %s430
        %s432 = sand.u32 %s65, 1
        %s433 = smul.addr %s432, 8
        %s434 = scalar_lea.vmem [#allocation5], %s433
        %p435 = pneg %p78
        %p436 = pneg %p75
        %s437 = sand.u32 %s31, 1
        %s438 = scalar_lea.sflag [#allocation6], %s437
        %s439 = sand.u32 %s91, 1
        %s440 = smul.addr %s439, 8
        %s441 = scalar_lea.vmem [#allocation7], %s440
        %p442 = pneg %p104
        %p443 = pneg %p101
        %p444 = pneg %p125
        %p445 = pneg %p122
        %p446 = pneg %p146
        %p447 = pneg %p143
        %p448 = pneg %p167
        %p449 = pneg %p164
        %p450 = pneg %p188
        %p451 = pneg %p185
        %p452 = pneg %p209
        %p453 = pneg %p206
        %p454 = pneg %p230
        %p455 = pneg %p227
        %p456 = pneg %p256
        %p457 = pneg %p253
        %s458 = sand.u32 %s243, 1
        %s459 = scalar_lea.sflag [#allocation4], %s458
        %s460 = sand.u32 %s243, 1
        %s461 = smul.addr %s460, 8
        %s462 = scalar_lea.vmem [#allocation13], %s461
        %v463 = vld [vmem:[%s388] sm:$0xff]
        %v464 = vld [vmem:[%s397] sm:$0xff]
        %v465 = vld [vmem:[%s406] sm:$0xff]
        %v466 = vld [vmem:[#allocation8] sm:$0xff]
        %v467 = vld [vmem:[#allocation8 + $0x8] sm:$0xff]
        %v468 = vld [vmem:[#allocation8 + $0x10] sm:$0xff]
        %v469 = vld [vmem:[#allocation8 + $0x18] sm:$0xff]
        %v470 = vld [vmem:[#allocation8 + $0x20] sm:$0xff]
        %v471 = vld [vmem:[#allocation8 + $0x28] sm:$0xff]
        %v472 = vld [vmem:[#allocation8 + $0x30] sm:$0xff]
        %v473 = vld [vmem:[#allocation8 + $0x38] sm:$0xff]
        %v474 = vld [vmem:[#allocation8 + $0x40] sm:$0xff]
        %v475 = vld [vmem:[#allocation8 + $0x48] sm:$0xff]
        %v476 = vld [vmem:[#allocation8 + $0x50] sm:$0xff]
        %v477 = vld [vmem:[#allocation8 + $0x58] sm:$0xff]
        %v478 = vld [vmem:[#allocation8 + $0x60] sm:$0xff]
        %v479 = vld [vmem:[#allocation8 + $0x68] sm:$0xff]
        %v480 = vld [vmem:[#allocation8 + $0x70] sm:$0xff]
        %v481 = vld [vmem:[#allocation8 + $0x78] sm:$0xff]
        %v482 = vld [vmem:[%s4] sm:$0x1]
        %v484 = vlaneseq
        %v485 = vshrl.u32 %v484, 7
        %v486 = vsub.s32 0, %v485
        %v487 = vrot.slane %v482, %v486
        %489 = vmatprep.subr.mxu0 0.0
        %490 = vmatpush1.msra.mxu0 %v481
        %491 = vmatprep.subr.mxu0 0.0
        %492 = vmatpush1.msra.mxu0 %v480
        %493 = vmatprep.subr.mxu0 0.0
        %494 = vmatpush1.msra.mxu0 %v479
        %495 = vmatprep.subr.mxu0 0.0
        %496 = vmatpush1.msra.mxu0 %v478
        %497 = vmatprep.subr.mxu0 0.0
        %498 = vmatpush1.msra.mxu0 %v477
        %499 = vmatprep.subr.mxu0 0.0
        %500 = vmatpush1.msra.mxu0 %v476
        %501 = vmatprep.subr.mxu0 0.0
        %502 = vmatpush1.msra.mxu0 %v475
        %503 = vmatprep.subr.mxu0 0.0
        %504 = vmatpush1.msra.mxu0 %v474
        %505 = vmatprep.subr.mxu0 0.0
        %506 = vmatpush1.msra.mxu0 %v473
        %507 = vmatprep.subr.mxu0 0.0
        %508 = vmatpush1.msra.mxu0 %v472
        %509 = vmatprep.subr.mxu0 0.0
        %510 = vmatpush1.msra.mxu0 %v471
        %511 = vmatprep.subr.mxu0 0.0
        %512 = vmatpush1.msra.mxu0 %v470
        %513 = vmatprep.subr.mxu0 0.0
        %514 = vmatpush1.msra.mxu0 %v469
        %515 = vmatprep.subr.mxu0 0.0
        %516 = vmatpush1.msra.mxu0 %v468
        %517 = vmatprep.subr.mxu0 0.0
        %518 = vmatpush1.msra.mxu0 %v467
        %519 = vmatprep.subr.mxu0 0.0
        %520 = vmatpush1.msra.mxu0 %v466
        %521 = vmatprep.subr.mxu0 0.0
        %522 = vmatpush2.msra.mxu0 0.0
        %523 = vmatprep.subr.mxu0 0.0
        %524 = vmatpush2.msra.mxu0 0.0
        %525 = vmatprep.subr.mxu0 0.0
        %526 = vmatpush2.msra.mxu0 0.0
        %527 = vmatprep.subr.mxu0 0.0
        %528 = vmatpush2.msra.mxu0 0.0
        %529 = vmatprep.subr.mxu0 0.0
        %530 = vmatpush2.msra.mxu0 0.0
        %531 = vmatprep.subr.mxu0 0.0
        %532 = vmatpush2.msra.mxu0 0.0
        %533 = vmatprep.subr.mxu0 0.0
        %534 = vmatpush2.msra.mxu0 0.0
        %535 = vmatprep.subr.mxu0 0.0
        %536 = vmatpush2.msra.mxu0 0.0
        %537 = vmatprep.subr.mxu0 0.0
        %538 = vmatpush2.msra.mxu0 0.0
        %539 = vmatprep.subr.mxu0 0.0
        %540 = vmatpush2.msra.mxu0 0.0
        %541 = vmatprep.subr.mxu0 0.0
        %542 = vmatpush2.msra.mxu0 0.0
        %543 = vmatprep.subr.mxu0 0.0
        %544 = vmatpush2.msra.mxu0 0.0
        %545 = vmatprep.subr.mxu0 0.0
        %546 = vmatpush2.msra.mxu0 0.0
        %547 = vmatprep.subr.mxu0 0.0
        %548 = vmatpush2.msra.mxu0 0.0
        %549 = vmatprep.subr.mxu0 0.0
        %550 = vmatpush2.msra.mxu0 0.0
        %551 = vmatprep.subr.mxu0 0.0
        %552 = vmatpush2.msra.mxu0 0.0
        %553 = vmatprep.mubr.f32.mxu0 0.0
        %554 = vmatmul.mubr.f32.gmra.mxu0 %v463
        %v555 = vpop.f32.mrf.mxu0
        %v556 = vadd.f32 %v487, %v555
        %v557 = vpop.f32.mrf.mxu0
        %558 = vdwg.mxu0
        %v559 = vld [vmem:[#allocation10] sm:$0xff]
        %v560 = vld [vmem:[#allocation10 + $0x8] sm:$0xff]
        %v561 = vld [vmem:[#allocation10 + $0x10] sm:$0xff]
        %v562 = vld [vmem:[#allocation10 + $0x18] sm:$0xff]
        %v563 = vld [vmem:[#allocation10 + $0x20] sm:$0xff]
        %v564 = vld [vmem:[#allocation10 + $0x28] sm:$0xff]
        %v565 = vld [vmem:[#allocation10 + $0x30] sm:$0xff]
        %v566 = vld [vmem:[#allocation10 + $0x38] sm:$0xff]
        %v567 = vld [vmem:[#allocation10 + $0x40] sm:$0xff]
        %v568 = vld [vmem:[#allocation10 + $0x48] sm:$0xff]
        %v569 = vld [vmem:[#allocation10 + $0x50] sm:$0xff]
        %v570 = vld [vmem:[#allocation10 + $0x58] sm:$0xff]
        %v571 = vld [vmem:[#allocation10 + $0x60] sm:$0xff]
        %v572 = vld [vmem:[#allocation10 + $0x68] sm:$0xff]
        %v573 = vld [vmem:[#allocation10 + $0x70] sm:$0xff]
        %v574 = vld [vmem:[#allocation10 + $0x78] sm:$0xff]
        %v575 = vld [vmem:[%s6] sm:$0x1]
        %v577 = vlaneseq
        %v578 = vshrl.u32 %v577, 7
        %v579 = vsub.s32 0, %v578
        %v580 = vrot.slane %v575, %v579
        %582 = vmatprep.subr.mxu0 0.0
        %583 = vmatpush1.msra.mxu0 %v574
        %584 = vmatprep.subr.mxu0 0.0
        %585 = vmatpush1.msra.mxu0 %v573
        %586 = vmatprep.subr.mxu0 0.0
        %587 = vmatpush1.msra.mxu0 %v572
        %588 = vmatprep.subr.mxu0 0.0
        %589 = vmatpush1.msra.mxu0 %v571
        %590 = vmatprep.subr.mxu0 0.0
        %591 = vmatpush1.msra.mxu0 %v570
        %592 = vmatprep.subr.mxu0 0.0
        %593 = vmatpush1.msra.mxu0 %v569
        %594 = vmatprep.subr.mxu0 0.0
        %595 = vmatpush1.msra.mxu0 %v568
        %596 = vmatprep.subr.mxu0 0.0
        %597 = vmatpush1.msra.mxu0 %v567
        %598 = vmatprep.subr.mxu0 0.0
        %599 = vmatpush1.msra.mxu0 %v566
        %600 = vmatprep.subr.mxu0 0.0
        %601 = vmatpush1.msra.mxu0 %v565
        %602 = vmatprep.subr.mxu0 0.0
        %603 = vmatpush1.msra.mxu0 %v564
        %604 = vmatprep.subr.mxu0 0.0
        %605 = vmatpush1.msra.mxu0 %v563
        %606 = vmatprep.subr.mxu0 0.0
        %607 = vmatpush1.msra.mxu0 %v562
        %608 = vmatprep.subr.mxu0 0.0
        %609 = vmatpush1.msra.mxu0 %v561
        %610 = vmatprep.subr.mxu0 0.0
        %611 = vmatpush1.msra.mxu0 %v560
        %612 = vmatprep.subr.mxu0 0.0
        %613 = vmatpush1.msra.mxu0 %v559
        %614 = vmatprep.subr.mxu0 0.0
        %615 = vmatpush2.msra.mxu0 0.0
        %616 = vmatprep.subr.mxu0 0.0
        %617 = vmatpush2.msra.mxu0 0.0
        %618 = vmatprep.subr.mxu0 0.0
        %619 = vmatpush2.msra.mxu0 0.0
        %620 = vmatprep.subr.mxu0 0.0
        %621 = vmatpush2.msra.mxu0 0.0
        %622 = vmatprep.subr.mxu0 0.0
        %623 = vmatpush2.msra.mxu0 0.0
        %624 = vmatprep.subr.mxu0 0.0
        %625 = vmatpush2.msra.mxu0 0.0
        %626 = vmatprep.subr.mxu0 0.0
        %627 = vmatpush2.msra.mxu0 0.0
        %628 = vmatprep.subr.mxu0 0.0
        %629 = vmatpush2.msra.mxu0 0.0
        %630 = vmatprep.subr.mxu0 0.0
        %631 = vmatpush2.msra.mxu0 0.0
        %632 = vmatprep.subr.mxu0 0.0
        %633 = vmatpush2.msra.mxu0 0.0
        %634 = vmatprep.subr.mxu0 0.0
        %635 = vmatpush2.msra.mxu0 0.0
        %636 = vmatprep.subr.mxu0 0.0
        %637 = vmatpush2.msra.mxu0 0.0
        %638 = vmatprep.subr.mxu0 0.0
        %639 = vmatpush2.msra.mxu0 0.0
        %640 = vmatprep.subr.mxu0 0.0
        %641 = vmatpush2.msra.mxu0 0.0
        %642 = vmatprep.subr.mxu0 0.0
        %643 = vmatpush2.msra.mxu0 0.0
        %644 = vmatprep.subr.mxu0 0.0
        %645 = vmatpush2.msra.mxu0 0.0
        %646 = vmatprep.mubr.f32.mxu0 0.0
        %647 = vmatmul.mubr.f32.gmra.mxu0 %v464
        %v648 = vpop.f32.mrf.mxu0
        %v649 = vadd.f32 %v580, %v648
        %v650 = vpop.f32.mrf.mxu0
        %651 = vdwg.mxu0
        %v652 = vld [vmem:[#allocation11] sm:$0xff]
        %v653 = vld [vmem:[#allocation11 + $0x8] sm:$0xff]
        %v654 = vld [vmem:[#allocation11 + $0x10] sm:$0xff]
        %v655 = vld [vmem:[#allocation11 + $0x18] sm:$0xff]
        %v656 = vld [vmem:[#allocation11 + $0x20] sm:$0xff]
        %v657 = vld [vmem:[#allocation11 + $0x28] sm:$0xff]
        %v658 = vld [vmem:[#allocation11 + $0x30] sm:$0xff]
        %v659 = vld [vmem:[#allocation11 + $0x38] sm:$0xff]
        %v660 = vld [vmem:[#allocation11 + $0x40] sm:$0xff]
        %v661 = vld [vmem:[#allocation11 + $0x48] sm:$0xff]
        %v662 = vld [vmem:[#allocation11 + $0x50] sm:$0xff]
        %v663 = vld [vmem:[#allocation11 + $0x58] sm:$0xff]
        %v664 = vld [vmem:[#allocation11 + $0x60] sm:$0xff]
        %v665 = vld [vmem:[#allocation11 + $0x68] sm:$0xff]
        %v666 = vld [vmem:[#allocation11 + $0x70] sm:$0xff]
        %v667 = vld [vmem:[#allocation11 + $0x78] sm:$0xff]
        %v668 = vld [vmem:[%s8] sm:$0x1]
        %v670 = vlaneseq
        %v671 = vshrl.u32 %v670, 7
        %v672 = vsub.s32 0, %v671
        %v673 = vrot.slane %v668, %v672
        %675 = vmatprep.subr.mxu0 0.0
        %676 = vmatpush1.msra.mxu0 %v667
        %677 = vmatprep.subr.mxu0 0.0
        %678 = vmatpush1.msra.mxu0 %v666
        %679 = vmatprep.subr.mxu0 0.0
        %680 = vmatpush1.msra.mxu0 %v665
        %681 = vmatprep.subr.mxu0 0.0
        %682 = vmatpush1.msra.mxu0 %v664
        %683 = vmatprep.subr.mxu0 0.0
        %684 = vmatpush1.msra.mxu0 %v663
        %685 = vmatprep.subr.mxu0 0.0
        %686 = vmatpush1.msra.mxu0 %v662
        %687 = vmatprep.subr.mxu0 0.0
        %688 = vmatpush1.msra.mxu0 %v661
        %689 = vmatprep.subr.mxu0 0.0
        %690 = vmatpush1.msra.mxu0 %v660
        %691 = vmatprep.subr.mxu0 0.0
        %692 = vmatpush1.msra.mxu0 %v659
        %693 = vmatprep.subr.mxu0 0.0
        %694 = vmatpush1.msra.mxu0 %v658
        %695 = vmatprep.subr.mxu0 0.0
        %696 = vmatpush1.msra.mxu0 %v657
        %697 = vmatprep.subr.mxu0 0.0
        %698 = vmatpush1.msra.mxu0 %v656
        %699 = vmatprep.subr.mxu0 0.0
        %700 = vmatpush1.msra.mxu0 %v655
        %701 = vmatprep.subr.mxu0 0.0
        %702 = vmatpush1.msra.mxu0 %v654
        %703 = vmatprep.subr.mxu0 0.0
        %704 = vmatpush1.msra.mxu0 %v653
        %705 = vmatprep.subr.mxu0 0.0
        %706 = vmatpush1.msra.mxu0 %v652
        %707 = vmatprep.subr.mxu0 0.0
        %708 = vmatpush2.msra.mxu0 0.0
        %709 = vmatprep.subr.mxu0 0.0
        %710 = vmatpush2.msra.mxu0 0.0
        %711 = vmatprep.subr.mxu0 0.0
        %712 = vmatpush2.msra.mxu0 0.0
        %713 = vmatprep.subr.mxu0 0.0
        %714 = vmatpush2.msra.mxu0 0.0
        %715 = vmatprep.subr.mxu0 0.0
        %716 = vmatpush2.msra.mxu0 0.0
        %717 = vmatprep.subr.mxu0 0.0
        %718 = vmatpush2.msra.mxu0 0.0
        %719 = vmatprep.subr.mxu0 0.0
        %720 = vmatpush2.msra.mxu0 0.0
        %721 = vmatprep.subr.mxu0 0.0
        %722 = vmatpush2.msra.mxu0 0.0
        %723 = vmatprep.subr.mxu0 0.0
        %724 = vmatpush2.msra.mxu0 0.0
        %725 = vmatprep.subr.mxu0 0.0
        %726 = vmatpush2.msra.mxu0 0.0
        %727 = vmatprep.subr.mxu0 0.0
        %728 = vmatpush2.msra.mxu0 0.0
        %729 = vmatprep.subr.mxu0 0.0
        %730 = vmatpush2.msra.mxu0 0.0
        %731 = vmatprep.subr.mxu0 0.0
        %732 = vmatpush2.msra.mxu0 0.0
        %733 = vmatprep.subr.mxu0 0.0
        %734 = vmatpush2.msra.mxu0 0.0
        %735 = vmatprep.subr.mxu0 0.0
        %736 = vmatpush2.msra.mxu0 0.0
        %737 = vmatprep.subr.mxu0 0.0
        %738 = vmatpush2.msra.mxu0 0.0
        %739 = vmatprep.mubr.f32.mxu0 0.0
        %740 = vmatmul.mubr.f32.gmra.mxu0 %v465
        %v741 = vpop.f32.mrf.mxu0
        %v742 = vadd.f32 %v673, %v741
        %v743 = vpop.f32.mrf.mxu0
        %744 = vdwg.mxu0
        %v745 = vmax.f32 %v742, 0.0
        %vm746 = vcmask 64512
        %v748 = vsel %vm746, %v556, 0
        %v751 = vsel %vm746, %v649, 0
        %753 = vmatprep.subr.mxu0 0.0
        %754 = vmatpush1.xpose.msra.mxu0 0.0
        %755 = vmatprep.subr.mxu0 0.0
        %756 = vmatpush1.xpose.msra.mxu0 0.0
        %757 = vmatprep.subr.mxu0 0.0
        %758 = vmatpush1.xpose.msra.mxu0 0.0
        %759 = vmatprep.subr.mxu0 0.0
        %760 = vmatpush1.xpose.msra.mxu0 0.0
        %761 = vmatprep.subr.mxu0 0.0
        %762 = vmatpush1.xpose.msra.mxu0 0.0
        %763 = vmatprep.subr.mxu0 0.0
        %764 = vmatpush1.xpose.msra.mxu0 0.0
        %765 = vmatprep.subr.mxu0 0.0
        %766 = vmatpush1.xpose.msra.mxu0 0.0
        %767 = vmatprep.subr.mxu0 0.0
        %768 = vmatpush1.xpose.msra.mxu0 0.0
        %769 = vmatprep.subr.mxu0 0.0
        %770 = vmatpush1.xpose.msra.mxu0 0.0
        %771 = vmatprep.subr.mxu0 0.0
        %772 = vmatpush1.xpose.msra.mxu0 0.0
        %773 = vmatprep.subr.mxu0 0.0
        %774 = vmatpush1.xpose.msra.mxu0 0.0
        %775 = vmatprep.subr.mxu0 0.0
        %776 = vmatpush1.xpose.msra.mxu0 0.0
        %777 = vmatprep.subr.mxu0 0.0
        %778 = vmatpush1.xpose.msra.mxu0 0.0
        %779 = vmatprep.subr.mxu0 0.0
        %780 = vmatpush1.xpose.msra.mxu0 0.0
        %781 = vmatprep.subr.mxu0 0.0
        %782 = vmatpush1.xpose.msra.mxu0 0.0
        %783 = vmatprep.subr.mxu0 0.0
        %784 = vmatpush1.xpose.msra.mxu0 %v751
        %785 = vmatprep.subr.mxu0 0.0
        %786 = vmatpush2.xpose.msra.mxu0 0.0
        %787 = vmatprep.subr.mxu0 0.0
        %788 = vmatpush2.xpose.msra.mxu0 0.0
        %789 = vmatprep.subr.mxu0 0.0
        %790 = vmatpush2.xpose.msra.mxu0 0.0
        %791 = vmatprep.subr.mxu0 0.0
        %792 = vmatpush2.xpose.msra.mxu0 0.0
        %793 = vmatprep.subr.mxu0 0.0
        %794 = vmatpush2.xpose.msra.mxu0 0.0
        %795 = vmatprep.subr.mxu0 0.0
        %796 = vmatpush2.xpose.msra.mxu0 0.0
        %797 = vmatprep.subr.mxu0 0.0
        %798 = vmatpush2.xpose.msra.mxu0 0.0
        %799 = vmatprep.subr.mxu0 0.0
        %800 = vmatpush2.xpose.msra.mxu0 0.0
        %801 = vmatprep.subr.mxu0 0.0
        %802 = vmatpush2.xpose.msra.mxu0 0.0
        %803 = vmatprep.subr.mxu0 0.0
        %804 = vmatpush2.xpose.msra.mxu0 0.0
        %805 = vmatprep.subr.mxu0 0.0
        %806 = vmatpush2.xpose.msra.mxu0 0.0
        %807 = vmatprep.subr.mxu0 0.0
        %808 = vmatpush2.xpose.msra.mxu0 0.0
        %809 = vmatprep.subr.mxu0 0.0
        %810 = vmatpush2.xpose.msra.mxu0 0.0
        %811 = vmatprep.subr.mxu0 0.0
        %812 = vmatpush2.xpose.msra.mxu0 0.0
        %813 = vmatprep.subr.mxu0 0.0
        %814 = vmatpush2.xpose.msra.mxu0 0.0
        %815 = vmatprep.subr.mxu0 0.0
        %816 = vmatpush2.xpose.msra.mxu0 0.0
        %817 = vmatprep.mubr.f32.mxu0 0.0
        %818 = vmatmul.mubr.f32.gmra.mxu0 %v748
        %v819 = vpop.f32.mrf.mxu0
        %v820 = vadd.f32 0.0, %v819
        %v821 = vpop.f32.mrf.mxu0
        %822 = vdwg.mxu0
        %v823 = vmul.f32 %v820, 0.35355338
        %v824 = vsel %vm746, %v823, -inf
        %825 = vmax.xlane.f32.xlu0 %v824
        %v826 = vpop.xlane.xlu0 %825
        %v827 = vsub.f32 %v823, %v826
        %v828 = vmul.f32 %v827, 1.442695
        %v829 = vpow.pop %v828
        %v830 = vsel %vm746, %v829, 0.0
        %831 = vadd.xlane.f32.xlu0 %v830
        %v832 = vpop.xlane.xlu0 %831
        %v833 = vrcp.pop %v832
        %v834 = vmul.f32 %v829, %v833
        %v836 = vsel %vm746, %v834, 0
        %838 = vmatprep.subr.mxu0 0.0
        %839 = vmatpush1.msra.mxu0 0.0
        %840 = vmatprep.subr.mxu0 0.0
        %841 = vmatpush1.msra.mxu0 0.0
        %842 = vmatprep.subr.mxu0 0.0
        %843 = vmatpush1.msra.mxu0 0.0
        %844 = vmatprep.subr.mxu0 0.0
        %845 = vmatpush1.msra.mxu0 0.0
        %846 = vmatprep.subr.mxu0 0.0
        %847 = vmatpush1.msra.mxu0 0.0
        %848 = vmatprep.subr.mxu0 0.0
        %849 = vmatpush1.msra.mxu0 0.0
        %850 = vmatprep.subr.mxu0 0.0
        %851 = vmatpush1.msra.mxu0 0.0
        %852 = vmatprep.subr.mxu0 0.0
        %853 = vmatpush1.msra.mxu0 0.0
        %854 = vmatprep.subr.mxu0 0.0
        %855 = vmatpush1.msra.mxu0 0.0
        %856 = vmatprep.subr.mxu0 0.0
        %857 = vmatpush1.msra.mxu0 0.0
        %858 = vmatprep.subr.mxu0 0.0
        %859 = vmatpush1.msra.mxu0 0.0
        %860 = vmatprep.subr.mxu0 0.0
        %861 = vmatpush1.msra.mxu0 0.0
        %862 = vmatprep.subr.mxu0 0.0
        %863 = vmatpush1.msra.mxu0 0.0
        %864 = vmatprep.subr.mxu0 0.0
        %865 = vmatpush1.msra.mxu0 0.0
        %866 = vmatprep.subr.mxu0 0.0
        %867 = vmatpush1.msra.mxu0 0.0
        %868 = vmatprep.subr.mxu0 0.0
        %869 = vmatpush1.msra.mxu0 %v745
        %870 = vmatprep.subr.mxu0 0.0
        %871 = vmatpush2.msra.mxu0 0.0
        %872 = vmatprep.subr.mxu0 0.0
        %873 = vmatpush2.msra.mxu0 0.0
        %874 = vmatprep.subr.mxu0 0.0
        %875 = vmatpush2.msra.mxu0 0.0
        %876 = vmatprep.subr.mxu0 0.0
        %877 = vmatpush2.msra.mxu0 0.0
        %878 = vmatprep.subr.mxu0 0.0
        %879 = vmatpush2.msra.mxu0 0.0
        %880 = vmatprep.subr.mxu0 0.0
        %881 = vmatpush2.msra.mxu0 0.0
        %882 = vmatprep.subr.mxu0 0.0
        %883 = vmatpush2.msra.mxu0 0.0
        %884 = vmatprep.subr.mxu0 0.0
        %885 = vmatpush2.msra.mxu0 0.0
        %886 = vmatprep.subr.mxu0 0.0
        %887 = vmatpush2.msra.mxu0 0.0
        %888 = vmatprep.subr.mxu0 0.0
        %889 = vmatpush2.msra.mxu0 0.0
        %890 = vmatprep.subr.mxu0 0.0
        %891 = vmatpush2.msra.mxu0 0.0
        %892 = vmatprep.subr.mxu0 0.0
        %893 = vmatpush2.msra.mxu0 0.0
        %894 = vmatprep.subr.mxu0 0.0
        %895 = vmatpush2.msra.mxu0 0.0
        %896 = vmatprep.subr.mxu0 0.0
        %897 = vmatpush2.msra.mxu0 0.0
        %898 = vmatprep.subr.mxu0 0.0
        %899 = vmatpush2.msra.mxu0 0.0
        %900 = vmatprep.subr.mxu0 0.0
        %901 = vmatpush2.msra.mxu0 0.0
        %902 = vmatprep.mubr.f32.mxu0 0.0
        %903 = vmatmul.mubr.f32.gmra.mxu0 %v836
        %v904 = vpop.f32.mrf.mxu0
        %v905 = vadd.f32 0.0, %v904
        %v906 = vpop.f32.mrf.mxu0
        %907 = vdwg.mxu0
        %908 = vrot.lane.b32.xlu0 %v556, 120
        %v909 = vpop.permute.xlu0 %908
        %910 = vrot.lane.b32.xlu0 %v649, 120
        %v911 = vpop.permute.xlu0 %910
        %v912 = vsel %vm746, %v909, 0
        %v914 = vsel %vm746, %v911, 0
        %916 = vmatprep.subr.mxu0 0.0
        %917 = vmatpush1.xpose.msra.mxu0 0.0
        %918 = vmatprep.subr.mxu0 0.0
        %919 = vmatpush1.xpose.msra.mxu0 0.0
        %920 = vmatprep.subr.mxu0 0.0
        %921 = vmatpush1.xpose.msra.mxu0 0.0
        %922 = vmatprep.subr.mxu0 0.0
        %923 = vmatpush1.xpose.msra.mxu0 0.0
        %924 = vmatprep.subr.mxu0 0.0
        %925 = vmatpush1.xpose.msra.mxu0 0.0
        %926 = vmatprep.subr.mxu0 0.0
        %927 = vmatpush1.xpose.msra.mxu0 0.0
        %928 = vmatprep.subr.mxu0 0.0
        %929 = vmatpush1.xpose.msra.mxu0 0.0
        %930 = vmatprep.subr.mxu0 0.0
        %931 = vmatpush1.xpose.msra.mxu0 0.0
        %932 = vmatprep.subr.mxu0 0.0
        %933 = vmatpush1.xpose.msra.mxu0 0.0
        %934 = vmatprep.subr.mxu0 0.0
        %935 = vmatpush1.xpose.msra.mxu0 0.0
        %936 = vmatprep.subr.mxu0 0.0
        %937 = vmatpush1.xpose.msra.mxu0 0.0
        %938 = vmatprep.subr.mxu0 0.0
        %939 = vmatpush1.xpose.msra.mxu0 0.0
        %940 = vmatprep.subr.mxu0 0.0
        %941 = vmatpush1.xpose.msra.mxu0 0.0
        %942 = vmatprep.subr.mxu0 0.0
        %943 = vmatpush1.xpose.msra.mxu0 0.0
        %944 = vmatprep.subr.mxu0 0.0
        %945 = vmatpush1.xpose.msra.mxu0 0.0
        %946 = vmatprep.subr.mxu0 0.0
        %947 = vmatpush1.xpose.msra.mxu0 %v914
        %948 = vmatprep.subr.mxu0 0.0
        %949 = vmatpush2.xpose.msra.mxu0 0.0
        %950 = vmatprep.subr.mxu0 0.0
        %951 = vmatpush2.xpose.msra.mxu0 0.0
        %952 = vmatprep.subr.mxu0 0.0
        %953 = vmatpush2.xpose.msra.mxu0 0.0
        %954 = vmatprep.subr.mxu0 0.0
        %955 = vmatpush2.xpose.msra.mxu0 0.0
        %956 = vmatprep.subr.mxu0 0.0
        %957 = vmatpush2.xpose.msra.mxu0 0.0
        %958 = vmatprep.subr.mxu0 0.0
        %959 = vmatpush2.xpose.msra.mxu0 0.0
        %960 = vmatprep.subr.mxu0 0.0
        %961 = vmatpush2.xpose.msra.mxu0 0.0
        %962 = vmatprep.subr.mxu0 0.0
        %963 = vmatpush2.xpose.msra.mxu0 0.0
        %964 = vmatprep.subr.mxu0 0.0
        %965 = vmatpush2.xpose.msra.mxu0 0.0
        %966 = vmatprep.subr.mxu0 0.0
        %967 = vmatpush2.xpose.msra.mxu0 0.0
        %968 = vmatprep.subr.mxu0 0.0
        %969 = vmatpush2.xpose.msra.mxu0 0.0
        %970 = vmatprep.subr.mxu0 0.0
        %971 = vmatpush2.xpose.msra.mxu0 0.0
        %972 = vmatprep.subr.mxu0 0.0
        %973 = vmatpush2.xpose.msra.mxu0 0.0
        %974 = vmatprep.subr.mxu0 0.0
        %975 = vmatpush2.xpose.msra.mxu0 0.0
        %976 = vmatprep.subr.mxu0 0.0
        %977 = vmatpush2.xpose.msra.mxu0 0.0
        %978 = vmatprep.subr.mxu0 0.0
        %979 = vmatpush2.xpose.msra.mxu0 0.0
        %980 = vmatprep.mubr.f32.mxu0 0.0
        %981 = vmatmul.mubr.f32.gmra.mxu0 %v912
        %v982 = vpop.f32.mrf.mxu0
        %v983 = vadd.f32 0.0, %v982
        %v984 = vpop.f32.mrf.mxu0
        %985 = vdwg.mxu0
        %v986 = vmul.f32 %v983, 0.35355338
        %v987 = vsel %vm746, %v986, -inf
        %988 = vmax.xlane.f32.xlu0 %v987
        %v989 = vpop.xlane.xlu0 %988
        %v990 = vsub.f32 %v986, %v989
        %v991 = vmul.f32 %v990, 1.442695
        %v992 = vpow.pop %v991
        %v993 = vsel %vm746, %v992, 0.0
        %994 = vadd.xlane.f32.xlu0 %v993
        %v995 = vpop.xlane.xlu0 %994
        %v996 = vrcp.pop %v995
        %v997 = vmul.f32 %v992, %v996
        %999 = vrot.lane.b32.xlu0 %v745, 120
        %v1000 = vpop.permute.xlu0 %999
        %v1003 = vsel %vm746, %v997, 0
        %1005 = vmatprep.subr.mxu0 0.0
        %1006 = vmatpush1.msra.mxu0 0.0
        %1007 = vmatprep.subr.mxu0 0.0
        %1008 = vmatpush1.msra.mxu0 0.0
        %1009 = vmatprep.subr.mxu0 0.0
        %1010 = vmatpush1.msra.mxu0 0.0
        %1011 = vmatprep.subr.mxu0 0.0
        %1012 = vmatpush1.msra.mxu0 0.0
        %1013 = vmatprep.subr.mxu0 0.0
        %1014 = vmatpush1.msra.mxu0 0.0
        %1015 = vmatprep.subr.mxu0 0.0
        %1016 = vmatpush1.msra.mxu0 0.0
        %1017 = vmatprep.subr.mxu0 0.0
        %1018 = vmatpush1.msra.mxu0 0.0
        %1019 = vmatprep.subr.mxu0 0.0
        %1020 = vmatpush1.msra.mxu0 0.0
        %1021 = vmatprep.subr.mxu0 0.0
        %1022 = vmatpush1.msra.mxu0 0.0
        %1023 = vmatprep.subr.mxu0 0.0
        %1024 = vmatpush1.msra.mxu0 0.0
        %1025 = vmatprep.subr.mxu0 0.0
        %1026 = vmatpush1.msra.mxu0 0.0
        %1027 = vmatprep.subr.mxu0 0.0
        %1028 = vmatpush1.msra.mxu0 0.0
        %1029 = vmatprep.subr.mxu0 0.0
        %1030 = vmatpush1.msra.mxu0 0.0
        %1031 = vmatprep.subr.mxu0 0.0
        %1032 = vmatpush1.msra.mxu0 0.0
        %1033 = vmatprep.subr.mxu0 0.0
        %1034 = vmatpush1.msra.mxu0 0.0
        %1035 = vmatprep.subr.mxu0 0.0
        %1036 = vmatpush1.msra.mxu0 %v1000
        %1037 = vmatprep.subr.mxu0 0.0
        %1038 = vmatpush2.msra.mxu0 0.0
        %1039 = vmatprep.subr.mxu0 0.0
        %1040 = vmatpush2.msra.mxu0 0.0
        %1041 = vmatprep.subr.mxu0 0.0
        %1042 = vmatpush2.msra.mxu0 0.0
        %1043 = vmatprep.subr.mxu0 0.0
        %1044 = vmatpush2.msra.mxu0 0.0
        %1045 = vmatprep.subr.mxu0 0.0
        %1046 = vmatpush2.msra.mxu0 0.0
        %1047 = vmatprep.subr.mxu0 0.0
        %1048 = vmatpush2.msra.mxu0 0.0
        %1049 = vmatprep.subr.mxu0 0.0
        %1050 = vmatpush2.msra.mxu0 0.0
        %1051 = vmatprep.subr.mxu0 0.0
        %1052 = vmatpush2.msra.mxu0 0.0
        %1053 = vmatprep.subr.mxu0 0.0
        %1054 = vmatpush2.msra.mxu0 0.0
        %1055 = vmatprep.subr.mxu0 0.0
        %1056 = vmatpush2.msra.mxu0 0.0
        %1057 = vmatprep.subr.mxu0 0.0
        %1058 = vmatpush2.msra.mxu0 0.0
        %1059 = vmatprep.subr.mxu0 0.0
        %1060 = vmatpush2.msra.mxu0 0.0
        %1061 = vmatprep.subr.mxu0 0.0
        %1062 = vmatpush2.msra.mxu0 0.0
        %1063 = vmatprep.subr.mxu0 0.0
        %1064 = vmatpush2.msra.mxu0 0.0
        %1065 = vmatprep.subr.mxu0 0.0
        %1066 = vmatpush2.msra.mxu0 0.0
        %1067 = vmatprep.subr.mxu0 0.0
        %1068 = vmatpush2.msra.mxu0 0.0
        %1069 = vmatprep.mubr.f32.mxu0 0.0
        %1070 = vmatmul.mubr.f32.gmra.mxu0 %v1003
        %v1071 = vpop.f32.mrf.mxu0
        %v1072 = vadd.f32 0.0, %v1071
        %v1073 = vpop.f32.mrf.mxu0
        %1074 = vdwg.mxu0
        %1075 = vrot.lane.b32.xlu0 %v556, 112
        %v1076 = vpop.permute.xlu0 %1075
        %1077 = vrot.lane.b32.xlu0 %v649, 112
        %v1078 = vpop.permute.xlu0 %1077
        %v1079 = vsel %vm746, %v1076, 0
        %v1081 = vsel %vm746, %v1078, 0
        %1083 = vmatprep.subr.mxu0 0.0
        %1084 = vmatpush1.xpose.msra.mxu0 0.0
        %1085 = vmatprep.subr.mxu0 0.0
        %1086 = vmatpush1.xpose.msra.mxu0 0.0
        %1087 = vmatprep.subr.mxu0 0.0
        %1088 = vmatpush1.xpose.msra.mxu0 0.0
        %1089 = vmatprep.subr.mxu0 0.0
        %1090 = vmatpush1.xpose.msra.mxu0 0.0
        %1091 = vmatprep.subr.mxu0 0.0
        %1092 = vmatpush1.xpose.msra.mxu0 0.0
        %1093 = vmatprep.subr.mxu0 0.0
        %1094 = vmatpush1.xpose.msra.mxu0 0.0
        %1095 = vmatprep.subr.mxu0 0.0
        %1096 = vmatpush1.xpose.msra.mxu0 0.0
        %1097 = vmatprep.subr.mxu0 0.0
        %1098 = vmatpush1.xpose.msra.mxu0 0.0
        %1099 = vmatprep.subr.mxu0 0.0
        %1100 = vmatpush1.xpose.msra.mxu0 0.0
        %1101 = vmatprep.subr.mxu0 0.0
        %1102 = vmatpush1.xpose.msra.mxu0 0.0
        %1103 = vmatprep.subr.mxu0 0.0
        %1104 = vmatpush1.xpose.msra.mxu0 0.0
        %1105 = vmatprep.subr.mxu0 0.0
        %1106 = vmatpush1.xpose.msra.mxu0 0.0
        %1107 = vmatprep.subr.mxu0 0.0
        %1108 = vmatpush1.xpose.msra.mxu0 0.0
        %1109 = vmatprep.subr.mxu0 0.0
        %1110 = vmatpush1.xpose.msra.mxu0 0.0
        %1111 = vmatprep.subr.mxu0 0.0
        %1112 = vmatpush1.xpose.msra.mxu0 0.0
        %1113 = vmatprep.subr.mxu0 0.0
        %1114 = vmatpush1.xpose.msra.mxu0 %v1081
        %1115 = vmatprep.subr.mxu0 0.0
        %1116 = vmatpush2.xpose.msra.mxu0 0.0
        %1117 = vmatprep.subr.mxu0 0.0
        %1118 = vmatpush2.xpose.msra.mxu0 0.0
        %1119 = vmatprep.subr.mxu0 0.0
        %1120 = vmatpush2.xpose.msra.mxu0 0.0
        %1121 = vmatprep.subr.mxu0 0.0
        %1122 = vmatpush2.xpose.msra.mxu0 0.0
        %1123 = vmatprep.subr.mxu0 0.0
        %1124 = vmatpush2.xpose.msra.mxu0 0.0
        %1125 = vmatprep.subr.mxu0 0.0
        %1126 = vmatpush2.xpose.msra.mxu0 0.0
        %1127 = vmatprep.subr.mxu0 0.0
        %1128 = vmatpush2.xpose.msra.mxu0 0.0
        %1129 = vmatprep.subr.mxu0 0.0
        %1130 = vmatpush2.xpose.msra.mxu0 0.0
        %1131 = vmatprep.subr.mxu0 0.0
        %1132 = vmatpush2.xpose.msra.mxu0 0.0
        %1133 = vmatprep.subr.mxu0 0.0
        %1134 = vmatpush2.xpose.msra.mxu0 0.0
        %1135 = vmatprep.subr.mxu0 0.0
        %1136 = vmatpush2.xpose.msra.mxu0 0.0
        %1137 = vmatprep.subr.mxu0 0.0
        %1138 = vmatpush2.xpose.msra.mxu0 0.0
        %1139 = vmatprep.subr.mxu0 0.0
        %1140 = vmatpush2.xpose.msra.mxu0 0.0
        %1141 = vmatprep.subr.mxu0 0.0
        %1142 = vmatpush2.xpose.msra.mxu0 0.0
        %1143 = vmatprep.subr.mxu0 0.0
        %1144 = vmatpush2.xpose.msra.mxu0 0.0
        %1145 = vmatprep.subr.mxu0 0.0
        %1146 = vmatpush2.xpose.msra.mxu0 0.0
        %1147 = vmatprep.mubr.f32.mxu0 0.0
        %1148 = vmatmul.mubr.f32.gmra.mxu0 %v1079
        %v1149 = vpop.f32.mrf.mxu0
        %v1150 = vadd.f32 0.0, %v1149
        %v1151 = vpop.f32.mrf.mxu0
        %1152 = vdwg.mxu0
        %v1153 = vmul.f32 %v1150, 0.35355338
        %v1154 = vsel %vm746, %v1153, -inf
        %1155 = vmax.xlane.f32.xlu0 %v1154
        %v1156 = vpop.xlane.xlu0 %1155
        %v1157 = vsub.f32 %v1153, %v1156
        %v1158 = vmul.f32 %v1157, 1.442695
        %v1159 = vpow.pop %v1158
        %v1160 = vsel %vm746, %v1159, 0.0
        %1161 = vadd.xlane.f32.xlu0 %v1160
        %v1162 = vpop.xlane.xlu0 %1161
        %v1163 = vrcp.pop %v1162
        %v1164 = vmul.f32 %v1159, %v1163
        %1165 = vrot.lane.b32.xlu0 %v745, 112
        %v1166 = vpop.permute.xlu0 %1165
        %v1169 = vsel %vm746, %v1164, 0
        %1171 = vmatprep.subr.mxu0 0.0
        %1172 = vmatpush1.msra.mxu0 0.0
        %1173 = vmatprep.subr.mxu0 0.0
        %1174 = vmatpush1.msra.mxu0 0.0
        %1175 = vmatprep.subr.mxu0 0.0
        %1176 = vmatpush1.msra.mxu0 0.0
        %1177 = vmatprep.subr.mxu0 0.0
        %1178 = vmatpush1.msra.mxu0 0.0
        %1179 = vmatprep.subr.mxu0 0.0
        %1180 = vmatpush1.msra.mxu0 0.0
        %1181 = vmatprep.subr.mxu0 0.0
        %1182 = vmatpush1.msra.mxu0 0.0
        %1183 = vmatprep.subr.mxu0 0.0
        %1184 = vmatpush1.msra.mxu0 0.0
        %1185 = vmatprep.subr.mxu0 0.0
        %1186 = vmatpush1.msra.mxu0 0.0
        %1187 = vmatprep.subr.mxu0 0.0
        %1188 = vmatpush1.msra.mxu0 0.0
        %1189 = vmatprep.subr.mxu0 0.0
        %1190 = vmatpush1.msra.mxu0 0.0
        %1191 = vmatprep.subr.mxu0 0.0
        %1192 = vmatpush1.msra.mxu0 0.0
        %1193 = vmatprep.subr.mxu0 0.0
        %1194 = vmatpush1.msra.mxu0 0.0
        %1195 = vmatprep.subr.mxu0 0.0
        %1196 = vmatpush1.msra.mxu0 0.0
        %1197 = vmatprep.subr.mxu0 0.0
        %1198 = vmatpush1.msra.mxu0 0.0
        %1199 = vmatprep.subr.mxu0 0.0
        %1200 = vmatpush1.msra.mxu0 0.0
        %1201 = vmatprep.subr.mxu0 0.0
        %1202 = vmatpush1.msra.mxu0 %v1166
        %1203 = vmatprep.subr.mxu0 0.0
        %1204 = vmatpush2.msra.mxu0 0.0
        %1205 = vmatprep.subr.mxu0 0.0
        %1206 = vmatpush2.msra.mxu0 0.0
        %1207 = vmatprep.subr.mxu0 0.0
        %1208 = vmatpush2.msra.mxu0 0.0
        %1209 = vmatprep.subr.mxu0 0.0
        %1210 = vmatpush2.msra.mxu0 0.0
        %1211 = vmatprep.subr.mxu0 0.0
        %1212 = vmatpush2.msra.mxu0 0.0
        %1213 = vmatprep.subr.mxu0 0.0
        %1214 = vmatpush2.msra.mxu0 0.0
        %1215 = vmatprep.subr.mxu0 0.0
        %1216 = vmatpush2.msra.mxu0 0.0
        %1217 = vmatprep.subr.mxu0 0.0
        %1218 = vmatpush2.msra.mxu0 0.0
        %1219 = vmatprep.subr.mxu0 0.0
        %1220 = vmatpush2.msra.mxu0 0.0
        %1221 = vmatprep.subr.mxu0 0.0
        %1222 = vmatpush2.msra.mxu0 0.0
        %1223 = vmatprep.subr.mxu0 0.0
        %1224 = vmatpush2.msra.mxu0 0.0
        %1225 = vmatprep.subr.mxu0 0.0
        %1226 = vmatpush2.msra.mxu0 0.0
        %1227 = vmatprep.subr.mxu0 0.0
        %1228 = vmatpush2.msra.mxu0 0.0
        %1229 = vmatprep.subr.mxu0 0.0
        %1230 = vmatpush2.msra.mxu0 0.0
        %1231 = vmatprep.subr.mxu0 0.0
        %1232 = vmatpush2.msra.mxu0 0.0
        %1233 = vmatprep.subr.mxu0 0.0
        %1234 = vmatpush2.msra.mxu0 0.0
        %1235 = vmatprep.mubr.f32.mxu0 0.0
        %1236 = vmatmul.mubr.f32.gmra.mxu0 %v1169
        %v1237 = vpop.f32.mrf.mxu0
        %v1238 = vadd.f32 0.0, %v1237
        %v1239 = vpop.f32.mrf.mxu0
        %1240 = vdwg.mxu0
        %1241 = vrot.lane.b32.xlu0 %v556, 104
        %v1242 = vpop.permute.xlu0 %1241
        %1243 = vrot.lane.b32.xlu0 %v649, 104
        %v1244 = vpop.permute.xlu0 %1243
        %v1245 = vsel %vm746, %v1242, 0
        %v1247 = vsel %vm746, %v1244, 0
        %1249 = vmatprep.subr.mxu0 0.0
        %1250 = vmatpush1.xpose.msra.mxu0 0.0
        %1251 = vmatprep.subr.mxu0 0.0
        %1252 = vmatpush1.xpose.msra.mxu0 0.0
        %1253 = vmatprep.subr.mxu0 0.0
        %1254 = vmatpush1.xpose.msra.mxu0 0.0
        %1255 = vmatprep.subr.mxu0 0.0
        %1256 = vmatpush1.xpose.msra.mxu0 0.0
        %1257 = vmatprep.subr.mxu0 0.0
        %1258 = vmatpush1.xpose.msra.mxu0 0.0
        %1259 = vmatprep.subr.mxu0 0.0
        %1260 = vmatpush1.xpose.msra.mxu0 0.0
        %1261 = vmatprep.subr.mxu0 0.0
        %1262 = vmatpush1.xpose.msra.mxu0 0.0
        %1263 = vmatprep.subr.mxu0 0.0
        %1264 = vmatpush1.xpose.msra.mxu0 0.0
        %1265 = vmatprep.subr.mxu0 0.0
        %1266 = vmatpush1.xpose.msra.mxu0 0.0
        %1267 = vmatprep.subr.mxu0 0.0
        %1268 = vmatpush1.xpose.msra.mxu0 0.0
        %1269 = vmatprep.subr.mxu0 0.0
        %1270 = vmatpush1.xpose.msra.mxu0 0.0
        %1271 = vmatprep.subr.mxu0 0.0
        %1272 = vmatpush1.xpose.msra.mxu0 0.0
        %1273 = vmatprep.subr.mxu0 0.0
        %1274 = vmatpush1.xpose.msra.mxu0 0.0
        %1275 = vmatprep.subr.mxu0 0.0
        %1276 = vmatpush1.xpose.msra.mxu0 0.0
        %1277 = vmatprep.subr.mxu0 0.0
        %1278 = vmatpush1.xpose.msra.mxu0 0.0
        %1279 = vmatprep.subr.mxu0 0.0
        %1280 = vmatpush1.xpose.msra.mxu0 %v1247
        %1281 = vmatprep.subr.mxu0 0.0
        %1282 = vmatpush2.xpose.msra.mxu0 0.0
        %1283 = vmatprep.subr.mxu0 0.0
        %1284 = vmatpush2.xpose.msra.mxu0 0.0
        %1285 = vmatprep.subr.mxu0 0.0
        %1286 = vmatpush2.xpose.msra.mxu0 0.0
        %1287 = vmatprep.subr.mxu0 0.0
        %1288 = vmatpush2.xpose.msra.mxu0 0.0
        %1289 = vmatprep.subr.mxu0 0.0
        %1290 = vmatpush2.xpose.msra.mxu0 0.0
        %1291 = vmatprep.subr.mxu0 0.0
        %1292 = vmatpush2.xpose.msra.mxu0 0.0
        %1293 = vmatprep.subr.mxu0 0.0
        %1294 = vmatpush2.xpose.msra.mxu0 0.0
        %1295 = vmatprep.subr.mxu0 0.0
        %1296 = vmatpush2.xpose.msra.mxu0 0.0
        %1297 = vmatprep.subr.mxu0 0.0
        %1298 = vmatpush2.xpose.msra.mxu0 0.0
        %1299 = vmatprep.subr.mxu0 0.0
        %1300 = vmatpush2.xpose.msra.mxu0 0.0
        %1301 = vmatprep.subr.mxu0 0.0
        %1302 = vmatpush2.xpose.msra.mxu0 0.0
        %1303 = vmatprep.subr.mxu0 0.0
        %1304 = vmatpush2.xpose.msra.mxu0 0.0
        %1305 = vmatprep.subr.mxu0 0.0
        %1306 = vmatpush2.xpose.msra.mxu0 0.0
        %1307 = vmatprep.subr.mxu0 0.0
        %1308 = vmatpush2.xpose.msra.mxu0 0.0
        %1309 = vmatprep.subr.mxu0 0.0
        %1310 = vmatpush2.xpose.msra.mxu0 0.0
        %1311 = vmatprep.subr.mxu0 0.0
        %1312 = vmatpush2.xpose.msra.mxu0 0.0
        %1313 = vmatprep.mubr.f32.mxu0 0.0
        %1314 = vmatmul.mubr.f32.gmra.mxu0 %v1245
        %v1315 = vpop.f32.mrf.mxu0
        %v1316 = vadd.f32 0.0, %v1315
        %v1317 = vpop.f32.mrf.mxu0
        %1318 = vdwg.mxu0
        %v1319 = vmul.f32 %v1316, 0.35355338
        %v1320 = vsel %vm746, %v1319, -inf
        %1321 = vmax.xlane.f32.xlu0 %v1320
        %v1322 = vpop.xlane.xlu0 %1321
        %v1323 = vsub.f32 %v1319, %v1322
        %v1324 = vmul.f32 %v1323, 1.442695
        %v1325 = vpow.pop %v1324
        %v1326 = vsel %vm746, %v1325, 0.0
        %1327 = vadd.xlane.f32.xlu0 %v1326
        %v1328 = vpop.xlane.xlu0 %1327
        %v1329 = vrcp.pop %v1328
        %v1330 = vmul.f32 %v1325, %v1329
        %1331 = vrot.lane.b32.xlu0 %v745, 104
        %v1332 = vpop.permute.xlu0 %1331
        %v1335 = vsel %vm746, %v1330, 0
        %1337 = vmatprep.subr.mxu0 0.0
        %1338 = vmatpush1.msra.mxu0 0.0
        %1339 = vmatprep.subr.mxu0 0.0
        %1340 = vmatpush1.msra.mxu0 0.0
        %1341 = vmatprep.subr.mxu0 0.0
        %1342 = vmatpush1.msra.mxu0 0.0
        %1343 = vmatprep.subr.mxu0 0.0
        %1344 = vmatpush1.msra.mxu0 0.0
        %1345 = vmatprep.subr.mxu0 0.0
        %1346 = vmatpush1.msra.mxu0 0.0
        %1347 = vmatprep.subr.mxu0 0.0
        %1348 = vmatpush1.msra.mxu0 0.0
        %1349 = vmatprep.subr.mxu0 0.0
        %1350 = vmatpush1.msra.mxu0 0.0
        %1351 = vmatprep.subr.mxu0 0.0
        %1352 = vmatpush1.msra.mxu0 0.0
        %1353 = vmatprep.subr.mxu0 0.0
        %1354 = vmatpush1.msra.mxu0 0.0
        %1355 = vmatprep.subr.mxu0 0.0
        %1356 = vmatpush1.msra.mxu0 0.0
        %1357 = vmatprep.subr.mxu0 0.0
        %1358 = vmatpush1.msra.mxu0 0.0
        %1359 = vmatprep.subr.mxu0 0.0
        %1360 = vmatpush1.msra.mxu0 0.0
        %1361 = vmatprep.subr.mxu0 0.0
        %1362 = vmatpush1.msra.mxu0 0.0
        %1363 = vmatprep.subr.mxu0 0.0
        %1364 = vmatpush1.msra.mxu0 0.0
        %1365 = vmatprep.subr.mxu0 0.0
        %1366 = vmatpush1.msra.mxu0 0.0
        %1367 = vmatprep.subr.mxu0 0.0
        %1368 = vmatpush1.msra.mxu0 %v1332
        %1369 = vmatprep.subr.mxu0 0.0
        %1370 = vmatpush2.msra.mxu0 0.0
        %1371 = vmatprep.subr.mxu0 0.0
        %1372 = vmatpush2.msra.mxu0 0.0
        %1373 = vmatprep.subr.mxu0 0.0
        %1374 = vmatpush2.msra.mxu0 0.0
        %1375 = vmatprep.subr.mxu0 0.0
        %1376 = vmatpush2.msra.mxu0 0.0
        %1377 = vmatprep.subr.mxu0 0.0
        %1378 = vmatpush2.msra.mxu0 0.0
        %1379 = vmatprep.subr.mxu0 0.0
        %1380 = vmatpush2.msra.mxu0 0.0
        %1381 = vmatprep.subr.mxu0 0.0
        %1382 = vmatpush2.msra.mxu0 0.0
        %1383 = vmatprep.subr.mxu0 0.0
        %1384 = vmatpush2.msra.mxu0 0.0
        %1385 = vmatprep.subr.mxu0 0.0
        %1386 = vmatpush2.msra.mxu0 0.0
        %1387 = vmatprep.subr.mxu0 0.0
        %1388 = vmatpush2.msra.mxu0 0.0
        %1389 = vmatprep.subr.mxu0 0.0
        %1390 = vmatpush2.msra.mxu0 0.0
        %1391 = vmatprep.subr.mxu0 0.0
        %1392 = vmatpush2.msra.mxu0 0.0
        %1393 = vmatprep.subr.mxu0 0.0
        %1394 = vmatpush2.msra.mxu0 0.0
        %1395 = vmatprep.subr.mxu0 0.0
        %1396 = vmatpush2.msra.mxu0 0.0
        %1397 = vmatprep.subr.mxu0 0.0
        %1398 = vmatpush2.msra.mxu0 0.0
        %1399 = vmatprep.subr.mxu0 0.0
        %1400 = vmatpush2.msra.mxu0 0.0
        %1401 = vmatprep.mubr.f32.mxu0 0.0
        %1402 = vmatmul.mubr.f32.gmra.mxu0 %v1335
        %v1403 = vpop.f32.mrf.mxu0
        %v1404 = vadd.f32 0.0, %v1403
        %v1405 = vpop.f32.mrf.mxu0
        %1406 = vdwg.mxu0
        %1408 = vrot.lane.b32.xlu0 %v1072, 8
        %v1409 = vpop.permute.xlu0 %1408
        %1412 = vrot.lane.b32.xlu0 %v1238, 16
        %v1413 = vpop.permute.xlu0 %1412
        %1416 = vrot.lane.b32.xlu0 %v1404, 24
        %v1417 = vpop.permute.xlu0 %1416
        %v1419 = vsel %vm746, %v905, %v1409
        %vm1420 = vcmask 130048
        %v1421 = vsel %vm1420, %v1419, %v1413
        %vm1422 = vcmask 195584
        %v1423 = vsel %vm1422, %v1421, %v1417
        %vm1424 = vcmask 261120
        %v1425 = vsel %vm1424, %v1423, 0.0
        %1426 = vst [vmem:[%s462] sm:$0xff] %v1425
        %s1427 = sand.u32 %s243, 1
        %s1428 = scalar_lea.sflag [#allocation4], %s1427
        %s1429 = sand.u32 %s243, 1
        %s1430 = smul.addr %s1429, 8
        %s1431 = scalar_lea.vmem [#allocation13], %s1430
        // Predicated region
        $region81: #{tpu_custom_call.1} parent=55 // pred_check
          %p1432 = pneg %p253
        $region82: #{tpu_custom_call.1} parent=55 // pred_check_branch
          %1434 = sbr.rel (%p1432) target = $region84
        $region83: #{tpu_custom_call.1} parent=55 // pred_region
          %s1436 = ssub.s32 128, 128
          %1437 = vsyncadd %s1428, %s1436
          %s1438 = smul.addr %s31, 128
          %s1439 = scalar_lea.hbm %s9, %s1438
          %s1441 = sshll.u32 %s1431, 4
          %s1442 = int_to_ptr.vmem [resolvable:$true] %s1441
          %1444 = dma.vmem_to_hbm [thread:$0]  %s1442, 128, %s1439, %s1428
        $region84: #{tpu_custom_call.1} parent=55 // pred_fallthru
          _
      $region56: #{tpu_custom_call.1} parent=5 // pred_fallthru
        _
      %p1445 = scmp.le.s32.totalorder 2, %s26
      // Predicated region
      $region85: #{tpu_custom_call.1} parent=5 // pred_check
        %p1446 = pneg %p1445
      $region86: #{tpu_custom_call.1} parent=5 // pred_check_branch
        %1448 = sbr.rel (%p1446) target = $region88
      $region87: #{tpu_custom_call.1} parent=5 // pred_region
        %s1449 = ssub.s32 %s26, 2
        // Predicated region
        $region89: #{tpu_custom_call.1} parent=87 // pred_check
          %p1450 = pneg %p259
        $region90: #{tpu_custom_call.1} parent=87 // pred_check_branch
          %1452 = sbr.rel (%p1450) target = $region92
        $region91: #{tpu_custom_call.1} parent=87 // pred_region
          %s1453 = sand.u32 %s244, 1
          %s1454 = scalar_lea.sflag [#allocation4], %s1453
          %s1455 = sand.u32 %s244, 1
          %s1456 = smul.addr %s1455, 8
          %s1457 = scalar_lea.vmem [#allocation13], %s1456
          %1458 = dma.done %s1454, 128
        $region92: #{tpu_custom_call.1} parent=87 // pred_fallthru
          _
      $region88: #{tpu_custom_call.1} parent=5 // pred_fallthru
        _
    $region6: #{tpu_custom_call.1} parent=1 // loop_footer
      %s30 = sadd.s32 1, %s26
    $region7: #{tpu_custom_call.1} parent=1 // loop_footer_branch
      %25 = sbr.rel target = $region3
    $region8: #{tpu_custom_call.1} parent=1 // loop_exit
      _
    %1459 = vsyncpa [#allocation3], 1
    %s1460 = scalar_lea.sflag [#allocation3], 1
    %1461 = vsyncpa %s1460, 1
    %1462 = vsyncpa [#allocation6], 1
    %s1463 = scalar_lea.sflag [#allocation6], 1
    %1464 = vsyncpa %s1463, 1
    %1465 = vsyncpa [#allocation9], 1
    %1466 = vsyncpa [#allocation12], 1
    %1467 = vsyncpa [#allocation4], 1
    %s1468 = scalar_lea.sflag [#allocation4], 1
    %1469 = vsyncpa %s1468, 1

</llo_original>
